<compile_context>
chip_gen: v6e
topology: v6e:2x2x1
jax: 0.10.0
libtpu: 0.0.40
codegen_flags: <defaults>
</compile_context>

<pallas_src>
import functools

import jax
import jax.numpy as jnp
from jax.experimental import pallas as pl
from jax.experimental.pallas import tpu as pltpu


# ---------------------------------------------------------------------------
# helpers
# ---------------------------------------------------------------------------
def _xavier(key, fan_in, fan_out):
    bound = (6.0 / (fan_in + fan_out)) ** 0.5
    return jax.random.uniform(key, (fan_in, fan_out), jnp.float32, -bound, bound)


# ---------------------------------------------------------------------------
# per-layer body (traced inline inside the fused kernel; all shapes static)
# ---------------------------------------------------------------------------
def _down_layer(pos, pos_t, feat, w_ref, b_ref, g_ref, e_ref, k, ds_ratio):
    f32, bf16 = jnp.float32, jnp.bfloat16
    n = pos.shape[0]
    m = n // ds_ratio
    din = feat.shape[1]
    w = w_ref[...]                                   # (din+3, dout), rows = [feat | pos]
    dout = w.shape[1]
    w_f = w[0:din, :].astype(bf16)                   # feature rows -> bf16 MXU operand
    w_p = w[din:din + 3, :].astype(f32)              # position rows (loaded once)
    b = b_ref[...].astype(f32)                       # (1, dout)
    gamma = g_ref[...].astype(f32)
    beta = e_ref[...].astype(f32)

    # --- project every point once -------------------------------------------------
    # (neighbor - center) @ W + b distributes, so the grouped (M*k, din+3) matmul
    # collapses to a single (n, din) projection; the 3-wide position part is VPU FMAs.
    src_proj = jnp.dot(feat.astype(bf16), w_f, preferred_element_type=f32)   # (n, dout)
    for d in range(3):
        src_proj = src_proj + pos[:, d:d + 1] * w_p[d:d + 1, :]

    # --- in-kernel stride downsample via one-hot selection (no XLA glue) -----------
    row_m = jax.lax.broadcasted_iota(jnp.int32, (m, n), 0)
    col_n = jax.lax.broadcasted_iota(jnp.int32, (m, n), 1)
    sel_ds = col_n == row_m * ds_ratio                                       # (m, n)
    pos_ds = jnp.dot(sel_ds.astype(f32), pos, preferred_element_type=f32)    # (m, 3)
    row_n = jax.lax.broadcasted_iota(jnp.int32, (n, m), 0)
    col_m = jax.lax.broadcasted_iota(jnp.int32, (n, m), 1)
    sel_ds_t = row_n == col_m * ds_ratio                                     # (n, m)
    pos_t_ds = jnp.dot(pos_t, sel_ds_t.astype(f32),
                       preferred_element_type=f32)                           # (3, m)

    # --- pairwise squared distances, VPU-only --------------------------------------
    dist = jnp.zeros((m, n), f32)
    for d in range(3):
        diff = pos_ds[:, d:d + 1] - pos_t[d:d + 1, :]
        dist = dist + diff * diff

    # --- kNN: k masked-argmin passes; stack center one-hot with neighbor one-hots --
    colf = col_n.astype(f32)
    big = f32(1e30)
    onehots = [sel_ds.astype(bf16)]                  # row-block 0: the centers themselves
    for _ in range(k):
        minv = jnp.min(dist, axis=-1, keepdims=True)                         # (m, 1)
        first = jnp.min(jnp.where(dist <= minv, colf, f32(n)),
                        axis=-1, keepdims=True)                              # lowest idx
        oh = colf == first                                                   # (m, n)
        onehots.append(oh.astype(bf16))
        dist = jnp.where(oh, big, dist)
    sel = jnp.concatenate(onehots, axis=0)                                   # ((k+1)m, n)

    # one MXU push gathers the center projection + all k neighbor projections
    gath = jnp.dot(sel, src_proj.astype(bf16), preferred_element_type=f32)   # ((k+1)m, dout)
    ctr_proj = gath[0:m, :]
    neigh_max = gath[m:2 * m, :]
    for j in range(2, k + 1):
        neigh_max = jnp.maximum(neigh_max, gath[j * m:(j + 1) * m, :])

    # max_j ReLU(h_j) == ReLU(max_j h_j): ReLU monotone, center term constant over j
    h = jnp.maximum(neigh_max - ctr_proj + b, 0.0)

    # --- fused LayerNorm epilogue ---------------------------------------------------
    mu = jnp.mean(h, axis=-1, keepdims=True)
    var = jnp.mean((h - mu) * (h - mu), axis=-1, keepdims=True)
    y = (h - mu) * jax.lax.rsqrt(var + 1e-5) * gamma + beta
    return pos_ds, pos_t_ds, y


# ---------------------------------------------------------------------------
# fully fused forward kernel: ff + 4 down layers + classifier head, one batch/step
# ---------------------------------------------------------------------------
def _dlptnet_kernel(x_ref, post_ref, ffw_ref, ffb_ref,
                    w1_ref, b1_ref, g1_ref, e1_ref,
                    w2_ref, b2_ref, g2_ref, e2_ref,
                    w3_ref, b3_ref, g3_ref, e3_ref,
                    w4_ref, b4_ref, g4_ref, e4_ref,
                    cw1_ref, cb1_ref, cw2_ref, cb2_ref,
                    o_ref, *, k, ds_ratio):
    f32 = jnp.float32
    x = x_ref[0].astype(f32)                          # (N, 6)
    pos = x[:, 0:3]                                   # (N, 3)
    feat_raw = x[:, 3:6]                              # (N, 3)
    pos_t = post_ref[0].astype(f32)                   # (3, N)

    # --- ff Linear, Din == 3: three VPU broadcast-FMAs instead of a K=3 MXU matmul --
    ffw = ffw_ref[...].astype(f32)                    # (3, D1)
    feat = jnp.zeros((x.shape[0], ffw.shape[1]), f32) + ffb_ref[...].astype(f32)
    for d in range(3):
        feat = feat + feat_raw[:, d:d + 1] * ffw[d:d + 1, :]

    # --- 4 DLPT down layers, fully unrolled at trace time ---------------------------
    layer_refs = ((w1_ref, b1_ref, g1_ref, e1_ref),
                  (w2_ref, b2_ref, g2_ref, e2_ref),
                  (w3_ref, b3_ref, g3_ref, e3_ref),
                  (w4_ref, b4_ref, g4_ref, e4_ref))
    for (w_r, b_r, g_r, e_r) in layer_refs:
        pos, pos_t, feat = _down_layer(pos, pos_t, feat, w_r, b_r, g_r, e_r,
                                       k, ds_ratio)

    # --- classifier head folded into the epilogue (mean pool + MLP) -----------------
    pooled = jnp.mean(feat, axis=0, keepdims=True)                        # (1, D_last)
    h = jnp.dot(pooled, cw1_ref[...].astype(f32),
                preferred_element_type=f32) + cb1_ref[...].astype(f32)
    h = jnp.maximum(h, 0.0)
    y = jnp.dot(h, cw2_ref[...].astype(f32),
                preferred_element_type=f32) + cb2_ref[...].astype(f32)    # (1, n_cls)
    o_ref[0] = y.astype(o_ref.dtype)


def dlptnet_forward(x, params, ds_ratio, k):
    B, N, _ = x.shape
    n_cls = params["cls_w2"].shape[1]
    # Single piece of XLA glue for the whole forward: the (B, 3, N) transposed
    # positions, so the kernel never needs an in-kernel (N,3)->(3,N) value transpose.
    pos_t0 = jnp.transpose(x[:, :, :3], (0, 2, 1))

    def wspec(arr):
        nd = arr.ndim
        return pl.BlockSpec(arr.shape, lambda i, _nd=nd: (0,) * _nd)

    in_specs = [pl.BlockSpec((1, N, 6), lambda i: (i, 0, 0)),     # x
                pl.BlockSpec((1, 3, N), lambda i: (i, 0, 0)),     # pos transposed
                wspec(params["ff_w"]), wspec(params["ff_b"])]
    args = [x, pos_t0, params["ff_w"], params["ff_b"]]
    for li in range(1, 5):
        p = params[f"ds{li}"]
        for name in ("w", "b", "gamma", "beta"):
            in_specs.append(wspec(p[name]))
            args.append(p[name])
    for name in ("cls_w1", "cls_b1", "cls_w2", "cls_b2"):
        in_specs.append(wspec(params[name]))
        args.append(params[name])

    out = pl.pallas_call(
        functools.partial(_dlptnet_kernel, k=k, ds_ratio=ds_ratio),
        grid=(B,),
        in_specs=in_specs,
        out_specs=pl.BlockSpec((1, 1, n_cls), lambda i: (i, 0, 0)),
        out_shape=jax.ShapeDtypeStruct((B, 1, n_cls), jnp.float32),
        compiler_params=pltpu.CompilerParams(dimension_semantics=("parallel",)),
    )(*args)
    return out.reshape(B, n_cls)


# ---------------------------------------------------------------------------
# parameter init (Xavier, matching the PyTorch module's layer widths)
# ---------------------------------------------------------------------------
def init_params(key, layer_configs):
    d = layer_configs["d_config"]
    keys = jax.random.split(key, 16)
    params = {
        "ff_w": _xavier(keys[0], d[0], d[1]),
        "ff_b": jnp.zeros((1, d[1]), jnp.float32),
    }
    for i in range(4):
        din, dout = d[i + 1], d[i + 2]
        params[f"ds{i + 1}"] = {
            "w": _xavier(keys[1 + i], din + 3, dout),    # rows = [feat | pos]
            "b": jnp.zeros((1, dout), jnp.float32),
            "gamma": jnp.ones((1, dout), jnp.float32),
            "beta": jnp.zeros((1, dout), jnp.float32),
        }
    params["cls_w1"] = _xavier(keys[10], d[-1], 64)
    params["cls_b1"] = jnp.zeros((1, 64), jnp.float32)
    params["cls_w2"] = _xavier(keys[11], 64, 40)
    params["cls_b2"] = jnp.zeros((1, 40), jnp.float32)
    return params


# ---------------------------------------------------------------------------
if __name__ == "__main__":
    layer_configs = dict(
        ds_ratio=2,
        k=4,
        expansion_ratio=2,
        d_config=[3, 16, 32, 64, 128, 128],
        layer_norm=True,
        dropout_ratio=0.0,
    )
    B, N = 2, 64                                    # 64 -> 32 -> 16 -> 8 -> 4 points
    params = init_params(jax.random.PRNGKey(77), layer_configs)   # deterministic init
    x = jax.random.normal(jax.random.PRNGKey(0), (B, N, 6), jnp.float32)

    ds_ratio, k = layer_configs["ds_ratio"], layer_configs["k"]
    fwd = jax.jit(functools.partial(dlptnet_forward, ds_ratio=ds_ratio, k=k))
    out = jax.block_until_ready(fwd(x, params))

    assert out.shape == (B, 40) and out.dtype == jnp.float32
    assert bool(jnp.all(jnp.isfinite(out)))
    print("KERNEL_OK")
</pallas_src>

<mosaic_0001>
module attributes {stable_mosaic.version = 11 : i64} {
  func.func @_dlptnet_kernel(%arg0: i32, %arg1: memref<1x64x6xf32, #tpu.memory_space<vmem>>, %arg2: memref<1x3x64xf32, #tpu.memory_space<vmem>>, %arg3: memref<3x16xf32, #tpu.memory_space<vmem>>, %arg4: memref<1x16xf32, #tpu.memory_space<vmem>>, %arg5: memref<19x32xf32, #tpu.memory_space<vmem>>, %arg6: memref<1x32xf32, #tpu.memory_space<vmem>>, %arg7: memref<1x32xf32, #tpu.memory_space<vmem>>, %arg8: memref<1x32xf32, #tpu.memory_space<vmem>>, %arg9: memref<35x64xf32, #tpu.memory_space<vmem>>, %arg10: memref<1x64xf32, #tpu.memory_space<vmem>>, %arg11: memref<1x64xf32, #tpu.memory_space<vmem>>, %arg12: memref<1x64xf32, #tpu.memory_space<vmem>>, %arg13: memref<67x128xf32, #tpu.memory_space<vmem>>, %arg14: memref<1x128xf32, #tpu.memory_space<vmem>>, %arg15: memref<1x128xf32, #tpu.memory_space<vmem>>, %arg16: memref<1x128xf32, #tpu.memory_space<vmem>>, %arg17: memref<131x128xf32, #tpu.memory_space<vmem>>, %arg18: memref<1x128xf32, #tpu.memory_space<vmem>>, %arg19: memref<1x128xf32, #tpu.memory_space<vmem>>, %arg20: memref<1x128xf32, #tpu.memory_space<vmem>>, %arg21: memref<128x64xf32, #tpu.memory_space<vmem>>, %arg22: memref<1x64xf32, #tpu.memory_space<vmem>>, %arg23: memref<64x40xf32, #tpu.memory_space<vmem>>, %arg24: memref<1x40xf32, #tpu.memory_space<vmem>>, %arg25: memref<1x1x40xf32, #tpu.memory_space<vmem>>) attributes {dimension_semantics = [#tpu.dimension_semantics<parallel>], iteration_bounds = array<i64: 2>, scalar_prefetch = 0 : i64, scratch_operands = 0 : i64, tpu.core_type = #tpu.core_type<tc>, window_params = [{transform_indices = @transform_0, window_bounds = array<i64: 1, 64, 6>}, {transform_indices = @transform_1, window_bounds = array<i64: 1, 3, 64>}, {pipeline_mode = #tpu.pipeline_mode<synchronous>, transform_indices = @transform_2, window_bounds = array<i64: 3, 16>}, {pipeline_mode = #tpu.pipeline_mode<synchronous>, transform_indices = @transform_3, window_bounds = array<i64: 1, 16>}, {pipeline_mode = #tpu.pipeline_mode<synchronous>, transform_indices = @transform_4, window_bounds = array<i64: 19, 32>}, {pipeline_mode = #tpu.pipeline_mode<synchronous>, transform_indices = @transform_5, window_bounds = array<i64: 1, 32>}, {pipeline_mode = #tpu.pipeline_mode<synchronous>, transform_indices = @transform_6, window_bounds = array<i64: 1, 32>}, {pipeline_mode = #tpu.pipeline_mode<synchronous>, transform_indices = @transform_7, window_bounds = array<i64: 1, 32>}, {pipeline_mode = #tpu.pipeline_mode<synchronous>, transform_indices = @transform_8, window_bounds = array<i64: 35, 64>}, {pipeline_mode = #tpu.pipeline_mode<synchronous>, transform_indices = @transform_9, window_bounds = array<i64: 1, 64>}, {pipeline_mode = #tpu.pipeline_mode<synchronous>, transform_indices = @transform_10, window_bounds = array<i64: 1, 64>}, {pipeline_mode = #tpu.pipeline_mode<synchronous>, transform_indices = @transform_11, window_bounds = array<i64: 1, 64>}, {pipeline_mode = #tpu.pipeline_mode<synchronous>, transform_indices = @transform_12, window_bounds = array<i64: 67, 128>}, {pipeline_mode = #tpu.pipeline_mode<synchronous>, transform_indices = @transform_13, window_bounds = array<i64: 1, 128>}, {pipeline_mode = #tpu.pipeline_mode<synchronous>, transform_indices = @transform_14, window_bounds = array<i64: 1, 128>}, {pipeline_mode = #tpu.pipeline_mode<synchronous>, transform_indices = @transform_15, window_bounds = array<i64: 1, 128>}, {pipeline_mode = #tpu.pipeline_mode<synchronous>, transform_indices = @transform_16, window_bounds = array<i64: 131, 128>}, {pipeline_mode = #tpu.pipeline_mode<synchronous>, transform_indices = @transform_17, window_bounds = array<i64: 1, 128>}, {pipeline_mode = #tpu.pipeline_mode<synchronous>, transform_indices = @transform_18, window_bounds = array<i64: 1, 128>}, {pipeline_mode = #tpu.pipeline_mode<synchronous>, transform_indices = @transform_19, window_bounds = array<i64: 1, 128>}, {pipeline_mode = #tpu.pipeline_mode<synchronous>, transform_indices = @transform_20, window_bounds = array<i64: 128, 64>}, {pipeline_mode = #tpu.pipeline_mode<synchronous>, transform_indices = @transform_21, window_bounds = array<i64: 1, 64>}, {pipeline_mode = #tpu.pipeline_mode<synchronous>, transform_indices = @transform_22, window_bounds = array<i64: 64, 40>}, {pipeline_mode = #tpu.pipeline_mode<synchronous>, transform_indices = @transform_23, window_bounds = array<i64: 1, 40>}, {transform_indices = @transform_24, window_bounds = array<i64: 1, 1, 40>}]} {
    %c0 = arith.constant 0 : index
    %c0_0 = arith.constant 0 : index
    %c0_1 = arith.constant 0 : index
    %0 = vector.load %arg1[%c0, %c0_0, %c0_1] : memref<1x64x6xf32, #tpu.memory_space<vmem>>, vector<1x64x6xf32>
    %1 = vector.shape_cast %0 : vector<1x64x6xf32> to vector<64x6xf32>
    %2 = vector.extract_strided_slice %1 {offsets = [0, 0], sizes = [64, 3], strides = [1, 1]} : vector<64x6xf32> to vector<64x3xf32>
    %3 = vector.extract_strided_slice %1 {offsets = [0, 3], sizes = [64, 3], strides = [1, 1]} : vector<64x6xf32> to vector<64x3xf32>
    %c0_2 = arith.constant 0 : index
    %c0_3 = arith.constant 0 : index
    %c0_4 = arith.constant 0 : index
    %4 = vector.load %arg2[%c0_2, %c0_3, %c0_4] : memref<1x3x64xf32, #tpu.memory_space<vmem>>, vector<1x3x64xf32>
    %5 = vector.shape_cast %4 : vector<1x3x64xf32> to vector<3x64xf32>
    %c0_5 = arith.constant 0 : index
    %c0_6 = arith.constant 0 : index
    %6 = vector.load %arg3[%c0_5, %c0_6] : memref<3x16xf32, #tpu.memory_space<vmem>>, vector<3x16xf32>
    %cst = arith.constant 0.000000e+00 : f32
    %7 = vector.broadcast %cst : f32 to vector<64x16xf32>
    %c0_7 = arith.constant 0 : index
    %c0_8 = arith.constant 0 : index
    %8 = vector.load %arg4[%c0_7, %c0_8] : memref<1x16xf32, #tpu.memory_space<vmem>>, vector<1x16xf32>
    %9 = vector.broadcast %8 : vector<1x16xf32> to vector<64x16xf32>
    %10 = arith.addf %7, %9 : vector<64x16xf32>
    %11 = vector.extract_strided_slice %3 {offsets = [0, 0], sizes = [64, 1], strides = [1, 1]} : vector<64x3xf32> to vector<64x1xf32>
    %12 = vector.extract_strided_slice %6 {offsets = [0, 0], sizes = [1, 16], strides = [1, 1]} : vector<3x16xf32> to vector<1x16xf32>
    %13 = vector.broadcast %11 : vector<64x1xf32> to vector<64x16xf32>
    %14 = vector.broadcast %12 : vector<1x16xf32> to vector<64x16xf32>
    %15 = arith.mulf %13, %14 : vector<64x16xf32>
    %16 = arith.addf %10, %15 : vector<64x16xf32>
    %17 = vector.extract_strided_slice %3 {offsets = [0, 1], sizes = [64, 1], strides = [1, 1]} : vector<64x3xf32> to vector<64x1xf32>
    %18 = vector.extract_strided_slice %6 {offsets = [1, 0], sizes = [1, 16], strides = [1, 1]} : vector<3x16xf32> to vector<1x16xf32>
    %19 = vector.broadcast %17 : vector<64x1xf32> to vector<64x16xf32>
    %20 = vector.broadcast %18 : vector<1x16xf32> to vector<64x16xf32>
    %21 = arith.mulf %19, %20 : vector<64x16xf32>
    %22 = arith.addf %16, %21 : vector<64x16xf32>
    %23 = vector.extract_strided_slice %3 {offsets = [0, 2], sizes = [64, 1], strides = [1, 1]} : vector<64x3xf32> to vector<64x1xf32>
    %24 = vector.extract_strided_slice %6 {offsets = [2, 0], sizes = [1, 16], strides = [1, 1]} : vector<3x16xf32> to vector<1x16xf32>
    %25 = vector.broadcast %23 : vector<64x1xf32> to vector<64x16xf32>
    %26 = vector.broadcast %24 : vector<1x16xf32> to vector<64x16xf32>
    %27 = arith.mulf %25, %26 : vector<64x16xf32>
    %28 = arith.addf %22, %27 : vector<64x16xf32>
    %c0_9 = arith.constant 0 : index
    %c0_10 = arith.constant 0 : index
    %29 = vector.load %arg5[%c0_9, %c0_10] : memref<19x32xf32, #tpu.memory_space<vmem>>, vector<19x32xf32>
    %30 = vector.extract_strided_slice %29 {offsets = [0, 0], sizes = [16, 32], strides = [1, 1]} : vector<19x32xf32> to vector<16x32xf32>
    %31 = arith.truncf %30 : vector<16x32xf32> to vector<16x32xbf16>
    %32 = vector.extract_strided_slice %29 {offsets = [16, 0], sizes = [3, 32], strides = [1, 1]} : vector<19x32xf32> to vector<3x32xf32>
    %c0_11 = arith.constant 0 : index
    %c0_12 = arith.constant 0 : index
    %33 = vector.load %arg6[%c0_11, %c0_12] : memref<1x32xf32, #tpu.memory_space<vmem>>, vector<1x32xf32>
    %c0_13 = arith.constant 0 : index
    %c0_14 = arith.constant 0 : index
    %34 = vector.load %arg7[%c0_13, %c0_14] : memref<1x32xf32, #tpu.memory_space<vmem>>, vector<1x32xf32>
    %c0_15 = arith.constant 0 : index
    %c0_16 = arith.constant 0 : index
    %35 = vector.load %arg8[%c0_15, %c0_16] : memref<1x32xf32, #tpu.memory_space<vmem>>, vector<1x32xf32>
    %36 = arith.truncf %28 : vector<64x16xf32> to vector<64x16xbf16>
    %cst_17 = arith.constant dense<0.000000e+00> : vector<64x32xf32>
    %37 = tpu.matmul %36, %31, %cst_17 {dimension_numbers = #tpu.dot_dimension_numbers<[1], [0], [0], [1], [0, 0, 1, 1], [], []>} : vector<64x16xbf16>, vector<16x32xbf16>, vector<64x32xf32> -> vector<64x32xf32>
    %38 = vector.extract_strided_slice %2 {offsets = [0, 0], sizes = [64, 1], strides = [1, 1]} : vector<64x3xf32> to vector<64x1xf32>
    %39 = vector.extract_strided_slice %32 {offsets = [0, 0], sizes = [1, 32], strides = [1, 1]} : vector<3x32xf32> to vector<1x32xf32>
    %40 = vector.broadcast %38 : vector<64x1xf32> to vector<64x32xf32>
    %41 = vector.broadcast %39 : vector<1x32xf32> to vector<64x32xf32>
    %42 = arith.mulf %40, %41 : vector<64x32xf32>
    %43 = arith.addf %37, %42 : vector<64x32xf32>
    %44 = vector.extract_strided_slice %2 {offsets = [0, 1], sizes = [64, 1], strides = [1, 1]} : vector<64x3xf32> to vector<64x1xf32>
    %45 = vector.extract_strided_slice %32 {offsets = [1, 0], sizes = [1, 32], strides = [1, 1]} : vector<3x32xf32> to vector<1x32xf32>
    %46 = vector.broadcast %44 : vector<64x1xf32> to vector<64x32xf32>
    %47 = vector.broadcast %45 : vector<1x32xf32> to vector<64x32xf32>
    %48 = arith.mulf %46, %47 : vector<64x32xf32>
    %49 = arith.addf %43, %48 : vector<64x32xf32>
    %50 = vector.extract_strided_slice %2 {offsets = [0, 2], sizes = [64, 1], strides = [1, 1]} : vector<64x3xf32> to vector<64x1xf32>
    %51 = vector.extract_strided_slice %32 {offsets = [2, 0], sizes = [1, 32], strides = [1, 1]} : vector<3x32xf32> to vector<1x32xf32>
    %52 = vector.broadcast %50 : vector<64x1xf32> to vector<64x32xf32>
    %53 = vector.broadcast %51 : vector<1x32xf32> to vector<64x32xf32>
    %54 = arith.mulf %52, %53 : vector<64x32xf32>
    %55 = arith.addf %49, %54 : vector<64x32xf32>
    %56 = tpu.iota {dimensions = array<i32: 0>} : vector<32x64xi32>
    %57 = tpu.iota {dimensions = array<i32: 1>} : vector<32x64xi32>
    %c2_i32 = arith.constant 2 : i32
    %58 = vector.broadcast %c2_i32 : i32 to vector<32x64xi32>
    %59 = arith.muli %56, %58 : vector<32x64xi32>
    %60 = arith.cmpi eq, %57, %59 : vector<32x64xi32>
    %61 = arith.extui %60 : vector<32x64xi1> to vector<32x64xi32>
    %62 = arith.sitofp %61 : vector<32x64xi32> to vector<32x64xf32>
    %cst_18 = arith.constant dense<0.000000e+00> : vector<32x3xf32>
    %63 = tpu.matmul %62, %2, %cst_18 {dimension_numbers = #tpu.dot_dimension_numbers<[1], [0], [0], [1], [0, 0, 1, 1], [], []>} : vector<32x64xf32>, vector<64x3xf32>, vector<32x3xf32> -> vector<32x3xf32>
    %64 = tpu.iota {dimensions = array<i32: 0>} : vector<64x32xi32>
    %65 = tpu.iota {dimensions = array<i32: 1>} : vector<64x32xi32>
    %c2_i32_19 = arith.constant 2 : i32
    %66 = vector.broadcast %c2_i32_19 : i32 to vector<64x32xi32>
    %67 = arith.muli %65, %66 : vector<64x32xi32>
    %68 = arith.cmpi eq, %64, %67 : vector<64x32xi32>
    %69 = arith.extui %68 : vector<64x32xi1> to vector<64x32xi32>
    %70 = arith.sitofp %69 : vector<64x32xi32> to vector<64x32xf32>
    %cst_20 = arith.constant dense<0.000000e+00> : vector<3x32xf32>
    %71 = tpu.matmul %5, %70, %cst_20 {dimension_numbers = #tpu.dot_dimension_numbers<[1], [0], [0], [1], [0, 0, 1, 1], [], []>} : vector<3x64xf32>, vector<64x32xf32>, vector<3x32xf32> -> vector<3x32xf32>
    %cst_21 = arith.constant 0.000000e+00 : f32
    %72 = vector.broadcast %cst_21 : f32 to vector<32x64xf32>
    %73 = vector.extract_strided_slice %63 {offsets = [0, 0], sizes = [32, 1], strides = [1, 1]} : vector<32x3xf32> to vector<32x1xf32>
    %74 = vector.extract_strided_slice %5 {offsets = [0, 0], sizes = [1, 64], strides = [1, 1]} : vector<3x64xf32> to vector<1x64xf32>
    %75 = vector.broadcast %73 : vector<32x1xf32> to vector<32x64xf32>
    %76 = vector.broadcast %74 : vector<1x64xf32> to vector<32x64xf32>
    %77 = arith.subf %75, %76 : vector<32x64xf32>
    %78 = arith.mulf %77, %77 : vector<32x64xf32>
    %79 = arith.addf %72, %78 : vector<32x64xf32>
    %80 = vector.extract_strided_slice %63 {offsets = [0, 1], sizes = [32, 1], strides = [1, 1]} : vector<32x3xf32> to vector<32x1xf32>
    %81 = vector.extract_strided_slice %5 {offsets = [1, 0], sizes = [1, 64], strides = [1, 1]} : vector<3x64xf32> to vector<1x64xf32>
    %82 = vector.broadcast %80 : vector<32x1xf32> to vector<32x64xf32>
    %83 = vector.broadcast %81 : vector<1x64xf32> to vector<32x64xf32>
    %84 = arith.subf %82, %83 : vector<32x64xf32>
    %85 = arith.mulf %84, %84 : vector<32x64xf32>
    %86 = arith.addf %79, %85 : vector<32x64xf32>
    %87 = vector.extract_strided_slice %63 {offsets = [0, 2], sizes = [32, 1], strides = [1, 1]} : vector<32x3xf32> to vector<32x1xf32>
    %88 = vector.extract_strided_slice %5 {offsets = [2, 0], sizes = [1, 64], strides = [1, 1]} : vector<3x64xf32> to vector<1x64xf32>
    %89 = vector.broadcast %87 : vector<32x1xf32> to vector<32x64xf32>
    %90 = vector.broadcast %88 : vector<1x64xf32> to vector<32x64xf32>
    %91 = arith.subf %89, %90 : vector<32x64xf32>
    %92 = arith.mulf %91, %91 : vector<32x64xf32>
    %93 = arith.addf %86, %92 : vector<32x64xf32>
    %94 = arith.sitofp %57 : vector<32x64xi32> to vector<32x64xf32>
    %95 = arith.extui %60 : vector<32x64xi1> to vector<32x64xi32>
    %96 = arith.sitofp %95 : vector<32x64xi32> to vector<32x64xf32>
    %97 = arith.truncf %96 : vector<32x64xf32> to vector<32x64xbf16>
    %cst_22 = arith.constant dense<0x7F800000> : vector<32xf32>
    %98 = vector.multi_reduction <minimumf>, %93, %cst_22 [1] : vector<32x64xf32> to vector<32xf32>
    %99 = vector.shape_cast %98 : vector<32xf32> to vector<32x1xf32>
    %100 = vector.broadcast %99 : vector<32x1xf32> to vector<32x64xf32>
    %101 = arith.cmpf ole, %93, %100 : vector<32x64xf32>
    %cst_23 = arith.constant 6.400000e+01 : f32
    %102 = vector.broadcast %cst_23 : f32 to vector<32x64xf32>
    %103 = arith.select %101, %94, %102 : vector<32x64xi1>, vector<32x64xf32>
    %cst_24 = arith.constant dense<0x7F800000> : vector<32xf32>
    %104 = vector.multi_reduction <minimumf>, %103, %cst_24 [1] : vector<32x64xf32> to vector<32xf32>
    %105 = vector.shape_cast %104 : vector<32xf32> to vector<32x1xf32>
    %106 = vector.broadcast %105 : vector<32x1xf32> to vector<32x64xf32>
    %107 = arith.cmpf oeq, %94, %106 : vector<32x64xf32>
    %108 = arith.extui %107 : vector<32x64xi1> to vector<32x64xi32>
    %109 = arith.sitofp %108 : vector<32x64xi32> to vector<32x64xf32>
    %110 = arith.truncf %109 : vector<32x64xf32> to vector<32x64xbf16>
    %cst_25 = arith.constant 1.000000e+30 : f32
    %111 = vector.broadcast %cst_25 : f32 to vector<32x64xf32>
    %112 = arith.select %107, %111, %93 : vector<32x64xi1>, vector<32x64xf32>
    %cst_26 = arith.constant dense<0x7F800000> : vector<32xf32>
    %113 = vector.multi_reduction <minimumf>, %112, %cst_26 [1] : vector<32x64xf32> to vector<32xf32>
    %114 = vector.shape_cast %113 : vector<32xf32> to vector<32x1xf32>
    %115 = vector.broadcast %114 : vector<32x1xf32> to vector<32x64xf32>
    %116 = arith.cmpf ole, %112, %115 : vector<32x64xf32>
    %cst_27 = arith.constant 6.400000e+01 : f32
    %117 = vector.broadcast %cst_27 : f32 to vector<32x64xf32>
    %118 = arith.select %116, %94, %117 : vector<32x64xi1>, vector<32x64xf32>
    %cst_28 = arith.constant dense<0x7F800000> : vector<32xf32>
    %119 = vector.multi_reduction <minimumf>, %118, %cst_28 [1] : vector<32x64xf32> to vector<32xf32>
    %120 = vector.shape_cast %119 : vector<32xf32> to vector<32x1xf32>
    %121 = vector.broadcast %120 : vector<32x1xf32> to vector<32x64xf32>
    %122 = arith.cmpf oeq, %94, %121 : vector<32x64xf32>
    %123 = arith.extui %122 : vector<32x64xi1> to vector<32x64xi32>
    %124 = arith.sitofp %123 : vector<32x64xi32> to vector<32x64xf32>
    %125 = arith.truncf %124 : vector<32x64xf32> to vector<32x64xbf16>
    %cst_29 = arith.constant 1.000000e+30 : f32
    %126 = vector.broadcast %cst_29 : f32 to vector<32x64xf32>
    %127 = arith.select %122, %126, %112 : vector<32x64xi1>, vector<32x64xf32>
    %cst_30 = arith.constant dense<0x7F800000> : vector<32xf32>
    %128 = vector.multi_reduction <minimumf>, %127, %cst_30 [1] : vector<32x64xf32> to vector<32xf32>
    %129 = vector.shape_cast %128 : vector<32xf32> to vector<32x1xf32>
    %130 = vector.broadcast %129 : vector<32x1xf32> to vector<32x64xf32>
    %131 = arith.cmpf ole, %127, %130 : vector<32x64xf32>
    %cst_31 = arith.constant 6.400000e+01 : f32
    %132 = vector.broadcast %cst_31 : f32 to vector<32x64xf32>
    %133 = arith.select %131, %94, %132 : vector<32x64xi1>, vector<32x64xf32>
    %cst_32 = arith.constant dense<0x7F800000> : vector<32xf32>
    %134 = vector.multi_reduction <minimumf>, %133, %cst_32 [1] : vector<32x64xf32> to vector<32xf32>
    %135 = vector.shape_cast %134 : vector<32xf32> to vector<32x1xf32>
    %136 = vector.broadcast %135 : vector<32x1xf32> to vector<32x64xf32>
    %137 = arith.cmpf oeq, %94, %136 : vector<32x64xf32>
    %138 = arith.extui %137 : vector<32x64xi1> to vector<32x64xi32>
    %139 = arith.sitofp %138 : vector<32x64xi32> to vector<32x64xf32>
    %140 = arith.truncf %139 : vector<32x64xf32> to vector<32x64xbf16>
    %cst_33 = arith.constant 1.000000e+30 : f32
    %141 = vector.broadcast %cst_33 : f32 to vector<32x64xf32>
    %142 = arith.select %137, %141, %127 : vector<32x64xi1>, vector<32x64xf32>
    %cst_34 = arith.constant dense<0x7F800000> : vector<32xf32>
    %143 = vector.multi_reduction <minimumf>, %142, %cst_34 [1] : vector<32x64xf32> to vector<32xf32>
    %144 = vector.shape_cast %143 : vector<32xf32> to vector<32x1xf32>
    %145 = vector.broadcast %144 : vector<32x1xf32> to vector<32x64xf32>
    %146 = arith.cmpf ole, %142, %145 : vector<32x64xf32>
    %cst_35 = arith.constant 6.400000e+01 : f32
    %147 = vector.broadcast %cst_35 : f32 to vector<32x64xf32>
    %148 = arith.select %146, %94, %147 : vector<32x64xi1>, vector<32x64xf32>
    %cst_36 = arith.constant dense<0x7F800000> : vector<32xf32>
    %149 = vector.multi_reduction <minimumf>, %148, %cst_36 [1] : vector<32x64xf32> to vector<32xf32>
    %150 = vector.shape_cast %149 : vector<32xf32> to vector<32x1xf32>
    %151 = vector.broadcast %150 : vector<32x1xf32> to vector<32x64xf32>
    %152 = arith.cmpf oeq, %94, %151 : vector<32x64xf32>
    %153 = arith.extui %152 : vector<32x64xi1> to vector<32x64xi32>
    %154 = arith.sitofp %153 : vector<32x64xi32> to vector<32x64xf32>
    %155 = arith.truncf %154 : vector<32x64xf32> to vector<32x64xbf16>
    %156 = tpu.concatenate %97, %110, %125, %140, %155 in 0 : vector<32x64xbf16>, vector<32x64xbf16>, vector<32x64xbf16>, vector<32x64xbf16>, vector<32x64xbf16> -> vector<160x64xbf16>
    %157 = arith.truncf %55 : vector<64x32xf32> to vector<64x32xbf16>
    %cst_37 = arith.constant dense<0.000000e+00> : vector<160x32xf32>
    %158 = tpu.matmul %156, %157, %cst_37 {dimension_numbers = #tpu.dot_dimension_numbers<[1], [0], [0], [1], [0, 0, 1, 1], [], []>} : vector<160x64xbf16>, vector<64x32xbf16>, vector<160x32xf32> -> vector<160x32xf32>
    %159 = vector.extract_strided_slice %158 {offsets = [0, 0], sizes = [32, 32], strides = [1, 1]} : vector<160x32xf32> to vector<32x32xf32>
    %160 = vector.extract_strided_slice %158 {offsets = [32, 0], sizes = [32, 32], strides = [1, 1]} : vector<160x32xf32> to vector<32x32xf32>
    %161 = vector.extract_strided_slice %158 {offsets = [64, 0], sizes = [32, 32], strides = [1, 1]} : vector<160x32xf32> to vector<32x32xf32>
    %162 = arith.maximumf %160, %161 : vector<32x32xf32>
    %163 = vector.extract_strided_slice %158 {offsets = [96, 0], sizes = [32, 32], strides = [1, 1]} : vector<160x32xf32> to vector<32x32xf32>
    %164 = arith.maximumf %162, %163 : vector<32x32xf32>
    %165 = vector.extract_strided_slice %158 {offsets = [128, 0], sizes = [32, 32], strides = [1, 1]} : vector<160x32xf32> to vector<32x32xf32>
    %166 = arith.maximumf %164, %165 : vector<32x32xf32>
    %167 = arith.subf %166, %159 : vector<32x32xf32>
    %168 = vector.broadcast %33 : vector<1x32xf32> to vector<32x32xf32>
    %169 = arith.addf %167, %168 : vector<32x32xf32>
    %cst_38 = arith.constant 0.000000e+00 : f32
    %170 = vector.broadcast %cst_38 : f32 to vector<32x32xf32>
    %171 = arith.maximumf %169, %170 : vector<32x32xf32>
    %cst_39 = arith.constant dense<0.000000e+00> : vector<32xf32>
    %172 = vector.multi_reduction <add>, %171, %cst_39 [1] : vector<32x32xf32> to vector<32xf32>
    %173 = vector.shape_cast %172 : vector<32xf32> to vector<32x1xf32>
    %cst_40 = arith.constant 3.200000e+01 : f32
    %174 = vector.broadcast %cst_40 : f32 to vector<32x1xf32>
    %175 = arith.divf %173, %174 : vector<32x1xf32>
    %176 = vector.broadcast %175 : vector<32x1xf32> to vector<32x32xf32>
    %177 = arith.subf %171, %176 : vector<32x32xf32>
    %178 = vector.broadcast %175 : vector<32x1xf32> to vector<32x32xf32>
    %179 = arith.subf %171, %178 : vector<32x32xf32>
    %180 = arith.mulf %177, %179 : vector<32x32xf32>
    %cst_41 = arith.constant dense<0.000000e+00> : vector<32xf32>
    %181 = vector.multi_reduction <add>, %180, %cst_41 [1] : vector<32x32xf32> to vector<32xf32>
    %182 = vector.shape_cast %181 : vector<32xf32> to vector<32x1xf32>
    %cst_42 = arith.constant 3.200000e+01 : f32
    %183 = vector.broadcast %cst_42 : f32 to vector<32x1xf32>
    %184 = arith.divf %182, %183 : vector<32x1xf32>
    %185 = vector.broadcast %175 : vector<32x1xf32> to vector<32x32xf32>
    %186 = arith.subf %171, %185 : vector<32x32xf32>
    %cst_43 = arith.constant 9.99999974E-6 : f32
    %187 = vector.broadcast %cst_43 : f32 to vector<32x1xf32>
    %188 = arith.addf %184, %187 : vector<32x1xf32>
    %189 = math.rsqrt %188 : vector<32x1xf32>
    %190 = vector.broadcast %189 : vector<32x1xf32> to vector<32x32xf32>
    %191 = arith.mulf %186, %190 : vector<32x32xf32>
    %192 = vector.broadcast %34 : vector<1x32xf32> to vector<32x32xf32>
    %193 = arith.mulf %191, %192 : vector<32x32xf32>
    %194 = vector.broadcast %35 : vector<1x32xf32> to vector<32x32xf32>
    %195 = arith.addf %193, %194 : vector<32x32xf32>
    %c0_44 = arith.constant 0 : index
    %c0_45 = arith.constant 0 : index
    %196 = vector.load %arg9[%c0_44, %c0_45] : memref<35x64xf32, #tpu.memory_space<vmem>>, vector<35x64xf32>
    %197 = vector.extract_strided_slice %196 {offsets = [0, 0], sizes = [32, 64], strides = [1, 1]} : vector<35x64xf32> to vector<32x64xf32>
    %198 = arith.truncf %197 : vector<32x64xf32> to vector<32x64xbf16>
    %199 = vector.extract_strided_slice %196 {offsets = [32, 0], sizes = [3, 64], strides = [1, 1]} : vector<35x64xf32> to vector<3x64xf32>
    %c0_46 = arith.constant 0 : index
    %c0_47 = arith.constant 0 : index
    %200 = vector.load %arg10[%c0_46, %c0_47] : memref<1x64xf32, #tpu.memory_space<vmem>>, vector<1x64xf32>
    %c0_48 = arith.constant 0 : index
    %c0_49 = arith.constant 0 : index
    %201 = vector.load %arg11[%c0_48, %c0_49] : memref<1x64xf32, #tpu.memory_space<vmem>>, vector<1x64xf32>
    %c0_50 = arith.constant 0 : index
    %c0_51 = arith.constant 0 : index
    %202 = vector.load %arg12[%c0_50, %c0_51] : memref<1x64xf32, #tpu.memory_space<vmem>>, vector<1x64xf32>
    %203 = arith.truncf %195 : vector<32x32xf32> to vector<32x32xbf16>
    %cst_52 = arith.constant dense<0.000000e+00> : vector<32x64xf32>
    %204 = tpu.matmul %203, %198, %cst_52 {dimension_numbers = #tpu.dot_dimension_numbers<[1], [0], [0], [1], [0, 0, 1, 1], [], []>} : vector<32x32xbf16>, vector<32x64xbf16>, vector<32x64xf32> -> vector<32x64xf32>
    %205 = vector.extract_strided_slice %63 {offsets = [0, 0], sizes = [32, 1], strides = [1, 1]} : vector<32x3xf32> to vector<32x1xf32>
    %206 = vector.extract_strided_slice %199 {offsets = [0, 0], sizes = [1, 64], strides = [1, 1]} : vector<3x64xf32> to vector<1x64xf32>
    %207 = vector.broadcast %205 : vector<32x1xf32> to vector<32x64xf32>
    %208 = vector.broadcast %206 : vector<1x64xf32> to vector<32x64xf32>
    %209 = arith.mulf %207, %208 : vector<32x64xf32>
    %210 = arith.addf %204, %209 : vector<32x64xf32>
    %211 = vector.extract_strided_slice %63 {offsets = [0, 1], sizes = [32, 1], strides = [1, 1]} : vector<32x3xf32> to vector<32x1xf32>
    %212 = vector.extract_strided_slice %199 {offsets = [1, 0], sizes = [1, 64], strides = [1, 1]} : vector<3x64xf32> to vector<1x64xf32>
    %213 = vector.broadcast %211 : vector<32x1xf32> to vector<32x64xf32>
    %214 = vector.broadcast %212 : vector<1x64xf32> to vector<32x64xf32>
    %215 = arith.mulf %213, %214 : vector<32x64xf32>
    %216 = arith.addf %210, %215 : vector<32x64xf32>
    %217 = vector.extract_strided_slice %63 {offsets = [0, 2], sizes = [32, 1], strides = [1, 1]} : vector<32x3xf32> to vector<32x1xf32>
    %218 = vector.extract_strided_slice %199 {offsets = [2, 0], sizes = [1, 64], strides = [1, 1]} : vector<3x64xf32> to vector<1x64xf32>
    %219 = vector.broadcast %217 : vector<32x1xf32> to vector<32x64xf32>
    %220 = vector.broadcast %218 : vector<1x64xf32> to vector<32x64xf32>
    %221 = arith.mulf %219, %220 : vector<32x64xf32>
    %222 = arith.addf %216, %221 : vector<32x64xf32>
    %223 = tpu.iota {dimensions = array<i32: 0>} : vector<16x32xi32>
    %224 = tpu.iota {dimensions = array<i32: 1>} : vector<16x32xi32>
    %c2_i32_53 = arith.constant 2 : i32
    %225 = vector.broadcast %c2_i32_53 : i32 to vector<16x32xi32>
    %226 = arith.muli %223, %225 : vector<16x32xi32>
    %227 = arith.cmpi eq, %224, %226 : vector<16x32xi32>
    %228 = arith.extui %227 : vector<16x32xi1> to vector<16x32xi32>
    %229 = arith.sitofp %228 : vector<16x32xi32> to vector<16x32xf32>
    %cst_54 = arith.constant dense<0.000000e+00> : vector<16x3xf32>
    %230 = tpu.matmul %229, %63, %cst_54 {dimension_numbers = #tpu.dot_dimension_numbers<[1], [0], [0], [1], [0, 0, 1, 1], [], []>} : vector<16x32xf32>, vector<32x3xf32>, vector<16x3xf32> -> vector<16x3xf32>
    %231 = tpu.iota {dimensions = array<i32: 0>} : vector<32x16xi32>
    %232 = tpu.iota {dimensions = array<i32: 1>} : vector<32x16xi32>
    %c2_i32_55 = arith.constant 2 : i32
    %233 = vector.broadcast %c2_i32_55 : i32 to vector<32x16xi32>
    %234 = arith.muli %232, %233 : vector<32x16xi32>
    %235 = arith.cmpi eq, %231, %234 : vector<32x16xi32>
    %236 = arith.extui %235 : vector<32x16xi1> to vector<32x16xi32>
    %237 = arith.sitofp %236 : vector<32x16xi32> to vector<32x16xf32>
    %cst_56 = arith.constant dense<0.000000e+00> : vector<3x16xf32>
    %238 = tpu.matmul %71, %237, %cst_56 {dimension_numbers = #tpu.dot_dimension_numbers<[1], [0], [0], [1], [0, 0, 1, 1], [], []>} : vector<3x32xf32>, vector<32x16xf32>, vector<3x16xf32> -> vector<3x16xf32>
    %cst_57 = arith.constant 0.000000e+00 : f32
    %239 = vector.broadcast %cst_57 : f32 to vector<16x32xf32>
    %240 = vector.extract_strided_slice %230 {offsets = [0, 0], sizes = [16, 1], strides = [1, 1]} : vector<16x3xf32> to vector<16x1xf32>
    %241 = vector.extract_strided_slice %71 {offsets = [0, 0], sizes = [1, 32], strides = [1, 1]} : vector<3x32xf32> to vector<1x32xf32>
    %242 = vector.broadcast %240 : vector<16x1xf32> to vector<16x32xf32>
    %243 = vector.broadcast %241 : vector<1x32xf32> to vector<16x32xf32>
    %244 = arith.subf %242, %243 : vector<16x32xf32>
    %245 = arith.mulf %244, %244 : vector<16x32xf32>
    %246 = arith.addf %239, %245 : vector<16x32xf32>
    %247 = vector.extract_strided_slice %230 {offsets = [0, 1], sizes = [16, 1], strides = [1, 1]} : vector<16x3xf32> to vector<16x1xf32>
    %248 = vector.extract_strided_slice %71 {offsets = [1, 0], sizes = [1, 32], strides = [1, 1]} : vector<3x32xf32> to vector<1x32xf32>
    %249 = vector.broadcast %247 : vector<16x1xf32> to vector<16x32xf32>
    %250 = vector.broadcast %248 : vector<1x32xf32> to vector<16x32xf32>
    %251 = arith.subf %249, %250 : vector<16x32xf32>
    %252 = arith.mulf %251, %251 : vector<16x32xf32>
    %253 = arith.addf %246, %252 : vector<16x32xf32>
    %254 = vector.extract_strided_slice %230 {offsets = [0, 2], sizes = [16, 1], strides = [1, 1]} : vector<16x3xf32> to vector<16x1xf32>
    %255 = vector.extract_strided_slice %71 {offsets = [2, 0], sizes = [1, 32], strides = [1, 1]} : vector<3x32xf32> to vector<1x32xf32>
    %256 = vector.broadcast %254 : vector<16x1xf32> to vector<16x32xf32>
    %257 = vector.broadcast %255 : vector<1x32xf32> to vector<16x32xf32>
    %258 = arith.subf %256, %257 : vector<16x32xf32>
    %259 = arith.mulf %258, %258 : vector<16x32xf32>
    %260 = arith.addf %253, %259 : vector<16x32xf32>
    %261 = arith.sitofp %224 : vector<16x32xi32> to vector<16x32xf32>
    %262 = arith.extui %227 : vector<16x32xi1> to vector<16x32xi32>
    %263 = arith.sitofp %262 : vector<16x32xi32> to vector<16x32xf32>
    %264 = arith.truncf %263 : vector<16x32xf32> to vector<16x32xbf16>
    %cst_58 = arith.constant dense<0x7F800000> : vector<16xf32>
    %265 = vector.multi_reduction <minimumf>, %260, %cst_58 [1] : vector<16x32xf32> to vector<16xf32>
    %266 = vector.shape_cast %265 : vector<16xf32> to vector<16x1xf32>
    %267 = vector.broadcast %266 : vector<16x1xf32> to vector<16x32xf32>
    %268 = arith.cmpf ole, %260, %267 : vector<16x32xf32>
    %cst_59 = arith.constant 3.200000e+01 : f32
    %269 = vector.broadcast %cst_59 : f32 to vector<16x32xf32>
    %270 = arith.select %268, %261, %269 : vector<16x32xi1>, vector<16x32xf32>
    %cst_60 = arith.constant dense<0x7F800000> : vector<16xf32>
    %271 = vector.multi_reduction <minimumf>, %270, %cst_60 [1] : vector<16x32xf32> to vector<16xf32>
    %272 = vector.shape_cast %271 : vector<16xf32> to vector<16x1xf32>
    %273 = vector.broadcast %272 : vector<16x1xf32> to vector<16x32xf32>
    %274 = arith.cmpf oeq, %261, %273 : vector<16x32xf32>
    %275 = arith.extui %274 : vector<16x32xi1> to vector<16x32xi32>
    %276 = arith.sitofp %275 : vector<16x32xi32> to vector<16x32xf32>
    %277 = arith.truncf %276 : vector<16x32xf32> to vector<16x32xbf16>
    %cst_61 = arith.constant 1.000000e+30 : f32
    %278 = vector.broadcast %cst_61 : f32 to vector<16x32xf32>
    %279 = arith.select %274, %278, %260 : vector<16x32xi1>, vector<16x32xf32>
    %cst_62 = arith.constant dense<0x7F800000> : vector<16xf32>
    %280 = vector.multi_reduction <minimumf>, %279, %cst_62 [1] : vector<16x32xf32> to vector<16xf32>
    %281 = vector.shape_cast %280 : vector<16xf32> to vector<16x1xf32>
    %282 = vector.broadcast %281 : vector<16x1xf32> to vector<16x32xf32>
    %283 = arith.cmpf ole, %279, %282 : vector<16x32xf32>
    %cst_63 = arith.constant 3.200000e+01 : f32
    %284 = vector.broadcast %cst_63 : f32 to vector<16x32xf32>
    %285 = arith.select %283, %261, %284 : vector<16x32xi1>, vector<16x32xf32>
    %cst_64 = arith.constant dense<0x7F800000> : vector<16xf32>
    %286 = vector.multi_reduction <minimumf>, %285, %cst_64 [1] : vector<16x32xf32> to vector<16xf32>
    %287 = vector.shape_cast %286 : vector<16xf32> to vector<16x1xf32>
    %288 = vector.broadcast %287 : vector<16x1xf32> to vector<16x32xf32>
    %289 = arith.cmpf oeq, %261, %288 : vector<16x32xf32>
    %290 = arith.extui %289 : vector<16x32xi1> to vector<16x32xi32>
    %291 = arith.sitofp %290 : vector<16x32xi32> to vector<16x32xf32>
    %292 = arith.truncf %291 : vector<16x32xf32> to vector<16x32xbf16>
    %cst_65 = arith.constant 1.000000e+30 : f32
    %293 = vector.broadcast %cst_65 : f32 to vector<16x32xf32>
    %294 = arith.select %289, %293, %279 : vector<16x32xi1>, vector<16x32xf32>
    %cst_66 = arith.constant dense<0x7F800000> : vector<16xf32>
    %295 = vector.multi_reduction <minimumf>, %294, %cst_66 [1] : vector<16x32xf32> to vector<16xf32>
    %296 = vector.shape_cast %295 : vector<16xf32> to vector<16x1xf32>
    %297 = vector.broadcast %296 : vector<16x1xf32> to vector<16x32xf32>
    %298 = arith.cmpf ole, %294, %297 : vector<16x32xf32>
    %cst_67 = arith.constant 3.200000e+01 : f32
    %299 = vector.broadcast %cst_67 : f32 to vector<16x32xf32>
    %300 = arith.select %298, %261, %299 : vector<16x32xi1>, vector<16x32xf32>
    %cst_68 = arith.constant dense<0x7F800000> : vector<16xf32>
    %301 = vector.multi_reduction <minimumf>, %300, %cst_68 [1] : vector<16x32xf32> to vector<16xf32>
    %302 = vector.shape_cast %301 : vector<16xf32> to vector<16x1xf32>
    %303 = vector.broadcast %302 : vector<16x1xf32> to vector<16x32xf32>
    %304 = arith.cmpf oeq, %261, %303 : vector<16x32xf32>
    %305 = arith.extui %304 : vector<16x32xi1> to vector<16x32xi32>
    %306 = arith.sitofp %305 : vector<16x32xi32> to vector<16x32xf32>
    %307 = arith.truncf %306 : vector<16x32xf32> to vector<16x32xbf16>
    %cst_69 = arith.constant 1.000000e+30 : f32
    %308 = vector.broadcast %cst_69 : f32 to vector<16x32xf32>
    %309 = arith.select %304, %308, %294 : vector<16x32xi1>, vector<16x32xf32>
    %cst_70 = arith.constant dense<0x7F800000> : vector<16xf32>
    %310 = vector.multi_reduction <minimumf>, %309, %cst_70 [1] : vector<16x32xf32> to vector<16xf32>
    %311 = vector.shape_cast %310 : vector<16xf32> to vector<16x1xf32>
    %312 = vector.broadcast %311 : vector<16x1xf32> to vector<16x32xf32>
    %313 = arith.cmpf ole, %309, %312 : vector<16x32xf32>
    %cst_71 = arith.constant 3.200000e+01 : f32
    %314 = vector.broadcast %cst_71 : f32 to vector<16x32xf32>
    %315 = arith.select %313, %261, %314 : vector<16x32xi1>, vector<16x32xf32>
    %cst_72 = arith.constant dense<0x7F800000> : vector<16xf32>
    %316 = vector.multi_reduction <minimumf>, %315, %cst_72 [1] : vector<16x32xf32> to vector<16xf32>
    %317 = vector.shape_cast %316 : vector<16xf32> to vector<16x1xf32>
    %318 = vector.broadcast %317 : vector<16x1xf32> to vector<16x32xf32>
    %319 = arith.cmpf oeq, %261, %318 : vector<16x32xf32>
    %320 = arith.extui %319 : vector<16x32xi1> to vector<16x32xi32>
    %321 = arith.sitofp %320 : vector<16x32xi32> to vector<16x32xf32>
    %322 = arith.truncf %321 : vector<16x32xf32> to vector<16x32xbf16>
    %323 = tpu.concatenate %264, %277, %292, %307, %322 in 0 : vector<16x32xbf16>, vector<16x32xbf16>, vector<16x32xbf16>, vector<16x32xbf16>, vector<16x32xbf16> -> vector<80x32xbf16>
    %324 = arith.truncf %222 : vector<32x64xf32> to vector<32x64xbf16>
    %cst_73 = arith.constant dense<0.000000e+00> : vector<80x64xf32>
    %325 = tpu.matmul %323, %324, %cst_73 {dimension_numbers = #tpu.dot_dimension_numbers<[1], [0], [0], [1], [0, 0, 1, 1], [], []>} : vector<80x32xbf16>, vector<32x64xbf16>, vector<80x64xf32> -> vector<80x64xf32>
    %326 = vector.extract_strided_slice %325 {offsets = [0, 0], sizes = [16, 64], strides = [1, 1]} : vector<80x64xf32> to vector<16x64xf32>
    %327 = vector.extract_strided_slice %325 {offsets = [16, 0], sizes = [16, 64], strides = [1, 1]} : vector<80x64xf32> to vector<16x64xf32>
    %328 = vector.extract_strided_slice %325 {offsets = [32, 0], sizes = [16, 64], strides = [1, 1]} : vector<80x64xf32> to vector<16x64xf32>
    %329 = arith.maximumf %327, %328 : vector<16x64xf32>
    %330 = vector.extract_strided_slice %325 {offsets = [48, 0], sizes = [16, 64], strides = [1, 1]} : vector<80x64xf32> to vector<16x64xf32>
    %331 = arith.maximumf %329, %330 : vector<16x64xf32>
    %332 = vector.extract_strided_slice %325 {offsets = [64, 0], sizes = [16, 64], strides = [1, 1]} : vector<80x64xf32> to vector<16x64xf32>
    %333 = arith.maximumf %331, %332 : vector<16x64xf32>
    %334 = arith.subf %333, %326 : vector<16x64xf32>
    %335 = vector.broadcast %200 : vector<1x64xf32> to vector<16x64xf32>
    %336 = arith.addf %334, %335 : vector<16x64xf32>
    %cst_74 = arith.constant 0.000000e+00 : f32
    %337 = vector.broadcast %cst_74 : f32 to vector<16x64xf32>
    %338 = arith.maximumf %336, %337 : vector<16x64xf32>
    %cst_75 = arith.constant dense<0.000000e+00> : vector<16xf32>
    %339 = vector.multi_reduction <add>, %338, %cst_75 [1] : vector<16x64xf32> to vector<16xf32>
    %340 = vector.shape_cast %339 : vector<16xf32> to vector<16x1xf32>
    %cst_76 = arith.constant 6.400000e+01 : f32
    %341 = vector.broadcast %cst_76 : f32 to vector<16x1xf32>
    %342 = arith.divf %340, %341 : vector<16x1xf32>
    %343 = vector.broadcast %342 : vector<16x1xf32> to vector<16x64xf32>
    %344 = arith.subf %338, %343 : vector<16x64xf32>
    %345 = vector.broadcast %342 : vector<16x1xf32> to vector<16x64xf32>
    %346 = arith.subf %338, %345 : vector<16x64xf32>
    %347 = arith.mulf %344, %346 : vector<16x64xf32>
    %cst_77 = arith.constant dense<0.000000e+00> : vector<16xf32>
    %348 = vector.multi_reduction <add>, %347, %cst_77 [1] : vector<16x64xf32> to vector<16xf32>
    %349 = vector.shape_cast %348 : vector<16xf32> to vector<16x1xf32>
    %cst_78 = arith.constant 6.400000e+01 : f32
    %350 = vector.broadcast %cst_78 : f32 to vector<16x1xf32>
    %351 = arith.divf %349, %350 : vector<16x1xf32>
    %352 = vector.broadcast %342 : vector<16x1xf32> to vector<16x64xf32>
    %353 = arith.subf %338, %352 : vector<16x64xf32>
    %cst_79 = arith.constant 9.99999974E-6 : f32
    %354 = vector.broadcast %cst_79 : f32 to vector<16x1xf32>
    %355 = arith.addf %351, %354 : vector<16x1xf32>
    %356 = math.rsqrt %355 : vector<16x1xf32>
    %357 = vector.broadcast %356 : vector<16x1xf32> to vector<16x64xf32>
    %358 = arith.mulf %353, %357 : vector<16x64xf32>
    %359 = vector.broadcast %201 : vector<1x64xf32> to vector<16x64xf32>
    %360 = arith.mulf %358, %359 : vector<16x64xf32>
    %361 = vector.broadcast %202 : vector<1x64xf32> to vector<16x64xf32>
    %362 = arith.addf %360, %361 : vector<16x64xf32>
    %c0_80 = arith.constant 0 : index
    %c0_81 = arith.constant 0 : index
    %363 = vector.load %arg13[%c0_80, %c0_81] : memref<67x128xf32, #tpu.memory_space<vmem>>, vector<67x128xf32>
    %364 = vector.extract_strided_slice %363 {offsets = [0, 0], sizes = [64, 128], strides = [1, 1]} : vector<67x128xf32> to vector<64x128xf32>
    %365 = arith.truncf %364 : vector<64x128xf32> to vector<64x128xbf16>
    %366 = vector.extract_strided_slice %363 {offsets = [64, 0], sizes = [3, 128], strides = [1, 1]} : vector<67x128xf32> to vector<3x128xf32>
    %c0_82 = arith.constant 0 : index
    %c0_83 = arith.constant 0 : index
    %367 = vector.load %arg14[%c0_82, %c0_83] : memref<1x128xf32, #tpu.memory_space<vmem>>, vector<1x128xf32>
    %c0_84 = arith.constant 0 : index
    %c0_85 = arith.constant 0 : index
    %368 = vector.load %arg15[%c0_84, %c0_85] : memref<1x128xf32, #tpu.memory_space<vmem>>, vector<1x128xf32>
    %c0_86 = arith.constant 0 : index
    %c0_87 = arith.constant 0 : index
    %369 = vector.load %arg16[%c0_86, %c0_87] : memref<1x128xf32, #tpu.memory_space<vmem>>, vector<1x128xf32>
    %370 = arith.truncf %362 : vector<16x64xf32> to vector<16x64xbf16>
    %cst_88 = arith.constant dense<0.000000e+00> : vector<16x128xf32>
    %371 = tpu.matmul %370, %365, %cst_88 {dimension_numbers = #tpu.dot_dimension_numbers<[1], [0], [0], [1], [0, 0, 1, 1], [], []>} : vector<16x64xbf16>, vector<64x128xbf16>, vector<16x128xf32> -> vector<16x128xf32>
    %372 = vector.extract_strided_slice %230 {offsets = [0, 0], sizes = [16, 1], strides = [1, 1]} : vector<16x3xf32> to vector<16x1xf32>
    %373 = vector.extract_strided_slice %366 {offsets = [0, 0], sizes = [1, 128], strides = [1, 1]} : vector<3x128xf32> to vector<1x128xf32>
    %374 = vector.broadcast %372 : vector<16x1xf32> to vector<16x128xf32>
    %375 = vector.broadcast %373 : vector<1x128xf32> to vector<16x128xf32>
    %376 = arith.mulf %374, %375 : vector<16x128xf32>
    %377 = arith.addf %371, %376 : vector<16x128xf32>
    %378 = vector.extract_strided_slice %230 {offsets = [0, 1], sizes = [16, 1], strides = [1, 1]} : vector<16x3xf32> to vector<16x1xf32>
    %379 = vector.extract_strided_slice %366 {offsets = [1, 0], sizes = [1, 128], strides = [1, 1]} : vector<3x128xf32> to vector<1x128xf32>
    %380 = vector.broadcast %378 : vector<16x1xf32> to vector<16x128xf32>
    %381 = vector.broadcast %379 : vector<1x128xf32> to vector<16x128xf32>
    %382 = arith.mulf %380, %381 : vector<16x128xf32>
    %383 = arith.addf %377, %382 : vector<16x128xf32>
    %384 = vector.extract_strided_slice %230 {offsets = [0, 2], sizes = [16, 1], strides = [1, 1]} : vector<16x3xf32> to vector<16x1xf32>
    %385 = vector.extract_strided_slice %366 {offsets = [2, 0], sizes = [1, 128], strides = [1, 1]} : vector<3x128xf32> to vector<1x128xf32>
    %386 = vector.broadcast %384 : vector<16x1xf32> to vector<16x128xf32>
    %387 = vector.broadcast %385 : vector<1x128xf32> to vector<16x128xf32>
    %388 = arith.mulf %386, %387 : vector<16x128xf32>
    %389 = arith.addf %383, %388 : vector<16x128xf32>
    %390 = tpu.iota {dimensions = array<i32: 0>} : vector<8x16xi32>
    %391 = tpu.iota {dimensions = array<i32: 1>} : vector<8x16xi32>
    %c2_i32_89 = arith.constant 2 : i32
    %392 = vector.broadcast %c2_i32_89 : i32 to vector<8x16xi32>
    %393 = arith.muli %390, %392 : vector<8x16xi32>
    %394 = arith.cmpi eq, %391, %393 : vector<8x16xi32>
    %395 = arith.extui %394 : vector<8x16xi1> to vector<8x16xi32>
    %396 = arith.sitofp %395 : vector<8x16xi32> to vector<8x16xf32>
    %cst_90 = arith.constant dense<0.000000e+00> : vector<8x3xf32>
    %397 = tpu.matmul %396, %230, %cst_90 {dimension_numbers = #tpu.dot_dimension_numbers<[1], [0], [0], [1], [0, 0, 1, 1], [], []>} : vector<8x16xf32>, vector<16x3xf32>, vector<8x3xf32> -> vector<8x3xf32>
    %398 = tpu.iota {dimensions = array<i32: 0>} : vector<16x8xi32>
    %399 = tpu.iota {dimensions = array<i32: 1>} : vector<16x8xi32>
    %c2_i32_91 = arith.constant 2 : i32
    %400 = vector.broadcast %c2_i32_91 : i32 to vector<16x8xi32>
    %401 = arith.muli %399, %400 : vector<16x8xi32>
    %402 = arith.cmpi eq, %398, %401 : vector<16x8xi32>
    %403 = arith.extui %402 : vector<16x8xi1> to vector<16x8xi32>
    %404 = arith.sitofp %403 : vector<16x8xi32> to vector<16x8xf32>
    %cst_92 = arith.constant dense<0.000000e+00> : vector<3x8xf32>
    %405 = tpu.matmul %238, %404, %cst_92 {dimension_numbers = #tpu.dot_dimension_numbers<[1], [0], [0], [1], [0, 0, 1, 1], [], []>} : vector<3x16xf32>, vector<16x8xf32>, vector<3x8xf32> -> vector<3x8xf32>
    %cst_93 = arith.constant 0.000000e+00 : f32
    %406 = vector.broadcast %cst_93 : f32 to vector<8x16xf32>
    %407 = vector.extract_strided_slice %397 {offsets = [0, 0], sizes = [8, 1], strides = [1, 1]} : vector<8x3xf32> to vector<8x1xf32>
    %408 = vector.extract_strided_slice %238 {offsets = [0, 0], sizes = [1, 16], strides = [1, 1]} : vector<3x16xf32> to vector<1x16xf32>
    %409 = vector.broadcast %407 : vector<8x1xf32> to vector<8x16xf32>
    %410 = vector.broadcast %408 : vector<1x16xf32> to vector<8x16xf32>
    %411 = arith.subf %409, %410 : vector<8x16xf32>
    %412 = arith.mulf %411, %411 : vector<8x16xf32>
    %413 = arith.addf %406, %412 : vector<8x16xf32>
    %414 = vector.extract_strided_slice %397 {offsets = [0, 1], sizes = [8, 1], strides = [1, 1]} : vector<8x3xf32> to vector<8x1xf32>
    %415 = vector.extract_strided_slice %238 {offsets = [1, 0], sizes = [1, 16], strides = [1, 1]} : vector<3x16xf32> to vector<1x16xf32>
    %416 = vector.broadcast %414 : vector<8x1xf32> to vector<8x16xf32>
    %417 = vector.broadcast %415 : vector<1x16xf32> to vector<8x16xf32>
    %418 = arith.subf %416, %417 : vector<8x16xf32>
    %419 = arith.mulf %418, %418 : vector<8x16xf32>
    %420 = arith.addf %413, %419 : vector<8x16xf32>
    %421 = vector.extract_strided_slice %397 {offsets = [0, 2], sizes = [8, 1], strides = [1, 1]} : vector<8x3xf32> to vector<8x1xf32>
    %422 = vector.extract_strided_slice %238 {offsets = [2, 0], sizes = [1, 16], strides = [1, 1]} : vector<3x16xf32> to vector<1x16xf32>
    %423 = vector.broadcast %421 : vector<8x1xf32> to vector<8x16xf32>
    %424 = vector.broadcast %422 : vector<1x16xf32> to vector<8x16xf32>
    %425 = arith.subf %423, %424 : vector<8x16xf32>
    %426 = arith.mulf %425, %425 : vector<8x16xf32>
    %427 = arith.addf %420, %426 : vector<8x16xf32>
    %428 = arith.sitofp %391 : vector<8x16xi32> to vector<8x16xf32>
    %429 = arith.extui %394 : vector<8x16xi1> to vector<8x16xi32>
    %430 = arith.sitofp %429 : vector<8x16xi32> to vector<8x16xf32>
    %431 = arith.truncf %430 : vector<8x16xf32> to vector<8x16xbf16>
    %cst_94 = arith.constant dense<0x7F800000> : vector<8xf32>
    %432 = vector.multi_reduction <minimumf>, %427, %cst_94 [1] : vector<8x16xf32> to vector<8xf32>
    %433 = vector.shape_cast %432 : vector<8xf32> to vector<8x1xf32>
    %434 = vector.broadcast %433 : vector<8x1xf32> to vector<8x16xf32>
    %435 = arith.cmpf ole, %427, %434 : vector<8x16xf32>
    %cst_95 = arith.constant 1.600000e+01 : f32
    %436 = vector.broadcast %cst_95 : f32 to vector<8x16xf32>
    %437 = arith.select %435, %428, %436 : vector<8x16xi1>, vector<8x16xf32>
    %cst_96 = arith.constant dense<0x7F800000> : vector<8xf32>
    %438 = vector.multi_reduction <minimumf>, %437, %cst_96 [1] : vector<8x16xf32> to vector<8xf32>
    %439 = vector.shape_cast %438 : vector<8xf32> to vector<8x1xf32>
    %440 = vector.broadcast %439 : vector<8x1xf32> to vector<8x16xf32>
    %441 = arith.cmpf oeq, %428, %440 : vector<8x16xf32>
    %442 = arith.extui %441 : vector<8x16xi1> to vector<8x16xi32>
    %443 = arith.sitofp %442 : vector<8x16xi32> to vector<8x16xf32>
    %444 = arith.truncf %443 : vector<8x16xf32> to vector<8x16xbf16>
    %cst_97 = arith.constant 1.000000e+30 : f32
    %445 = vector.broadcast %cst_97 : f32 to vector<8x16xf32>
    %446 = arith.select %441, %445, %427 : vector<8x16xi1>, vector<8x16xf32>
    %cst_98 = arith.constant dense<0x7F800000> : vector<8xf32>
    %447 = vector.multi_reduction <minimumf>, %446, %cst_98 [1] : vector<8x16xf32> to vector<8xf32>
    %448 = vector.shape_cast %447 : vector<8xf32> to vector<8x1xf32>
    %449 = vector.broadcast %448 : vector<8x1xf32> to vector<8x16xf32>
    %450 = arith.cmpf ole, %446, %449 : vector<8x16xf32>
    %cst_99 = arith.constant 1.600000e+01 : f32
    %451 = vector.broadcast %cst_99 : f32 to vector<8x16xf32>
    %452 = arith.select %450, %428, %451 : vector<8x16xi1>, vector<8x16xf32>
    %cst_100 = arith.constant dense<0x7F800000> : vector<8xf32>
    %453 = vector.multi_reduction <minimumf>, %452, %cst_100 [1] : vector<8x16xf32> to vector<8xf32>
    %454 = vector.shape_cast %453 : vector<8xf32> to vector<8x1xf32>
    %455 = vector.broadcast %454 : vector<8x1xf32> to vector<8x16xf32>
    %456 = arith.cmpf oeq, %428, %455 : vector<8x16xf32>
    %457 = arith.extui %456 : vector<8x16xi1> to vector<8x16xi32>
    %458 = arith.sitofp %457 : vector<8x16xi32> to vector<8x16xf32>
    %459 = arith.truncf %458 : vector<8x16xf32> to vector<8x16xbf16>
    %cst_101 = arith.constant 1.000000e+30 : f32
    %460 = vector.broadcast %cst_101 : f32 to vector<8x16xf32>
    %461 = arith.select %456, %460, %446 : vector<8x16xi1>, vector<8x16xf32>
    %cst_102 = arith.constant dense<0x7F800000> : vector<8xf32>
    %462 = vector.multi_reduction <minimumf>, %461, %cst_102 [1] : vector<8x16xf32> to vector<8xf32>
    %463 = vector.shape_cast %462 : vector<8xf32> to vector<8x1xf32>
    %464 = vector.broadcast %463 : vector<8x1xf32> to vector<8x16xf32>
    %465 = arith.cmpf ole, %461, %464 : vector<8x16xf32>
    %cst_103 = arith.constant 1.600000e+01 : f32
    %466 = vector.broadcast %cst_103 : f32 to vector<8x16xf32>
    %467 = arith.select %465, %428, %466 : vector<8x16xi1>, vector<8x16xf32>
    %cst_104 = arith.constant dense<0x7F800000> : vector<8xf32>
    %468 = vector.multi_reduction <minimumf>, %467, %cst_104 [1] : vector<8x16xf32> to vector<8xf32>
    %469 = vector.shape_cast %468 : vector<8xf32> to vector<8x1xf32>
    %470 = vector.broadcast %469 : vector<8x1xf32> to vector<8x16xf32>
    %471 = arith.cmpf oeq, %428, %470 : vector<8x16xf32>
    %472 = arith.extui %471 : vector<8x16xi1> to vector<8x16xi32>
    %473 = arith.sitofp %472 : vector<8x16xi32> to vector<8x16xf32>
    %474 = arith.truncf %473 : vector<8x16xf32> to vector<8x16xbf16>
    %cst_105 = arith.constant 1.000000e+30 : f32
    %475 = vector.broadcast %cst_105 : f32 to vector<8x16xf32>
    %476 = arith.select %471, %475, %461 : vector<8x16xi1>, vector<8x16xf32>
    %cst_106 = arith.constant dense<0x7F800000> : vector<8xf32>
    %477 = vector.multi_reduction <minimumf>, %476, %cst_106 [1] : vector<8x16xf32> to vector<8xf32>
    %478 = vector.shape_cast %477 : vector<8xf32> to vector<8x1xf32>
    %479 = vector.broadcast %478 : vector<8x1xf32> to vector<8x16xf32>
    %480 = arith.cmpf ole, %476, %479 : vector<8x16xf32>
    %cst_107 = arith.constant 1.600000e+01 : f32
    %481 = vector.broadcast %cst_107 : f32 to vector<8x16xf32>
    %482 = arith.select %480, %428, %481 : vector<8x16xi1>, vector<8x16xf32>
    %cst_108 = arith.constant dense<0x7F800000> : vector<8xf32>
    %483 = vector.multi_reduction <minimumf>, %482, %cst_108 [1] : vector<8x16xf32> to vector<8xf32>
    %484 = vector.shape_cast %483 : vector<8xf32> to vector<8x1xf32>
    %485 = vector.broadcast %484 : vector<8x1xf32> to vector<8x16xf32>
    %486 = arith.cmpf oeq, %428, %485 : vector<8x16xf32>
    %487 = arith.extui %486 : vector<8x16xi1> to vector<8x16xi32>
    %488 = arith.sitofp %487 : vector<8x16xi32> to vector<8x16xf32>
    %489 = arith.truncf %488 : vector<8x16xf32> to vector<8x16xbf16>
    %490 = tpu.concatenate %431, %444, %459, %474, %489 in 0 : vector<8x16xbf16>, vector<8x16xbf16>, vector<8x16xbf16>, vector<8x16xbf16>, vector<8x16xbf16> -> vector<40x16xbf16>
    %491 = arith.truncf %389 : vector<16x128xf32> to vector<16x128xbf16>
    %cst_109 = arith.constant dense<0.000000e+00> : vector<40x128xf32>
    %492 = tpu.matmul %490, %491, %cst_109 {dimension_numbers = #tpu.dot_dimension_numbers<[1], [0], [0], [1], [0, 0, 1, 1], [], []>} : vector<40x16xbf16>, vector<16x128xbf16>, vector<40x128xf32> -> vector<40x128xf32>
    %493 = vector.extract_strided_slice %492 {offsets = [0, 0], sizes = [8, 128], strides = [1, 1]} : vector<40x128xf32> to vector<8x128xf32>
    %494 = vector.extract_strided_slice %492 {offsets = [8, 0], sizes = [8, 128], strides = [1, 1]} : vector<40x128xf32> to vector<8x128xf32>
    %495 = vector.extract_strided_slice %492 {offsets = [16, 0], sizes = [8, 128], strides = [1, 1]} : vector<40x128xf32> to vector<8x128xf32>
    %496 = arith.maximumf %494, %495 : vector<8x128xf32>
    %497 = vector.extract_strided_slice %492 {offsets = [24, 0], sizes = [8, 128], strides = [1, 1]} : vector<40x128xf32> to vector<8x128xf32>
    %498 = arith.maximumf %496, %497 : vector<8x128xf32>
    %499 = vector.extract_strided_slice %492 {offsets = [32, 0], sizes = [8, 128], strides = [1, 1]} : vector<40x128xf32> to vector<8x128xf32>
    %500 = arith.maximumf %498, %499 : vector<8x128xf32>
    %501 = arith.subf %500, %493 : vector<8x128xf32>
    %502 = vector.broadcast %367 : vector<1x128xf32> to vector<8x128xf32>
    %503 = arith.addf %501, %502 : vector<8x128xf32>
    %cst_110 = arith.constant 0.000000e+00 : f32
    %504 = vector.broadcast %cst_110 : f32 to vector<8x128xf32>
    %505 = arith.maximumf %503, %504 : vector<8x128xf32>
    %cst_111 = arith.constant dense<0.000000e+00> : vector<8xf32>
    %506 = vector.multi_reduction <add>, %505, %cst_111 [1] : vector<8x128xf32> to vector<8xf32>
    %507 = vector.shape_cast %506 : vector<8xf32> to vector<8x1xf32>
    %cst_112 = arith.constant 1.280000e+02 : f32
    %508 = vector.broadcast %cst_112 : f32 to vector<8x1xf32>
    %509 = arith.divf %507, %508 : vector<8x1xf32>
    %510 = vector.broadcast %509 : vector<8x1xf32> to vector<8x128xf32>
    %511 = arith.subf %505, %510 : vector<8x128xf32>
    %512 = vector.broadcast %509 : vector<8x1xf32> to vector<8x128xf32>
    %513 = arith.subf %505, %512 : vector<8x128xf32>
    %514 = arith.mulf %511, %513 : vector<8x128xf32>
    %cst_113 = arith.constant dense<0.000000e+00> : vector<8xf32>
    %515 = vector.multi_reduction <add>, %514, %cst_113 [1] : vector<8x128xf32> to vector<8xf32>
    %516 = vector.shape_cast %515 : vector<8xf32> to vector<8x1xf32>
    %cst_114 = arith.constant 1.280000e+02 : f32
    %517 = vector.broadcast %cst_114 : f32 to vector<8x1xf32>
    %518 = arith.divf %516, %517 : vector<8x1xf32>
    %519 = vector.broadcast %509 : vector<8x1xf32> to vector<8x128xf32>
    %520 = arith.subf %505, %519 : vector<8x128xf32>
    %cst_115 = arith.constant 9.99999974E-6 : f32
    %521 = vector.broadcast %cst_115 : f32 to vector<8x1xf32>
    %522 = arith.addf %518, %521 : vector<8x1xf32>
    %523 = math.rsqrt %522 : vector<8x1xf32>
    %524 = vector.broadcast %523 : vector<8x1xf32> to vector<8x128xf32>
    %525 = arith.mulf %520, %524 : vector<8x128xf32>
    %526 = vector.broadcast %368 : vector<1x128xf32> to vector<8x128xf32>
    %527 = arith.mulf %525, %526 : vector<8x128xf32>
    %528 = vector.broadcast %369 : vector<1x128xf32> to vector<8x128xf32>
    %529 = arith.addf %527, %528 : vector<8x128xf32>
    %c0_116 = arith.constant 0 : index
    %c0_117 = arith.constant 0 : index
    %530 = vector.load %arg17[%c0_116, %c0_117] : memref<131x128xf32, #tpu.memory_space<vmem>>, vector<131x128xf32>
    %531 = vector.extract_strided_slice %530 {offsets = [0, 0], sizes = [128, 128], strides = [1, 1]} : vector<131x128xf32> to vector<128x128xf32>
    %532 = arith.truncf %531 : vector<128x128xf32> to vector<128x128xbf16>
    %533 = vector.extract_strided_slice %530 {offsets = [128, 0], sizes = [3, 128], strides = [1, 1]} : vector<131x128xf32> to vector<3x128xf32>
    %c0_118 = arith.constant 0 : index
    %c0_119 = arith.constant 0 : index
    %534 = vector.load %arg18[%c0_118, %c0_119] : memref<1x128xf32, #tpu.memory_space<vmem>>, vector<1x128xf32>
    %c0_120 = arith.constant 0 : index
    %c0_121 = arith.constant 0 : index
    %535 = vector.load %arg19[%c0_120, %c0_121] : memref<1x128xf32, #tpu.memory_space<vmem>>, vector<1x128xf32>
    %c0_122 = arith.constant 0 : index
    %c0_123 = arith.constant 0 : index
    %536 = vector.load %arg20[%c0_122, %c0_123] : memref<1x128xf32, #tpu.memory_space<vmem>>, vector<1x128xf32>
    %537 = arith.truncf %529 : vector<8x128xf32> to vector<8x128xbf16>
    %cst_124 = arith.constant dense<0.000000e+00> : vector<8x128xf32>
    %538 = tpu.matmul %537, %532, %cst_124 {dimension_numbers = #tpu.dot_dimension_numbers<[1], [0], [0], [1], [0, 0, 1, 1], [], []>} : vector<8x128xbf16>, vector<128x128xbf16>, vector<8x128xf32> -> vector<8x128xf32>
    %539 = vector.extract_strided_slice %397 {offsets = [0, 0], sizes = [8, 1], strides = [1, 1]} : vector<8x3xf32> to vector<8x1xf32>
    %540 = vector.extract_strided_slice %533 {offsets = [0, 0], sizes = [1, 128], strides = [1, 1]} : vector<3x128xf32> to vector<1x128xf32>
    %541 = vector.broadcast %539 : vector<8x1xf32> to vector<8x128xf32>
    %542 = vector.broadcast %540 : vector<1x128xf32> to vector<8x128xf32>
    %543 = arith.mulf %541, %542 : vector<8x128xf32>
    %544 = arith.addf %538, %543 : vector<8x128xf32>
    %545 = vector.extract_strided_slice %397 {offsets = [0, 1], sizes = [8, 1], strides = [1, 1]} : vector<8x3xf32> to vector<8x1xf32>
    %546 = vector.extract_strided_slice %533 {offsets = [1, 0], sizes = [1, 128], strides = [1, 1]} : vector<3x128xf32> to vector<1x128xf32>
    %547 = vector.broadcast %545 : vector<8x1xf32> to vector<8x128xf32>
    %548 = vector.broadcast %546 : vector<1x128xf32> to vector<8x128xf32>
    %549 = arith.mulf %547, %548 : vector<8x128xf32>
    %550 = arith.addf %544, %549 : vector<8x128xf32>
    %551 = vector.extract_strided_slice %397 {offsets = [0, 2], sizes = [8, 1], strides = [1, 1]} : vector<8x3xf32> to vector<8x1xf32>
    %552 = vector.extract_strided_slice %533 {offsets = [2, 0], sizes = [1, 128], strides = [1, 1]} : vector<3x128xf32> to vector<1x128xf32>
    %553 = vector.broadcast %551 : vector<8x1xf32> to vector<8x128xf32>
    %554 = vector.broadcast %552 : vector<1x128xf32> to vector<8x128xf32>
    %555 = arith.mulf %553, %554 : vector<8x128xf32>
    %556 = arith.addf %550, %555 : vector<8x128xf32>
    %557 = tpu.iota {dimensions = array<i32: 0>} : vector<4x8xi32>
    %558 = tpu.iota {dimensions = array<i32: 1>} : vector<4x8xi32>
    %c2_i32_125 = arith.constant 2 : i32
    %559 = vector.broadcast %c2_i32_125 : i32 to vector<4x8xi32>
    %560 = arith.muli %557, %559 : vector<4x8xi32>
    %561 = arith.cmpi eq, %558, %560 : vector<4x8xi32>
    %562 = arith.extui %561 : vector<4x8xi1> to vector<4x8xi32>
    %563 = arith.sitofp %562 : vector<4x8xi32> to vector<4x8xf32>
    %cst_126 = arith.constant dense<0.000000e+00> : vector<4x3xf32>
    %564 = tpu.matmul %563, %397, %cst_126 {dimension_numbers = #tpu.dot_dimension_numbers<[1], [0], [0], [1], [0, 0, 1, 1], [], []>} : vector<4x8xf32>, vector<8x3xf32>, vector<4x3xf32> -> vector<4x3xf32>
    %cst_127 = arith.constant 0.000000e+00 : f32
    %565 = vector.broadcast %cst_127 : f32 to vector<4x8xf32>
    %566 = vector.extract_strided_slice %564 {offsets = [0, 0], sizes = [4, 1], strides = [1, 1]} : vector<4x3xf32> to vector<4x1xf32>
    %567 = vector.extract_strided_slice %405 {offsets = [0, 0], sizes = [1, 8], strides = [1, 1]} : vector<3x8xf32> to vector<1x8xf32>
    %568 = vector.broadcast %566 : vector<4x1xf32> to vector<4x8xf32>
    %569 = vector.broadcast %567 : vector<1x8xf32> to vector<4x8xf32>
    %570 = arith.subf %568, %569 : vector<4x8xf32>
    %571 = arith.mulf %570, %570 : vector<4x8xf32>
    %572 = arith.addf %565, %571 : vector<4x8xf32>
    %573 = vector.extract_strided_slice %564 {offsets = [0, 1], sizes = [4, 1], strides = [1, 1]} : vector<4x3xf32> to vector<4x1xf32>
    %574 = vector.extract_strided_slice %405 {offsets = [1, 0], sizes = [1, 8], strides = [1, 1]} : vector<3x8xf32> to vector<1x8xf32>
    %575 = vector.broadcast %573 : vector<4x1xf32> to vector<4x8xf32>
    %576 = vector.broadcast %574 : vector<1x8xf32> to vector<4x8xf32>
    %577 = arith.subf %575, %576 : vector<4x8xf32>
    %578 = arith.mulf %577, %577 : vector<4x8xf32>
    %579 = arith.addf %572, %578 : vector<4x8xf32>
    %580 = vector.extract_strided_slice %564 {offsets = [0, 2], sizes = [4, 1], strides = [1, 1]} : vector<4x3xf32> to vector<4x1xf32>
    %581 = vector.extract_strided_slice %405 {offsets = [2, 0], sizes = [1, 8], strides = [1, 1]} : vector<3x8xf32> to vector<1x8xf32>
    %582 = vector.broadcast %580 : vector<4x1xf32> to vector<4x8xf32>
    %583 = vector.broadcast %581 : vector<1x8xf32> to vector<4x8xf32>
    %584 = arith.subf %582, %583 : vector<4x8xf32>
    %585 = arith.mulf %584, %584 : vector<4x8xf32>
    %586 = arith.addf %579, %585 : vector<4x8xf32>
    %587 = arith.sitofp %558 : vector<4x8xi32> to vector<4x8xf32>
    %588 = arith.extui %561 : vector<4x8xi1> to vector<4x8xi32>
    %589 = arith.sitofp %588 : vector<4x8xi32> to vector<4x8xf32>
    %590 = arith.truncf %589 : vector<4x8xf32> to vector<4x8xbf16>
    %cst_128 = arith.constant dense<0x7F800000> : vector<4xf32>
    %591 = vector.multi_reduction <minimumf>, %586, %cst_128 [1] : vector<4x8xf32> to vector<4xf32>
    %592 = vector.shape_cast %591 : vector<4xf32> to vector<4x1xf32>
    %593 = vector.broadcast %592 : vector<4x1xf32> to vector<4x8xf32>
    %594 = arith.cmpf ole, %586, %593 : vector<4x8xf32>
    %cst_129 = arith.constant 8.000000e+00 : f32
    %595 = vector.broadcast %cst_129 : f32 to vector<4x8xf32>
    %596 = arith.select %594, %587, %595 : vector<4x8xi1>, vector<4x8xf32>
    %cst_130 = arith.constant dense<0x7F800000> : vector<4xf32>
    %597 = vector.multi_reduction <minimumf>, %596, %cst_130 [1] : vector<4x8xf32> to vector<4xf32>
    %598 = vector.shape_cast %597 : vector<4xf32> to vector<4x1xf32>
    %599 = vector.broadcast %598 : vector<4x1xf32> to vector<4x8xf32>
    %600 = arith.cmpf oeq, %587, %599 : vector<4x8xf32>
    %601 = arith.extui %600 : vector<4x8xi1> to vector<4x8xi32>
    %602 = arith.sitofp %601 : vector<4x8xi32> to vector<4x8xf32>
    %603 = arith.truncf %602 : vector<4x8xf32> to vector<4x8xbf16>
    %cst_131 = arith.constant 1.000000e+30 : f32
    %604 = vector.broadcast %cst_131 : f32 to vector<4x8xf32>
    %605 = arith.select %600, %604, %586 : vector<4x8xi1>, vector<4x8xf32>
    %cst_132 = arith.constant dense<0x7F800000> : vector<4xf32>
    %606 = vector.multi_reduction <minimumf>, %605, %cst_132 [1] : vector<4x8xf32> to vector<4xf32>
    %607 = vector.shape_cast %606 : vector<4xf32> to vector<4x1xf32>
    %608 = vector.broadcast %607 : vector<4x1xf32> to vector<4x8xf32>
    %609 = arith.cmpf ole, %605, %608 : vector<4x8xf32>
    %cst_133 = arith.constant 8.000000e+00 : f32
    %610 = vector.broadcast %cst_133 : f32 to vector<4x8xf32>
    %611 = arith.select %609, %587, %610 : vector<4x8xi1>, vector<4x8xf32>
    %cst_134 = arith.constant dense<0x7F800000> : vector<4xf32>
    %612 = vector.multi_reduction <minimumf>, %611, %cst_134 [1] : vector<4x8xf32> to vector<4xf32>
    %613 = vector.shape_cast %612 : vector<4xf32> to vector<4x1xf32>
    %614 = vector.broadcast %613 : vector<4x1xf32> to vector<4x8xf32>
    %615 = arith.cmpf oeq, %587, %614 : vector<4x8xf32>
    %616 = arith.extui %615 : vector<4x8xi1> to vector<4x8xi32>
    %617 = arith.sitofp %616 : vector<4x8xi32> to vector<4x8xf32>
    %618 = arith.truncf %617 : vector<4x8xf32> to vector<4x8xbf16>
    %cst_135 = arith.constant 1.000000e+30 : f32
    %619 = vector.broadcast %cst_135 : f32 to vector<4x8xf32>
    %620 = arith.select %615, %619, %605 : vector<4x8xi1>, vector<4x8xf32>
    %cst_136 = arith.constant dense<0x7F800000> : vector<4xf32>
    %621 = vector.multi_reduction <minimumf>, %620, %cst_136 [1] : vector<4x8xf32> to vector<4xf32>
    %622 = vector.shape_cast %621 : vector<4xf32> to vector<4x1xf32>
    %623 = vector.broadcast %622 : vector<4x1xf32> to vector<4x8xf32>
    %624 = arith.cmpf ole, %620, %623 : vector<4x8xf32>
    %cst_137 = arith.constant 8.000000e+00 : f32
    %625 = vector.broadcast %cst_137 : f32 to vector<4x8xf32>
    %626 = arith.select %624, %587, %625 : vector<4x8xi1>, vector<4x8xf32>
    %cst_138 = arith.constant dense<0x7F800000> : vector<4xf32>
    %627 = vector.multi_reduction <minimumf>, %626, %cst_138 [1] : vector<4x8xf32> to vector<4xf32>
    %628 = vector.shape_cast %627 : vector<4xf32> to vector<4x1xf32>
    %629 = vector.broadcast %628 : vector<4x1xf32> to vector<4x8xf32>
    %630 = arith.cmpf oeq, %587, %629 : vector<4x8xf32>
    %631 = arith.extui %630 : vector<4x8xi1> to vector<4x8xi32>
    %632 = arith.sitofp %631 : vector<4x8xi32> to vector<4x8xf32>
    %633 = arith.truncf %632 : vector<4x8xf32> to vector<4x8xbf16>
    %cst_139 = arith.constant 1.000000e+30 : f32
    %634 = vector.broadcast %cst_139 : f32 to vector<4x8xf32>
    %635 = arith.select %630, %634, %620 : vector<4x8xi1>, vector<4x8xf32>
    %cst_140 = arith.constant dense<0x7F800000> : vector<4xf32>
    %636 = vector.multi_reduction <minimumf>, %635, %cst_140 [1] : vector<4x8xf32> to vector<4xf32>
    %637 = vector.shape_cast %636 : vector<4xf32> to vector<4x1xf32>
    %638 = vector.broadcast %637 : vector<4x1xf32> to vector<4x8xf32>
    %639 = arith.cmpf ole, %635, %638 : vector<4x8xf32>
    %cst_141 = arith.constant 8.000000e+00 : f32
    %640 = vector.broadcast %cst_141 : f32 to vector<4x8xf32>
    %641 = arith.select %639, %587, %640 : vector<4x8xi1>, vector<4x8xf32>
    %cst_142 = arith.constant dense<0x7F800000> : vector<4xf32>
    %642 = vector.multi_reduction <minimumf>, %641, %cst_142 [1] : vector<4x8xf32> to vector<4xf32>
    %643 = vector.shape_cast %642 : vector<4xf32> to vector<4x1xf32>
    %644 = vector.broadcast %643 : vector<4x1xf32> to vector<4x8xf32>
    %645 = arith.cmpf oeq, %587, %644 : vector<4x8xf32>
    %646 = arith.extui %645 : vector<4x8xi1> to vector<4x8xi32>
    %647 = arith.sitofp %646 : vector<4x8xi32> to vector<4x8xf32>
    %648 = arith.truncf %647 : vector<4x8xf32> to vector<4x8xbf16>
    %649 = tpu.concatenate %590, %603, %618, %633, %648 in 0 : vector<4x8xbf16>, vector<4x8xbf16>, vector<4x8xbf16>, vector<4x8xbf16>, vector<4x8xbf16> -> vector<20x8xbf16>
    %650 = arith.truncf %556 : vector<8x128xf32> to vector<8x128xbf16>
    %cst_143 = arith.constant dense<0.000000e+00> : vector<20x128xf32>
    %651 = tpu.matmul %649, %650, %cst_143 {dimension_numbers = #tpu.dot_dimension_numbers<[1], [0], [0], [1], [0, 0, 1, 1], [], []>} : vector<20x8xbf16>, vector<8x128xbf16>, vector<20x128xf32> -> vector<20x128xf32>
    %652 = vector.extract_strided_slice %651 {offsets = [0, 0], sizes = [4, 128], strides = [1, 1]} : vector<20x128xf32> to vector<4x128xf32>
    %653 = vector.extract_strided_slice %651 {offsets = [4, 0], sizes = [4, 128], strides = [1, 1]} : vector<20x128xf32> to vector<4x128xf32>
    %654 = vector.extract_strided_slice %651 {offsets = [8, 0], sizes = [4, 128], strides = [1, 1]} : vector<20x128xf32> to vector<4x128xf32>
    %655 = arith.maximumf %653, %654 : vector<4x128xf32>
    %656 = vector.extract_strided_slice %651 {offsets = [12, 0], sizes = [4, 128], strides = [1, 1]} : vector<20x128xf32> to vector<4x128xf32>
    %657 = arith.maximumf %655, %656 : vector<4x128xf32>
    %658 = vector.extract_strided_slice %651 {offsets = [16, 0], sizes = [4, 128], strides = [1, 1]} : vector<20x128xf32> to vector<4x128xf32>
    %659 = arith.maximumf %657, %658 : vector<4x128xf32>
    %660 = arith.subf %659, %652 : vector<4x128xf32>
    %661 = vector.broadcast %534 : vector<1x128xf32> to vector<4x128xf32>
    %662 = arith.addf %660, %661 : vector<4x128xf32>
    %cst_144 = arith.constant 0.000000e+00 : f32
    %663 = vector.broadcast %cst_144 : f32 to vector<4x128xf32>
    %664 = arith.maximumf %662, %663 : vector<4x128xf32>
    %cst_145 = arith.constant dense<0.000000e+00> : vector<4xf32>
    %665 = vector.multi_reduction <add>, %664, %cst_145 [1] : vector<4x128xf32> to vector<4xf32>
    %666 = vector.shape_cast %665 : vector<4xf32> to vector<4x1xf32>
    %cst_146 = arith.constant 1.280000e+02 : f32
    %667 = vector.broadcast %cst_146 : f32 to vector<4x1xf32>
    %668 = arith.divf %666, %667 : vector<4x1xf32>
    %669 = vector.broadcast %668 : vector<4x1xf32> to vector<4x128xf32>
    %670 = arith.subf %664, %669 : vector<4x128xf32>
    %671 = vector.broadcast %668 : vector<4x1xf32> to vector<4x128xf32>
    %672 = arith.subf %664, %671 : vector<4x128xf32>
    %673 = arith.mulf %670, %672 : vector<4x128xf32>
    %cst_147 = arith.constant dense<0.000000e+00> : vector<4xf32>
    %674 = vector.multi_reduction <add>, %673, %cst_147 [1] : vector<4x128xf32> to vector<4xf32>
    %675 = vector.shape_cast %674 : vector<4xf32> to vector<4x1xf32>
    %cst_148 = arith.constant 1.280000e+02 : f32
    %676 = vector.broadcast %cst_148 : f32 to vector<4x1xf32>
    %677 = arith.divf %675, %676 : vector<4x1xf32>
    %678 = vector.broadcast %668 : vector<4x1xf32> to vector<4x128xf32>
    %679 = arith.subf %664, %678 : vector<4x128xf32>
    %cst_149 = arith.constant 9.99999974E-6 : f32
    %680 = vector.broadcast %cst_149 : f32 to vector<4x1xf32>
    %681 = arith.addf %677, %680 : vector<4x1xf32>
    %682 = math.rsqrt %681 : vector<4x1xf32>
    %683 = vector.broadcast %682 : vector<4x1xf32> to vector<4x128xf32>
    %684 = arith.mulf %679, %683 : vector<4x128xf32>
    %685 = vector.broadcast %535 : vector<1x128xf32> to vector<4x128xf32>
    %686 = arith.mulf %684, %685 : vector<4x128xf32>
    %687 = vector.broadcast %536 : vector<1x128xf32> to vector<4x128xf32>
    %688 = arith.addf %686, %687 : vector<4x128xf32>
    %cst_150 = arith.constant dense<0.000000e+00> : vector<128xf32>
    %689 = vector.multi_reduction <add>, %688, %cst_150 [0] : vector<4x128xf32> to vector<128xf32>
    %690 = vector.shape_cast %689 : vector<128xf32> to vector<1x128xf32>
    %cst_151 = arith.constant 4.000000e+00 : f32
    %691 = vector.broadcast %cst_151 : f32 to vector<1x128xf32>
    %692 = arith.divf %690, %691 : vector<1x128xf32>
    %c0_152 = arith.constant 0 : index
    %c0_153 = arith.constant 0 : index
    %693 = vector.load %arg21[%c0_152, %c0_153] : memref<128x64xf32, #tpu.memory_space<vmem>>, vector<128x64xf32>
    %cst_154 = arith.constant dense<0.000000e+00> : vector<1x64xf32>
    %694 = tpu.matmul %692, %693, %cst_154 {dimension_numbers = #tpu.dot_dimension_numbers<[1], [0], [0], [1], [0, 0, 1, 1], [], []>} : vector<1x128xf32>, vector<128x64xf32>, vector<1x64xf32> -> vector<1x64xf32>
    %c0_155 = arith.constant 0 : index
    %c0_156 = arith.constant 0 : index
    %695 = vector.load %arg22[%c0_155, %c0_156] : memref<1x64xf32, #tpu.memory_space<vmem>>, vector<1x64xf32>
    %696 = arith.addf %694, %695 : vector<1x64xf32>
    %cst_157 = arith.constant 0.000000e+00 : f32
    %697 = vector.broadcast %cst_157 : f32 to vector<1x64xf32>
    %698 = arith.maximumf %696, %697 : vector<1x64xf32>
    %c0_158 = arith.constant 0 : index
    %c0_159 = arith.constant 0 : index
    %699 = vector.load %arg23[%c0_158, %c0_159] : memref<64x40xf32, #tpu.memory_space<vmem>>, vector<64x40xf32>
    %cst_160 = arith.constant dense<0.000000e+00> : vector<1x40xf32>
    %700 = tpu.matmul %698, %699, %cst_160 {dimension_numbers = #tpu.dot_dimension_numbers<[1], [0], [0], [1], [0, 0, 1, 1], [], []>} : vector<1x64xf32>, vector<64x40xf32>, vector<1x40xf32> -> vector<1x40xf32>
    %c0_161 = arith.constant 0 : index
    %c0_162 = arith.constant 0 : index
    %701 = vector.load %arg24[%c0_161, %c0_162] : memref<1x40xf32, #tpu.memory_space<vmem>>, vector<1x40xf32>
    %702 = arith.addf %700, %701 : vector<1x40xf32>
    %c0_163 = arith.constant 0 : index
    %c0_164 = arith.constant 0 : index
    %c0_165 = arith.constant 0 : index
    %703 = vector.load %arg25[%c0_163, %c0_164, %c0_165] : memref<1x1x40xf32, #tpu.memory_space<vmem>>, vector<1x1x40xf32>
    %704 = vector.shape_cast %703 : vector<1x1x40xf32> to vector<1x40xf32>
    %705 = vector.shape_cast %702 : vector<1x40xf32> to vector<1x1x40xf32>
    tpu.vector_store %arg25[%c0_163, %c0_164, %c0_165], %705 {strides = array<i32>} : memref<1x1x40xf32, #tpu.memory_space<vmem>>, vector<1x1x40xf32>,
    return
  }
  func.func @transform_0(%arg0: i32) -> (i32, i32, i32) {
    %c0_i32 = arith.constant 0 : i32
    %c0_i32_0 = arith.constant 0 : i32
    %c0_i32_1 = arith.constant 0 : i32
    return %arg0, %c0_i32, %c0_i32_0 : i32, i32, i32
  }
  func.func @transform_1(%arg0: i32) -> (i32, i32, i32) {
    %c0_i32 = arith.constant 0 : i32
    %c0_i32_0 = arith.constant 0 : i32
    %c0_i32_1 = arith.constant 0 : i32
    return %arg0, %c0_i32, %c0_i32_0 : i32, i32, i32
  }
  func.func @transform_2(%arg0: i32) -> (i32, i32) {
    %c0_i32 = arith.constant 0 : i32
    %c0_i32_0 = arith.constant 0 : i32
    %c0_i32_1 = arith.constant 0 : i32
    return %c0_i32, %c0_i32_0 : i32, i32
  }
  func.func @transform_3(%arg0: i32) -> (i32, i32) {
    %c0_i32 = arith.constant 0 : i32
    %c0_i32_0 = arith.constant 0 : i32
    %c0_i32_1 = arith.constant 0 : i32
    return %c0_i32, %c0_i32_0 : i32, i32
  }
  func.func @transform_4(%arg0: i32) -> (i32, i32) {
    %c0_i32 = arith.constant 0 : i32
    %c0_i32_0 = arith.constant 0 : i32
    %c0_i32_1 = arith.constant 0 : i32
    return %c0_i32, %c0_i32_0 : i32, i32
  }
  func.func @transform_5(%arg0: i32) -> (i32, i32) {
    %c0_i32 = arith.constant 0 : i32
    %c0_i32_0 = arith.constant 0 : i32
    %c0_i32_1 = arith.constant 0 : i32
    return %c0_i32, %c0_i32_0 : i32, i32
  }
  func.func @transform_6(%arg0: i32) -> (i32, i32) {
    %c0_i32 = arith.constant 0 : i32
    %c0_i32_0 = arith.constant 0 : i32
    %c0_i32_1 = arith.constant 0 : i32
    return %c0_i32, %c0_i32_0 : i32, i32
  }
  func.func @transform_7(%arg0: i32) -> (i32, i32) {
    %c0_i32 = arith.constant 0 : i32
    %c0_i32_0 = arith.constant 0 : i32
    %c0_i32_1 = arith.constant 0 : i32
    return %c0_i32, %c0_i32_0 : i32, i32
  }
  func.func @transform_8(%arg0: i32) -> (i32, i32) {
    %c0_i32 = arith.constant 0 : i32
    %c0_i32_0 = arith.constant 0 : i32
    %c0_i32_1 = arith.constant 0 : i32
    return %c0_i32, %c0_i32_0 : i32, i32
  }
  func.func @transform_9(%arg0: i32) -> (i32, i32) {
    %c0_i32 = arith.constant 0 : i32
    %c0_i32_0 = arith.constant 0 : i32
    %c0_i32_1 = arith.constant 0 : i32
    return %c0_i32, %c0_i32_0 : i32, i32
  }
  func.func @transform_10(%arg0: i32) -> (i32, i32) {
    %c0_i32 = arith.constant 0 : i32
    %c0_i32_0 = arith.constant 0 : i32
    %c0_i32_1 = arith.constant 0 : i32
    return %c0_i32, %c0_i32_0 : i32, i32
  }
  func.func @transform_11(%arg0: i32) -> (i32, i32) {
    %c0_i32 = arith.constant 0 : i32
    %c0_i32_0 = arith.constant 0 : i32
    %c0_i32_1 = arith.constant 0 : i32
    return %c0_i32, %c0_i32_0 : i32, i32
  }
  func.func @transform_12(%arg0: i32) -> (i32, i32) {
    %c0_i32 = arith.constant 0 : i32
    %c0_i32_0 = arith.constant 0 : i32
    %c0_i32_1 = arith.constant 0 : i32
    return %c0_i32, %c0_i32_0 : i32, i32
  }
  func.func @transform_13(%arg0: i32) -> (i32, i32) {
    %c0_i32 = arith.constant 0 : i32
    %c0_i32_0 = arith.constant 0 : i32
    %c0_i32_1 = arith.constant 0 : i32
    return %c0_i32, %c0_i32_0 : i32, i32
  }
  func.func @transform_14(%arg0: i32) -> (i32, i32) {
    %c0_i32 = arith.constant 0 : i32
    %c0_i32_0 = arith.constant 0 : i32
    %c0_i32_1 = arith.constant 0 : i32
    return %c0_i32, %c0_i32_0 : i32, i32
  }
  func.func @transform_15(%arg0: i32) -> (i32, i32) {
    %c0_i32 = arith.constant 0 : i32
    %c0_i32_0 = arith.constant 0 : i32
    %c0_i32_1 = arith.constant 0 : i32
    return %c0_i32, %c0_i32_0 : i32, i32
  }
  func.func @transform_16(%arg0: i32) -> (i32, i32) {
    %c0_i32 = arith.constant 0 : i32
    %c0_i32_0 = arith.constant 0 : i32
    %c0_i32_1 = arith.constant 0 : i32
    return %c0_i32, %c0_i32_0 : i32, i32
  }
  func.func @transform_17(%arg0: i32) -> (i32, i32) {
    %c0_i32 = arith.constant 0 : i32
    %c0_i32_0 = arith.constant 0 : i32
    %c0_i32_1 = arith.constant 0 : i32
    return %c0_i32, %c0_i32_0 : i32, i32
  }
  func.func @transform_18(%arg0: i32) -> (i32, i32) {
    %c0_i32 = arith.constant 0 : i32
    %c0_i32_0 = arith.constant 0 : i32
    %c0_i32_1 = arith.constant 0 : i32
    return %c0_i32, %c0_i32_0 : i32, i32
  }
  func.func @transform_19(%arg0: i32) -> (i32, i32) {
    %c0_i32 = arith.constant 0 : i32
    %c0_i32_0 = arith.constant 0 : i32
    %c0_i32_1 = arith.constant 0 : i32
    return %c0_i32, %c0_i32_0 : i32, i32
  }
  func.func @transform_20(%arg0: i32) -> (i32, i32) {
    %c0_i32 = arith.constant 0 : i32
    %c0_i32_0 = arith.constant 0 : i32
    %c0_i32_1 = arith.constant 0 : i32
    return %c0_i32, %c0_i32_0 : i32, i32
  }
  func.func @transform_21(%arg0: i32) -> (i32, i32) {
    %c0_i32 = arith.constant 0 : i32
    %c0_i32_0 = arith.constant 0 : i32
    %c0_i32_1 = arith.constant 0 : i32
    return %c0_i32, %c0_i32_0 : i32, i32
  }
  func.func @transform_22(%arg0: i32) -> (i32, i32) {
    %c0_i32 = arith.constant 0 : i32
    %c0_i32_0 = arith.constant 0 : i32
    %c0_i32_1 = arith.constant 0 : i32
    return %c0_i32, %c0_i32_0 : i32, i32
  }
  func.func @transform_23(%arg0: i32) -> (i32, i32) {
    %c0_i32 = arith.constant 0 : i32
    %c0_i32_0 = arith.constant 0 : i32
    %c0_i32_1 = arith.constant 0 : i32
    return %c0_i32, %c0_i32_0 : i32, i32
  }
  func.func @transform_24(%arg0: i32) -> (i32, i32, i32) {
    %c0_i32 = arith.constant 0 : i32
    %c0_i32_0 = arith.constant 0 : i32
    %c0_i32_1 = arith.constant 0 : i32
    return %arg0, %c0_i32, %c0_i32_0 : i32, i32, i32
  }
}

</mosaic_0001>

<llo_original>
// kernel: dlptnet_forward.1
$region0: #{dlptnet_forward.1}
  #allocation0 [shape = 'u32[]', space=smem, size = 0x4, offset = 0x4, fixed_abs, tag = 'smem constant byte address 0x4 - core index']
  #allocation1 [shape = 'u32[144,128]{1,0:T(1,128)}', space=vmem, size = 0x12000, scoped, tag = 'internal scratch']
  %s0 = inlined_call_operand.vmem [shape: f32[2,64,6], index: 0, kind: input, shape index: {}]
  %s1 = inlined_call_operand.vmem [shape: f32[2,3,64], index: 1, kind: input, shape index: {}]
  %s2 = inlined_call_operand.vmem [shape: f32[3,16], index: 2, kind: input, shape index: {}]
  %s3 = inlined_call_operand.vmem [shape: f32[1,16], index: 3, kind: input, shape index: {}]
  %s4 = inlined_call_operand.vmem [shape: f32[19,32], index: 4, kind: input, shape index: {}]
  %s5 = inlined_call_operand.vmem [shape: f32[1,32], index: 5, kind: input, shape index: {}]
  %s6 = inlined_call_operand.vmem [shape: f32[1,32], index: 6, kind: input, shape index: {}]
  %s7 = inlined_call_operand.vmem [shape: f32[1,32], index: 7, kind: input, shape index: {}]
  %s8 = inlined_call_operand.vmem [shape: f32[35,64], index: 8, kind: input, shape index: {}]
  %s9 = inlined_call_operand.vmem [shape: f32[1,64], index: 9, kind: input, shape index: {}]
  %s10 = inlined_call_operand.vmem [shape: f32[1,64], index: 10, kind: input, shape index: {}]
  %s11 = inlined_call_operand.vmem [shape: f32[1,64], index: 11, kind: input, shape index: {}]
  %s12 = inlined_call_operand.vmem [shape: f32[67,128], index: 12, kind: input, shape index: {}]
  %s13 = inlined_call_operand.vmem [shape: f32[1,128], index: 13, kind: input, shape index: {}]
  %s14 = inlined_call_operand.vmem [shape: f32[1,128], index: 14, kind: input, shape index: {}]
  %s15 = inlined_call_operand.vmem [shape: f32[1,128], index: 15, kind: input, shape index: {}]
  %s16 = inlined_call_operand.vmem [shape: f32[131,128], index: 16, kind: input, shape index: {}]
  %s17 = inlined_call_operand.vmem [shape: f32[1,128], index: 17, kind: input, shape index: {}]
  %s18 = inlined_call_operand.vmem [shape: f32[1,128], index: 18, kind: input, shape index: {}]
  %s19 = inlined_call_operand.vmem [shape: f32[1,128], index: 19, kind: input, shape index: {}]
  %s20 = inlined_call_operand.vmem [shape: f32[128,64], index: 20, kind: input, shape index: {}]
  %s21 = inlined_call_operand.vmem [shape: f32[1,64], index: 21, kind: input, shape index: {}]
  %s22 = inlined_call_operand.vmem [shape: f32[64,40], index: 22, kind: input, shape index: {}]
  %s23 = inlined_call_operand.vmem [shape: f32[1,40], index: 23, kind: input, shape index: {}]
  %s24 = inlined_call_operand.hbm [shape: f32[2,1,40], index: 24, kind: output, shape index: {}]
  %s25 = sld [smem:[#allocation0]]
  $region129: #{dlptnet_forward.1} parent=0
    _
  %s27 = ssub.s32 1, %s25
  %s28 = scalar_select 0, %s27, %s25
  $region1: #{dlptnet_forward.1} parent=0
    #allocation2 [shape = 'u8[1024]{0}', space=vmem, size = 0x400, scoped, tag = 'output window, operand 0']
    #allocation3 [shape = 's32[2]{0}', space=sflag, size = 0x8, scoped, tag = 'scoped memory for dlptnet_forward.1']
    %29 = vsyncpa [#allocation3], 0
    %s30 = scalar_lea.sflag [#allocation3], 1
    %31 = vsyncpa %s30, 0
    loop: start=0, step=1, limit=4
    $region2: #{dlptnet_forward.1} parent=1 // loop_pre_header
      _
    $region3: #{dlptnet_forward.1} parent=1 // loop_header
      %s33 = sphi 0, %s37
      %p34 = scmp.ge.s32.totalorder %s33, 4
      %s43 = sphi 0, %s45
      %s46 = sphi 0, %s43
      %s47 = sphi 0, %s46
      %s63 = sphi 0, %s47
      %s69 = sphi 0, %s71
      %s72 = sphi 0, %s69
      %s73 = sphi 0, %s72
      %s89 = sphi 0, %s73
      %s93 = sphi 0, %s93
      %s95 = sphi 0, %s93
      %s96 = sphi 0, %s95
      %s110 = sphi 0, %s96
      %s114 = sphi 0, %s114
      %s116 = sphi 0, %s114
      %s117 = sphi 0, %s116
      %s131 = sphi 0, %s117
      %s135 = sphi 0, %s135
      %s137 = sphi 0, %s135
      %s138 = sphi 0, %s137
      %s152 = sphi 0, %s138
      %s156 = sphi 0, %s156
      %s158 = sphi 0, %s156
      %s159 = sphi 0, %s158
      %s173 = sphi 0, %s159
      %s177 = sphi 0, %s177
      %s179 = sphi 0, %s177
      %s180 = sphi 0, %s179
      %s194 = sphi 0, %s180
      %s198 = sphi 0, %s198
      %s200 = sphi 0, %s198
      %s201 = sphi 0, %s200
      %s215 = sphi 0, %s201
      %s219 = sphi 0, %s219
      %s221 = sphi 0, %s219
      %s222 = sphi 0, %s221
      %s236 = sphi 0, %s222
      %s240 = sphi 0, %s240
      %s242 = sphi 0, %s240
      %s243 = sphi 0, %s242
      %s257 = sphi 0, %s243
      %s261 = sphi 0, %s261
      %s263 = sphi 0, %s261
      %s264 = sphi 0, %s263
      %s278 = sphi 0, %s264
      %s282 = sphi 0, %s282
      %s284 = sphi 0, %s282
      %s285 = sphi 0, %s284
      %s299 = sphi 0, %s285
      %s303 = sphi 0, %s303
      %s305 = sphi 0, %s303
      %s306 = sphi 0, %s305
      %s320 = sphi 0, %s306
      %s324 = sphi 0, %s324
      %s326 = sphi 0, %s324
      %s327 = sphi 0, %s326
      %s341 = sphi 0, %s327
      %s345 = sphi 0, %s345
      %s347 = sphi 0, %s345
      %s348 = sphi 0, %s347
      %s362 = sphi 0, %s348
      %s366 = sphi 0, %s366
      %s368 = sphi 0, %s366
      %s369 = sphi 0, %s368
      %s383 = sphi 0, %s369
      %s387 = sphi 0, %s387
      %s389 = sphi 0, %s387
      %s390 = sphi 0, %s389
      %s404 = sphi 0, %s390
      %s408 = sphi 0, %s408
      %s410 = sphi 0, %s408
      %s411 = sphi 0, %s410
      %s425 = sphi 0, %s411
      %s429 = sphi 0, %s429
      %s431 = sphi 0, %s429
      %s432 = sphi 0, %s431
      %s446 = sphi 0, %s432
      %s450 = sphi 0, %s450
      %s452 = sphi 0, %s450
      %s453 = sphi 0, %s452
      %s467 = sphi 0, %s453
      %s471 = sphi 0, %s471
      %s473 = sphi 0, %s471
      %s474 = sphi 0, %s473
      %s488 = sphi 0, %s474
      %s492 = sphi 0, %s492
      %s494 = sphi 0, %s492
      %s495 = sphi 0, %s494
      %s509 = sphi 0, %s495
      %s513 = sphi 0, %s513
      %s515 = sphi 0, %s513
      %s516 = sphi 0, %s515
      %s530 = sphi 0, %s516
      %s534 = sphi 0, %s534
      %s536 = sphi 0, %s534
      %s537 = sphi 0, %s536
      %s551 = sphi 0, %s537
      %s557 = sphi 0, %s559
      %s560 = sphi 0, %s557
      %s561 = sphi 0, %s560
      %s577 = sphi 0, %s561
    $region4: #{dlptnet_forward.1} parent=1 // loop_header_branch
      %36 = sbr.rel (%p34) target = $region8
    $region5: #{dlptnet_forward.1} parent=1 // loop_body
      %s38 = ssub.s32 %s33, 1
      %s39 = ssub.s32 %s33, 2
      %s40 = sadd.s32 %s33, 1
      %s41 = ssub.s32 %s33, %s40
      %p42 = scmp.eq.s32.totalorder %s41, 0
      %s44 = sadd.s32 %s43, 1
      %s45 = scalar_select %p42, %s43, %s44
      %p48 = pneg %p42
      %p49 = scmp.eq.s32.totalorder %s33, 1
      %p50 = por %p48, %p49
      %p51 = scmp.ne.s32.totalorder %s43, %s46
      %p52 = scmp.eq.s32.totalorder %s33, 0
      %p53 = por %p51, %p52
      %p54 = scmp.ne.s32.totalorder %s43, %s46
      %p55 = scmp.eq.s32.totalorder %s38, 1
      %p56 = por %p54, %p55
      %p57 = scmp.ne.s32.totalorder %s46, %s47
      %p58 = scmp.eq.s32.totalorder %s38, 0
      %p59 = por %p57, %p58
      %p60 = scmp.ne.s32.totalorder %s46, %s47
      %p61 = scmp.eq.s32.totalorder %s39, 1
      %p62 = por %p60, %p61
      %p64 = scmp.ne.s32.totalorder %s47, %s63
      %p65 = scmp.eq.s32.totalorder %s39, 0
      %p66 = por %p64, %p65
      %s67 = ssub.s32 %s33, %s40
      %p68 = scmp.eq.s32.totalorder %s67, 0
      %s70 = sadd.s32 %s69, 1
      %s71 = scalar_select %p68, %s69, %s70
      %p74 = pneg %p68
      %p75 = scmp.eq.s32.totalorder %s33, 1
      %p76 = por %p74, %p75
      %p77 = scmp.ne.s32.totalorder %s69, %s72
      %p78 = scmp.eq.s32.totalorder %s33, 0
      %p79 = por %p77, %p78
      %p80 = scmp.ne.s32.totalorder %s69, %s72
      %p81 = scmp.eq.s32.totalorder %s38, 1
      %p82 = por %p80, %p81
      %p83 = scmp.ne.s32.totalorder %s72, %s73
      %p84 = scmp.eq.s32.totalorder %s38, 0
      %p85 = por %p83, %p84
      %p86 = scmp.ne.s32.totalorder %s72, %s73
      %p87 = scmp.eq.s32.totalorder %s39, 1
      %p88 = por %p86, %p87
      %p90 = scmp.ne.s32.totalorder %s73, %s89
      %p91 = scmp.eq.s32.totalorder %s39, 0
      %p92 = por %p90, %p91
      %s94 = sadd.s32 %s93, 1
      %p97 = scmp.eq.s32.totalorder %s33, 1
      %p98 = scmp.ne.s32.totalorder %s93, %s95
      %p99 = scmp.eq.s32.totalorder %s33, 0
      %p100 = por %p98, %p99
      %p101 = scmp.ne.s32.totalorder %s93, %s95
      %p102 = scmp.eq.s32.totalorder %s38, 1
      %p103 = por %p101, %p102
      %p104 = scmp.ne.s32.totalorder %s95, %s96
      %p105 = scmp.eq.s32.totalorder %s38, 0
      %p106 = por %p104, %p105
      %p107 = scmp.ne.s32.totalorder %s95, %s96
      %p108 = scmp.eq.s32.totalorder %s39, 1
      %p109 = por %p107, %p108
      %p111 = scmp.ne.s32.totalorder %s96, %s110
      %p112 = scmp.eq.s32.totalorder %s39, 0
      %p113 = por %p111, %p112
      %s115 = sadd.s32 %s114, 1
      %p118 = scmp.eq.s32.totalorder %s33, 1
      %p119 = scmp.ne.s32.totalorder %s114, %s116
      %p120 = scmp.eq.s32.totalorder %s33, 0
      %p121 = por %p119, %p120
      %p122 = scmp.ne.s32.totalorder %s114, %s116
      %p123 = scmp.eq.s32.totalorder %s38, 1
      %p124 = por %p122, %p123
      %p125 = scmp.ne.s32.totalorder %s116, %s117
      %p126 = scmp.eq.s32.totalorder %s38, 0
      %p127 = por %p125, %p126
      %p128 = scmp.ne.s32.totalorder %s116, %s117
      %p129 = scmp.eq.s32.totalorder %s39, 1
      %p130 = por %p128, %p129
      %p132 = scmp.ne.s32.totalorder %s117, %s131
      %p133 = scmp.eq.s32.totalorder %s39, 0
      %p134 = por %p132, %p133
      %s136 = sadd.s32 %s135, 1
      %p139 = scmp.eq.s32.totalorder %s33, 1
      %p140 = scmp.ne.s32.totalorder %s135, %s137
      %p141 = scmp.eq.s32.totalorder %s33, 0
      %p142 = por %p140, %p141
      %p143 = scmp.ne.s32.totalorder %s135, %s137
      %p144 = scmp.eq.s32.totalorder %s38, 1
      %p145 = por %p143, %p144
      %p146 = scmp.ne.s32.totalorder %s137, %s138
      %p147 = scmp.eq.s32.totalorder %s38, 0
      %p148 = por %p146, %p147
      %p149 = scmp.ne.s32.totalorder %s137, %s138
      %p150 = scmp.eq.s32.totalorder %s39, 1
      %p151 = por %p149, %p150
      %p153 = scmp.ne.s32.totalorder %s138, %s152
      %p154 = scmp.eq.s32.totalorder %s39, 0
      %p155 = por %p153, %p154
      %s157 = sadd.s32 %s156, 1
      %p160 = scmp.eq.s32.totalorder %s33, 1
      %p161 = scmp.ne.s32.totalorder %s156, %s158
      %p162 = scmp.eq.s32.totalorder %s33, 0
      %p163 = por %p161, %p162
      %p164 = scmp.ne.s32.totalorder %s156, %s158
      %p165 = scmp.eq.s32.totalorder %s38, 1
      %p166 = por %p164, %p165
      %p167 = scmp.ne.s32.totalorder %s158, %s159
      %p168 = scmp.eq.s32.totalorder %s38, 0
      %p169 = por %p167, %p168
      %p170 = scmp.ne.s32.totalorder %s158, %s159
      %p171 = scmp.eq.s32.totalorder %s39, 1
      %p172 = por %p170, %p171
      %p174 = scmp.ne.s32.totalorder %s159, %s173
      %p175 = scmp.eq.s32.totalorder %s39, 0
      %p176 = por %p174, %p175
      %s178 = sadd.s32 %s177, 1
      %p181 = scmp.eq.s32.totalorder %s33, 1
      %p182 = scmp.ne.s32.totalorder %s177, %s179
      %p183 = scmp.eq.s32.totalorder %s33, 0
      %p184 = por %p182, %p183
      %p185 = scmp.ne.s32.totalorder %s177, %s179
      %p186 = scmp.eq.s32.totalorder %s38, 1
      %p187 = por %p185, %p186
      %p188 = scmp.ne.s32.totalorder %s179, %s180
      %p189 = scmp.eq.s32.totalorder %s38, 0
      %p190 = por %p188, %p189
      %p191 = scmp.ne.s32.totalorder %s179, %s180
      %p192 = scmp.eq.s32.totalorder %s39, 1
      %p193 = por %p191, %p192
      %p195 = scmp.ne.s32.totalorder %s180, %s194
      %p196 = scmp.eq.s32.totalorder %s39, 0
      %p197 = por %p195, %p196
      %s199 = sadd.s32 %s198, 1
      %p202 = scmp.eq.s32.totalorder %s33, 1
      %p203 = scmp.ne.s32.totalorder %s198, %s200
      %p204 = scmp.eq.s32.totalorder %s33, 0
      %p205 = por %p203, %p204
      %p206 = scmp.ne.s32.totalorder %s198, %s200
      %p207 = scmp.eq.s32.totalorder %s38, 1
      %p208 = por %p206, %p207
      %p209 = scmp.ne.s32.totalorder %s200, %s201
      %p210 = scmp.eq.s32.totalorder %s38, 0
      %p211 = por %p209, %p210
      %p212 = scmp.ne.s32.totalorder %s200, %s201
      %p213 = scmp.eq.s32.totalorder %s39, 1
      %p214 = por %p212, %p213
      %p216 = scmp.ne.s32.totalorder %s201, %s215
      %p217 = scmp.eq.s32.totalorder %s39, 0
      %p218 = por %p216, %p217
      %s220 = sadd.s32 %s219, 1
      %p223 = scmp.eq.s32.totalorder %s33, 1
      %p224 = scmp.ne.s32.totalorder %s219, %s221
      %p225 = scmp.eq.s32.totalorder %s33, 0
      %p226 = por %p224, %p225
      %p227 = scmp.ne.s32.totalorder %s219, %s221
      %p228 = scmp.eq.s32.totalorder %s38, 1
      %p229 = por %p227, %p228
      %p230 = scmp.ne.s32.totalorder %s221, %s222
      %p231 = scmp.eq.s32.totalorder %s38, 0
      %p232 = por %p230, %p231
      %p233 = scmp.ne.s32.totalorder %s221, %s222
      %p234 = scmp.eq.s32.totalorder %s39, 1
      %p235 = por %p233, %p234
      %p237 = scmp.ne.s32.totalorder %s222, %s236
      %p238 = scmp.eq.s32.totalorder %s39, 0
      %p239 = por %p237, %p238
      %s241 = sadd.s32 %s240, 1
      %p244 = scmp.eq.s32.totalorder %s33, 1
      %p245 = scmp.ne.s32.totalorder %s240, %s242
      %p246 = scmp.eq.s32.totalorder %s33, 0
      %p247 = por %p245, %p246
      %p248 = scmp.ne.s32.totalorder %s240, %s242
      %p249 = scmp.eq.s32.totalorder %s38, 1
      %p250 = por %p248, %p249
      %p251 = scmp.ne.s32.totalorder %s242, %s243
      %p252 = scmp.eq.s32.totalorder %s38, 0
      %p253 = por %p251, %p252
      %p254 = scmp.ne.s32.totalorder %s242, %s243
      %p255 = scmp.eq.s32.totalorder %s39, 1
      %p256 = por %p254, %p255
      %p258 = scmp.ne.s32.totalorder %s243, %s257
      %p259 = scmp.eq.s32.totalorder %s39, 0
      %p260 = por %p258, %p259
      %s262 = sadd.s32 %s261, 1
      %p265 = scmp.eq.s32.totalorder %s33, 1
      %p266 = scmp.ne.s32.totalorder %s261, %s263
      %p267 = scmp.eq.s32.totalorder %s33, 0
      %p268 = por %p266, %p267
      %p269 = scmp.ne.s32.totalorder %s261, %s263
      %p270 = scmp.eq.s32.totalorder %s38, 1
      %p271 = por %p269, %p270
      %p272 = scmp.ne.s32.totalorder %s263, %s264
      %p273 = scmp.eq.s32.totalorder %s38, 0
      %p274 = por %p272, %p273
      %p275 = scmp.ne.s32.totalorder %s263, %s264
      %p276 = scmp.eq.s32.totalorder %s39, 1
      %p277 = por %p275, %p276
      %p279 = scmp.ne.s32.totalorder %s264, %s278
      %p280 = scmp.eq.s32.totalorder %s39, 0
      %p281 = por %p279, %p280
      %s283 = sadd.s32 %s282, 1
      %p286 = scmp.eq.s32.totalorder %s33, 1
      %p287 = scmp.ne.s32.totalorder %s282, %s284
      %p288 = scmp.eq.s32.totalorder %s33, 0
      %p289 = por %p287, %p288
      %p290 = scmp.ne.s32.totalorder %s282, %s284
      %p291 = scmp.eq.s32.totalorder %s38, 1
      %p292 = por %p290, %p291
      %p293 = scmp.ne.s32.totalorder %s284, %s285
      %p294 = scmp.eq.s32.totalorder %s38, 0
      %p295 = por %p293, %p294
      %p296 = scmp.ne.s32.totalorder %s284, %s285
      %p297 = scmp.eq.s32.totalorder %s39, 1
      %p298 = por %p296, %p297
      %p300 = scmp.ne.s32.totalorder %s285, %s299
      %p301 = scmp.eq.s32.totalorder %s39, 0
      %p302 = por %p300, %p301
      %s304 = sadd.s32 %s303, 1
      %p307 = scmp.eq.s32.totalorder %s33, 1
      %p308 = scmp.ne.s32.totalorder %s303, %s305
      %p309 = scmp.eq.s32.totalorder %s33, 0
      %p310 = por %p308, %p309
      %p311 = scmp.ne.s32.totalorder %s303, %s305
      %p312 = scmp.eq.s32.totalorder %s38, 1
      %p313 = por %p311, %p312
      %p314 = scmp.ne.s32.totalorder %s305, %s306
      %p315 = scmp.eq.s32.totalorder %s38, 0
      %p316 = por %p314, %p315
      %p317 = scmp.ne.s32.totalorder %s305, %s306
      %p318 = scmp.eq.s32.totalorder %s39, 1
      %p319 = por %p317, %p318
      %p321 = scmp.ne.s32.totalorder %s306, %s320
      %p322 = scmp.eq.s32.totalorder %s39, 0
      %p323 = por %p321, %p322
      %s325 = sadd.s32 %s324, 1
      %p328 = scmp.eq.s32.totalorder %s33, 1
      %p329 = scmp.ne.s32.totalorder %s324, %s326
      %p330 = scmp.eq.s32.totalorder %s33, 0
      %p331 = por %p329, %p330
      %p332 = scmp.ne.s32.totalorder %s324, %s326
      %p333 = scmp.eq.s32.totalorder %s38, 1
      %p334 = por %p332, %p333
      %p335 = scmp.ne.s32.totalorder %s326, %s327
      %p336 = scmp.eq.s32.totalorder %s38, 0
      %p337 = por %p335, %p336
      %p338 = scmp.ne.s32.totalorder %s326, %s327
      %p339 = scmp.eq.s32.totalorder %s39, 1
      %p340 = por %p338, %p339
      %p342 = scmp.ne.s32.totalorder %s327, %s341
      %p343 = scmp.eq.s32.totalorder %s39, 0
      %p344 = por %p342, %p343
      %s346 = sadd.s32 %s345, 1
      %p349 = scmp.eq.s32.totalorder %s33, 1
      %p350 = scmp.ne.s32.totalorder %s345, %s347
      %p351 = scmp.eq.s32.totalorder %s33, 0
      %p352 = por %p350, %p351
      %p353 = scmp.ne.s32.totalorder %s345, %s347
      %p354 = scmp.eq.s32.totalorder %s38, 1
      %p355 = por %p353, %p354
      %p356 = scmp.ne.s32.totalorder %s347, %s348
      %p357 = scmp.eq.s32.totalorder %s38, 0
      %p358 = por %p356, %p357
      %p359 = scmp.ne.s32.totalorder %s347, %s348
      %p360 = scmp.eq.s32.totalorder %s39, 1
      %p361 = por %p359, %p360
      %p363 = scmp.ne.s32.totalorder %s348, %s362
      %p364 = scmp.eq.s32.totalorder %s39, 0
      %p365 = por %p363, %p364
      %s367 = sadd.s32 %s366, 1
      %p370 = scmp.eq.s32.totalorder %s33, 1
      %p371 = scmp.ne.s32.totalorder %s366, %s368
      %p372 = scmp.eq.s32.totalorder %s33, 0
      %p373 = por %p371, %p372
      %p374 = scmp.ne.s32.totalorder %s366, %s368
      %p375 = scmp.eq.s32.totalorder %s38, 1
      %p376 = por %p374, %p375
      %p377 = scmp.ne.s32.totalorder %s368, %s369
      %p378 = scmp.eq.s32.totalorder %s38, 0
      %p379 = por %p377, %p378
      %p380 = scmp.ne.s32.totalorder %s368, %s369
      %p381 = scmp.eq.s32.totalorder %s39, 1
      %p382 = por %p380, %p381
      %p384 = scmp.ne.s32.totalorder %s369, %s383
      %p385 = scmp.eq.s32.totalorder %s39, 0
      %p386 = por %p384, %p385
      %s388 = sadd.s32 %s387, 1
      %p391 = scmp.eq.s32.totalorder %s33, 1
      %p392 = scmp.ne.s32.totalorder %s387, %s389
      %p393 = scmp.eq.s32.totalorder %s33, 0
      %p394 = por %p392, %p393
      %p395 = scmp.ne.s32.totalorder %s387, %s389
      %p396 = scmp.eq.s32.totalorder %s38, 1
      %p397 = por %p395, %p396
      %p398 = scmp.ne.s32.totalorder %s389, %s390
      %p399 = scmp.eq.s32.totalorder %s38, 0
      %p400 = por %p398, %p399
      %p401 = scmp.ne.s32.totalorder %s389, %s390
      %p402 = scmp.eq.s32.totalorder %s39, 1
      %p403 = por %p401, %p402
      %p405 = scmp.ne.s32.totalorder %s390, %s404
      %p406 = scmp.eq.s32.totalorder %s39, 0
      %p407 = por %p405, %p406
      %s409 = sadd.s32 %s408, 1
      %p412 = scmp.eq.s32.totalorder %s33, 1
      %p413 = scmp.ne.s32.totalorder %s408, %s410
      %p414 = scmp.eq.s32.totalorder %s33, 0
      %p415 = por %p413, %p414
      %p416 = scmp.ne.s32.totalorder %s408, %s410
      %p417 = scmp.eq.s32.totalorder %s38, 1
      %p418 = por %p416, %p417
      %p419 = scmp.ne.s32.totalorder %s410, %s411
      %p420 = scmp.eq.s32.totalorder %s38, 0
      %p421 = por %p419, %p420
      %p422 = scmp.ne.s32.totalorder %s410, %s411
      %p423 = scmp.eq.s32.totalorder %s39, 1
      %p424 = por %p422, %p423
      %p426 = scmp.ne.s32.totalorder %s411, %s425
      %p427 = scmp.eq.s32.totalorder %s39, 0
      %p428 = por %p426, %p427
      %s430 = sadd.s32 %s429, 1
      %p433 = scmp.eq.s32.totalorder %s33, 1
      %p434 = scmp.ne.s32.totalorder %s429, %s431
      %p435 = scmp.eq.s32.totalorder %s33, 0
      %p436 = por %p434, %p435
      %p437 = scmp.ne.s32.totalorder %s429, %s431
      %p438 = scmp.eq.s32.totalorder %s38, 1
      %p439 = por %p437, %p438
      %p440 = scmp.ne.s32.totalorder %s431, %s432
      %p441 = scmp.eq.s32.totalorder %s38, 0
      %p442 = por %p440, %p441
      %p443 = scmp.ne.s32.totalorder %s431, %s432
      %p444 = scmp.eq.s32.totalorder %s39, 1
      %p445 = por %p443, %p444
      %p447 = scmp.ne.s32.totalorder %s432, %s446
      %p448 = scmp.eq.s32.totalorder %s39, 0
      %p449 = por %p447, %p448
      %s451 = sadd.s32 %s450, 1
      %p454 = scmp.eq.s32.totalorder %s33, 1
      %p455 = scmp.ne.s32.totalorder %s450, %s452
      %p456 = scmp.eq.s32.totalorder %s33, 0
      %p457 = por %p455, %p456
      %p458 = scmp.ne.s32.totalorder %s450, %s452
      %p459 = scmp.eq.s32.totalorder %s38, 1
      %p460 = por %p458, %p459
      %p461 = scmp.ne.s32.totalorder %s452, %s453
      %p462 = scmp.eq.s32.totalorder %s38, 0
      %p463 = por %p461, %p462
      %p464 = scmp.ne.s32.totalorder %s452, %s453
      %p465 = scmp.eq.s32.totalorder %s39, 1
      %p466 = por %p464, %p465
      %p468 = scmp.ne.s32.totalorder %s453, %s467
      %p469 = scmp.eq.s32.totalorder %s39, 0
      %p470 = por %p468, %p469
      %s472 = sadd.s32 %s471, 1
      %p475 = scmp.eq.s32.totalorder %s33, 1
      %p476 = scmp.ne.s32.totalorder %s471, %s473
      %p477 = scmp.eq.s32.totalorder %s33, 0
      %p478 = por %p476, %p477
      %p479 = scmp.ne.s32.totalorder %s471, %s473
      %p480 = scmp.eq.s32.totalorder %s38, 1
      %p481 = por %p479, %p480
      %p482 = scmp.ne.s32.totalorder %s473, %s474
      %p483 = scmp.eq.s32.totalorder %s38, 0
      %p484 = por %p482, %p483
      %p485 = scmp.ne.s32.totalorder %s473, %s474
      %p486 = scmp.eq.s32.totalorder %s39, 1
      %p487 = por %p485, %p486
      %p489 = scmp.ne.s32.totalorder %s474, %s488
      %p490 = scmp.eq.s32.totalorder %s39, 0
      %p491 = por %p489, %p490
      %s493 = sadd.s32 %s492, 1
      %p496 = scmp.eq.s32.totalorder %s33, 1
      %p497 = scmp.ne.s32.totalorder %s492, %s494
      %p498 = scmp.eq.s32.totalorder %s33, 0
      %p499 = por %p497, %p498
      %p500 = scmp.ne.s32.totalorder %s492, %s494
      %p501 = scmp.eq.s32.totalorder %s38, 1
      %p502 = por %p500, %p501
      %p503 = scmp.ne.s32.totalorder %s494, %s495
      %p504 = scmp.eq.s32.totalorder %s38, 0
      %p505 = por %p503, %p504
      %p506 = scmp.ne.s32.totalorder %s494, %s495
      %p507 = scmp.eq.s32.totalorder %s39, 1
      %p508 = por %p506, %p507
      %p510 = scmp.ne.s32.totalorder %s495, %s509
      %p511 = scmp.eq.s32.totalorder %s39, 0
      %p512 = por %p510, %p511
      %s514 = sadd.s32 %s513, 1
      %p517 = scmp.eq.s32.totalorder %s33, 1
      %p518 = scmp.ne.s32.totalorder %s513, %s515
      %p519 = scmp.eq.s32.totalorder %s33, 0
      %p520 = por %p518, %p519
      %p521 = scmp.ne.s32.totalorder %s513, %s515
      %p522 = scmp.eq.s32.totalorder %s38, 1
      %p523 = por %p521, %p522
      %p524 = scmp.ne.s32.totalorder %s515, %s516
      %p525 = scmp.eq.s32.totalorder %s38, 0
      %p526 = por %p524, %p525
      %p527 = scmp.ne.s32.totalorder %s515, %s516
      %p528 = scmp.eq.s32.totalorder %s39, 1
      %p529 = por %p527, %p528
      %p531 = scmp.ne.s32.totalorder %s516, %s530
      %p532 = scmp.eq.s32.totalorder %s39, 0
      %p533 = por %p531, %p532
      %s535 = sadd.s32 %s534, 1
      %p538 = scmp.eq.s32.totalorder %s33, 1
      %p539 = scmp.ne.s32.totalorder %s534, %s536
      %p540 = scmp.eq.s32.totalorder %s33, 0
      %p541 = por %p539, %p540
      %p542 = scmp.ne.s32.totalorder %s534, %s536
      %p543 = scmp.eq.s32.totalorder %s38, 1
      %p544 = por %p542, %p543
      %p545 = scmp.ne.s32.totalorder %s536, %s537
      %p546 = scmp.eq.s32.totalorder %s38, 0
      %p547 = por %p545, %p546
      %p548 = scmp.ne.s32.totalorder %s536, %s537
      %p549 = scmp.eq.s32.totalorder %s39, 1
      %p550 = por %p548, %p549
      %p552 = scmp.ne.s32.totalorder %s537, %s551
      %p553 = scmp.eq.s32.totalorder %s39, 0
      %p554 = por %p552, %p553
      %s555 = ssub.s32 %s33, %s40
      %p556 = scmp.eq.s32.totalorder %s555, 0
      %s558 = sadd.s32 %s557, 1
      %s559 = scalar_select %p556, %s557, %s558
      %p562 = pneg %p556
      %p563 = scmp.eq.s32.totalorder %s33, 1
      %p564 = por %p562, %p563
      %p565 = scmp.ne.s32.totalorder %s557, %s560
      %p566 = scmp.eq.s32.totalorder %s33, 0
      %p567 = por %p565, %p566
      %p568 = scmp.ne.s32.totalorder %s557, %s560
      %p569 = scmp.eq.s32.totalorder %s38, 1
      %p570 = por %p568, %p569
      %p571 = scmp.ne.s32.totalorder %s560, %s561
      %p572 = scmp.eq.s32.totalorder %s38, 0
      %p573 = por %p571, %p572
      %p574 = scmp.ne.s32.totalorder %s560, %s561
      %p575 = scmp.eq.s32.totalorder %s39, 1
      %p576 = por %p574, %p575
      %p578 = scmp.ne.s32.totalorder %s561, %s577
      %p579 = scmp.eq.s32.totalorder %s39, 0
      %p580 = por %p578, %p579
      %p581 = scmp.le.s32.totalorder 1, %s33
      %p582 = scmp.lt.s32.totalorder %s33, 3
      %p583 = pnand %p581, %p582
      %p584 = pneg %p583
      // Predicated region
      $region9: #{dlptnet_forward.1} parent=5 // pred_check
        _
      $region10: #{dlptnet_forward.1} parent=5 // pred_check_branch
        %586 = sbr.rel (%p583) target = $region12
      $region11: #{dlptnet_forward.1} parent=5 // pred_region
        %s587 = ssub.s32 %s33, 1
        // Predicated region
        $region13: #{dlptnet_forward.1} parent=11 // pred_check
          %p588 = pneg %p106
        $region14: #{dlptnet_forward.1} parent=11 // pred_check_branch
          %590 = sbr.rel (%p588) target = $region16
        $region15: #{dlptnet_forward.1} parent=11 // pred_region
          _
        $region16: #{dlptnet_forward.1} parent=11 // pred_fallthru
          _
        // Predicated region
        $region17: #{dlptnet_forward.1} parent=11 // pred_check
          %p591 = pneg %p127
        $region18: #{dlptnet_forward.1} parent=11 // pred_check_branch
          %593 = sbr.rel (%p591) target = $region20
        $region19: #{dlptnet_forward.1} parent=11 // pred_region
          _
        $region20: #{dlptnet_forward.1} parent=11 // pred_fallthru
          _
        // Predicated region
        $region21: #{dlptnet_forward.1} parent=11 // pred_check
          %p594 = pneg %p148
        $region22: #{dlptnet_forward.1} parent=11 // pred_check_branch
          %596 = sbr.rel (%p594) target = $region24
        $region23: #{dlptnet_forward.1} parent=11 // pred_region
          _
        $region24: #{dlptnet_forward.1} parent=11 // pred_fallthru
          _
        // Predicated region
        $region25: #{dlptnet_forward.1} parent=11 // pred_check
          %p597 = pneg %p169
        $region26: #{dlptnet_forward.1} parent=11 // pred_check_branch
          %599 = sbr.rel (%p597) target = $region28
        $region27: #{dlptnet_forward.1} parent=11 // pred_region
          _
        $region28: #{dlptnet_forward.1} parent=11 // pred_fallthru
          _
        // Predicated region
        $region29: #{dlptnet_forward.1} parent=11 // pred_check
          %p600 = pneg %p190
        $region30: #{dlptnet_forward.1} parent=11 // pred_check_branch
          %602 = sbr.rel (%p600) target = $region32
        $region31: #{dlptnet_forward.1} parent=11 // pred_region
          _
        $region32: #{dlptnet_forward.1} parent=11 // pred_fallthru
          _
        // Predicated region
        $region33: #{dlptnet_forward.1} parent=11 // pred_check
          %p603 = pneg %p211
        $region34: #{dlptnet_forward.1} parent=11 // pred_check_branch
          %605 = sbr.rel (%p603) target = $region36
        $region35: #{dlptnet_forward.1} parent=11 // pred_region
          _
        $region36: #{dlptnet_forward.1} parent=11 // pred_fallthru
          _
        // Predicated region
        $region37: #{dlptnet_forward.1} parent=11 // pred_check
          %p606 = pneg %p232
        $region38: #{dlptnet_forward.1} parent=11 // pred_check_branch
          %608 = sbr.rel (%p606) target = $region40
        $region39: #{dlptnet_forward.1} parent=11 // pred_region
          _
        $region40: #{dlptnet_forward.1} parent=11 // pred_fallthru
          _
        // Predicated region
        $region41: #{dlptnet_forward.1} parent=11 // pred_check
          %p609 = pneg %p253
        $region42: #{dlptnet_forward.1} parent=11 // pred_check_branch
          %611 = sbr.rel (%p609) target = $region44
        $region43: #{dlptnet_forward.1} parent=11 // pred_region
          _
        $region44: #{dlptnet_forward.1} parent=11 // pred_fallthru
          _
        // Predicated region
        $region45: #{dlptnet_forward.1} parent=11 // pred_check
          %p612 = pneg %p274
        $region46: #{dlptnet_forward.1} parent=11 // pred_check_branch
          %614 = sbr.rel (%p612) target = $region48
        $region47: #{dlptnet_forward.1} parent=11 // pred_region
          _
        $region48: #{dlptnet_forward.1} parent=11 // pred_fallthru
          _
        // Predicated region
        $region49: #{dlptnet_forward.1} parent=11 // pred_check
          %p615 = pneg %p295
        $region50: #{dlptnet_forward.1} parent=11 // pred_check_branch
          %617 = sbr.rel (%p615) target = $region52
        $region51: #{dlptnet_forward.1} parent=11 // pred_region
          _
        $region52: #{dlptnet_forward.1} parent=11 // pred_fallthru
          _
        // Predicated region
        $region53: #{dlptnet_forward.1} parent=11 // pred_check
          %p618 = pneg %p316
        $region54: #{dlptnet_forward.1} parent=11 // pred_check_branch
          %620 = sbr.rel (%p618) target = $region56
        $region55: #{dlptnet_forward.1} parent=11 // pred_region
          _
        $region56: #{dlptnet_forward.1} parent=11 // pred_fallthru
          _
        // Predicated region
        $region57: #{dlptnet_forward.1} parent=11 // pred_check
          %p621 = pneg %p337
        $region58: #{dlptnet_forward.1} parent=11 // pred_check_branch
          %623 = sbr.rel (%p621) target = $region60
        $region59: #{dlptnet_forward.1} parent=11 // pred_region
          _
        $region60: #{dlptnet_forward.1} parent=11 // pred_fallthru
          _
        // Predicated region
        $region61: #{dlptnet_forward.1} parent=11 // pred_check
          %p624 = pneg %p358
        $region62: #{dlptnet_forward.1} parent=11 // pred_check_branch
          %626 = sbr.rel (%p624) target = $region64
        $region63: #{dlptnet_forward.1} parent=11 // pred_region
          _
        $region64: #{dlptnet_forward.1} parent=11 // pred_fallthru
          _
        // Predicated region
        $region65: #{dlptnet_forward.1} parent=11 // pred_check
          %p627 = pneg %p379
        $region66: #{dlptnet_forward.1} parent=11 // pred_check_branch
          %629 = sbr.rel (%p627) target = $region68
        $region67: #{dlptnet_forward.1} parent=11 // pred_region
          _
        $region68: #{dlptnet_forward.1} parent=11 // pred_fallthru
          _
        // Predicated region
        $region69: #{dlptnet_forward.1} parent=11 // pred_check
          %p630 = pneg %p400
        $region70: #{dlptnet_forward.1} parent=11 // pred_check_branch
          %632 = sbr.rel (%p630) target = $region72
        $region71: #{dlptnet_forward.1} parent=11 // pred_region
          _
        $region72: #{dlptnet_forward.1} parent=11 // pred_fallthru
          _
        // Predicated region
        $region73: #{dlptnet_forward.1} parent=11 // pred_check
          %p633 = pneg %p421
        $region74: #{dlptnet_forward.1} parent=11 // pred_check_branch
          %635 = sbr.rel (%p633) target = $region76
        $region75: #{dlptnet_forward.1} parent=11 // pred_region
          _
        $region76: #{dlptnet_forward.1} parent=11 // pred_fallthru
          _
        // Predicated region
        $region77: #{dlptnet_forward.1} parent=11 // pred_check
          %p636 = pneg %p442
        $region78: #{dlptnet_forward.1} parent=11 // pred_check_branch
          %638 = sbr.rel (%p636) target = $region80
        $region79: #{dlptnet_forward.1} parent=11 // pred_region
          _
        $region80: #{dlptnet_forward.1} parent=11 // pred_fallthru
          _
        // Predicated region
        $region81: #{dlptnet_forward.1} parent=11 // pred_check
          %p639 = pneg %p463
        $region82: #{dlptnet_forward.1} parent=11 // pred_check_branch
          %641 = sbr.rel (%p639) target = $region84
        $region83: #{dlptnet_forward.1} parent=11 // pred_region
          _
        $region84: #{dlptnet_forward.1} parent=11 // pred_fallthru
          _
        // Predicated region
        $region85: #{dlptnet_forward.1} parent=11 // pred_check
          %p642 = pneg %p484
        $region86: #{dlptnet_forward.1} parent=11 // pred_check_branch
          %644 = sbr.rel (%p642) target = $region88
        $region87: #{dlptnet_forward.1} parent=11 // pred_region
          _
        $region88: #{dlptnet_forward.1} parent=11 // pred_fallthru
          _
        // Predicated region
        $region89: #{dlptnet_forward.1} parent=11 // pred_check
          %p645 = pneg %p505
        $region90: #{dlptnet_forward.1} parent=11 // pred_check_branch
          %647 = sbr.rel (%p645) target = $region92
        $region91: #{dlptnet_forward.1} parent=11 // pred_region
          _
        $region92: #{dlptnet_forward.1} parent=11 // pred_fallthru
          _
        // Predicated region
        $region93: #{dlptnet_forward.1} parent=11 // pred_check
          %p648 = pneg %p526
        $region94: #{dlptnet_forward.1} parent=11 // pred_check_branch
          %650 = sbr.rel (%p648) target = $region96
        $region95: #{dlptnet_forward.1} parent=11 // pred_region
          _
        $region96: #{dlptnet_forward.1} parent=11 // pred_fallthru
          _
        // Predicated region
        $region97: #{dlptnet_forward.1} parent=11 // pred_check
          %p651 = pneg %p547
        $region98: #{dlptnet_forward.1} parent=11 // pred_check_branch
          %653 = sbr.rel (%p651) target = $region100
        $region99: #{dlptnet_forward.1} parent=11 // pred_region
          _
        $region100: #{dlptnet_forward.1} parent=11 // pred_fallthru
          _
      $region12: #{dlptnet_forward.1} parent=5 // pred_fallthru
        _
      %p654 = scmp.lt.s32.totalorder %s33, 2
      // Predicated region
      $region101: #{dlptnet_forward.1} parent=5 // pred_check
        %p655 = pneg %p654
      $region102: #{dlptnet_forward.1} parent=5 // pred_check_branch
        %657 = sbr.rel (%p655) target = $region104
      $region103: #{dlptnet_forward.1} parent=5 // pred_region
        // Predicated region
        $region105: #{dlptnet_forward.1} parent=103 // pred_check
          %p658 = pneg %p53
        $region106: #{dlptnet_forward.1} parent=103 // pred_check_branch
          %660 = sbr.rel (%p658) target = $region108
        $region107: #{dlptnet_forward.1} parent=103 // pred_region
          %p661 = scmp.lt.s32.totalorder %s33, 1
          %s662 = scalar_select %p661, %s33, 1
          %s663 = smul.addr %s662, 8
          %s664 = smul.addr %s663, 8
          %s665 = scalar_lea.vmem %s0, %s664
        $region108: #{dlptnet_forward.1} parent=103 // pred_fallthru
          _
        // Predicated region
        $region109: #{dlptnet_forward.1} parent=103 // pred_check
          %p666 = pneg %p79
        $region110: #{dlptnet_forward.1} parent=103 // pred_check_branch
          %668 = sbr.rel (%p666) target = $region112
        $region111: #{dlptnet_forward.1} parent=103 // pred_region
          %p669 = scmp.lt.s32.totalorder %s33, 1
          %s670 = scalar_select %p669, %s33, 1
          %s671 = smul.addr %s670, 4
          %s672 = scalar_lea.vmem %s1, %s671
        $region112: #{dlptnet_forward.1} parent=103 // pred_fallthru
          _
      $region104: #{dlptnet_forward.1} parent=5 // pred_fallthru
        _
      %p673 = scmp.le.s32.totalorder 1, %s33
      %p674 = scmp.lt.s32.totalorder %s33, 3
      %p675 = pnand %p673, %p674
      %p676 = pneg %p675
      // Predicated region
      $region113: #{dlptnet_forward.1} parent=5 // pred_check
        _
      $region114: #{dlptnet_forward.1} parent=5 // pred_check_branch
        %678 = sbr.rel (%p675) target = $region116
      $region115: #{dlptnet_forward.1} parent=5 // pred_region
        %s679 = ssub.s32 %s33, 1
        %p680 = scmp.lt.s32.totalorder %s38, 1
        %s681 = scalar_select %p680, %s38, 1
        %s682 = smul.addr %s681, 8
        %s683 = smul.addr %s682, 8
        %s684 = scalar_lea.vmem %s0, %s683
        %p685 = pneg %p59
        %p686 = pneg %p56
        %p687 = scmp.lt.s32.totalorder %s38, 1
        %s688 = scalar_select %p687, %s38, 1
        %s689 = smul.addr %s688, 4
        %s690 = scalar_lea.vmem %s1, %s689
        %p691 = pneg %p85
        %p692 = pneg %p82
        %p693 = pneg %p106
        %p694 = pneg %p103
        %p695 = pneg %p127
        %p696 = pneg %p124
        %p697 = pneg %p148
        %p698 = pneg %p145
        %p699 = pneg %p169
        %p700 = pneg %p166
        %p701 = pneg %p190
        %p702 = pneg %p187
        %p703 = pneg %p211
        %p704 = pneg %p208
        %p705 = pneg %p232
        %p706 = pneg %p229
        %p707 = pneg %p253
        %p708 = pneg %p250
        %p709 = pneg %p274
        %p710 = pneg %p271
        %p711 = pneg %p295
        %p712 = pneg %p292
        %p713 = pneg %p316
        %p714 = pneg %p313
        %p715 = pneg %p337
        %p716 = pneg %p334
        %p717 = pneg %p358
        %p718 = pneg %p355
        %p719 = pneg %p379
        %p720 = pneg %p376
        %p721 = pneg %p400
        %p722 = pneg %p397
        %p723 = pneg %p421
        %p724 = pneg %p418
        %p725 = pneg %p442
        %p726 = pneg %p439
        %p727 = pneg %p463
        %p728 = pneg %p460
        %p729 = pneg %p484
        %p730 = pneg %p481
        %p731 = pneg %p505
        %p732 = pneg %p502
        %p733 = pneg %p526
        %p734 = pneg %p523
        %p735 = pneg %p547
        %p736 = pneg %p544
        %p737 = pneg %p573
        %p738 = pneg %p570
        %s739 = sand.u32 %s560, 1
        %s740 = scalar_lea.sflag [#allocation3], %s739
        %s741 = sand.u32 %s560, 1
        %s742 = scalar_lea.vmem [#allocation2], %s741
        %p743 = scmp.lt.s32.totalorder %s38, 1
        %s744 = scalar_select %p743, %s38, 1
        %s745 = smul.addr %s744, 8
        %s746 = smul.addr %s745, 8
        %s747 = scalar_lea.vmem %s0, %s746
        %p748 = scmp.lt.s32.totalorder %s38, 1
        %s749 = scalar_select %p748, %s38, 1
        %s750 = smul.addr %s749, 4
        %s751 = scalar_lea.vmem %s1, %s750
        %v753 = vld [vmem:[%s747] sm:$0xff]
        %v754 = vld [vmem:[%s747 + $0x8] sm:$0xff]
        %v755 = vld [vmem:[%s747 + $0x10] sm:$0xff]
        %v756 = vld [vmem:[%s747 + $0x18] sm:$0xff]
        %v757 = vld [vmem:[%s747 + $0x20] sm:$0xff]
        %v758 = vld [vmem:[%s747 + $0x28] sm:$0xff]
        %v759 = vld [vmem:[%s747 + $0x30] sm:$0xff]
        %v760 = vld [vmem:[%s747 + $0x38] sm:$0xff]
        %v761 = vld [vmem:[%s751] sm:$0x7]
        %v762 = vld [vmem:[%s2] sm:$0x7]
        %v763 = vld [vmem:[%s3] sm:$0x1]
        %v765 = vlaneseq
        %v766 = vshrl.u32 %v765, 7
        %v767 = vsub.s32 0, %v766
        %v768 = vrot.slane %v763, %v767
        %v770 = vadd.f32 %v768, 0.0
        %772 = vset.pattern.permute.xlu0 3
        %773 = vperm.xlu0 %772, %v753
        %v774 = vpop.permute.xlu0 %773
        %777 = vset.pattern.permute.xlu0 3
        %778 = vperm.xlu0 %777, %v754
        %v779 = vpop.permute.xlu0 %778
        %782 = vset.pattern.permute.xlu0 3
        %783 = vperm.xlu0 %782, %v755
        %v784 = vpop.permute.xlu0 %783
        %787 = vset.pattern.permute.xlu0 3
        %788 = vperm.xlu0 %787, %v756
        %v789 = vpop.permute.xlu0 %788
        %792 = vset.pattern.permute.xlu0 3
        %793 = vperm.xlu0 %792, %v757
        %v794 = vpop.permute.xlu0 %793
        %797 = vset.pattern.permute.xlu0 3
        %798 = vperm.xlu0 %797, %v758
        %v799 = vpop.permute.xlu0 %798
        %802 = vset.pattern.permute.xlu0 3
        %803 = vperm.xlu0 %802, %v759
        %v804 = vpop.permute.xlu0 %803
        %807 = vset.pattern.permute.xlu0 3
        %808 = vperm.xlu0 %807, %v760
        %v809 = vpop.permute.xlu0 %808
        %v811 = vlaneseq
        %v812 = vshrl.u32 %v811, 7
        %v813 = vsub.s32 0, %v812
        %v814 = vrot.slane %v762, %v813
        %v815 = vmul.f32 %v774, %v814
        %v816 = vmul.f32 %v779, %v814
        %v817 = vmul.f32 %v784, %v814
        %v818 = vmul.f32 %v789, %v814
        %v819 = vmul.f32 %v794, %v814
        %v820 = vmul.f32 %v799, %v814
        %v821 = vmul.f32 %v804, %v814
        %v822 = vmul.f32 %v809, %v814
        %v823 = vadd.f32 %v770, %v815
        %v824 = vadd.f32 %v770, %v816
        %v825 = vadd.f32 %v770, %v817
        %v826 = vadd.f32 %v770, %v818
        %v827 = vadd.f32 %v770, %v819
        %v828 = vadd.f32 %v770, %v820
        %v829 = vadd.f32 %v770, %v821
        %v830 = vadd.f32 %v770, %v822
        %831 = vset.pattern.permute.xlu0 4
        %832 = vperm.xlu0 %831, %v753
        %v833 = vpop.permute.xlu0 %832
        %835 = vset.pattern.permute.xlu0 4
        %836 = vperm.xlu0 %835, %v754
        %v837 = vpop.permute.xlu0 %836
        %839 = vset.pattern.permute.xlu0 4
        %840 = vperm.xlu0 %839, %v755
        %v841 = vpop.permute.xlu0 %840
        %843 = vset.pattern.permute.xlu0 4
        %844 = vperm.xlu0 %843, %v756
        %v845 = vpop.permute.xlu0 %844
        %847 = vset.pattern.permute.xlu0 4
        %848 = vperm.xlu0 %847, %v757
        %v849 = vpop.permute.xlu0 %848
        %851 = vset.pattern.permute.xlu0 4
        %852 = vperm.xlu0 %851, %v758
        %v853 = vpop.permute.xlu0 %852
        %855 = vset.pattern.permute.xlu0 4
        %856 = vperm.xlu0 %855, %v759
        %v857 = vpop.permute.xlu0 %856
        %859 = vset.pattern.permute.xlu0 4
        %860 = vperm.xlu0 %859, %v760
        %v861 = vpop.permute.xlu0 %860
        %v863 = vlaneseq
        %v864 = vshrl.u32 %v863, 7
        %v865 = vsub.s32 1, %v864
        %v866 = vrot.slane %v762, %v865
        %v867 = vmul.f32 %v833, %v866
        %v868 = vmul.f32 %v837, %v866
        %v869 = vmul.f32 %v841, %v866
        %v870 = vmul.f32 %v845, %v866
        %v871 = vmul.f32 %v849, %v866
        %v872 = vmul.f32 %v853, %v866
        %v873 = vmul.f32 %v857, %v866
        %v874 = vmul.f32 %v861, %v866
        %v875 = vadd.f32 %v823, %v867
        %v876 = vadd.f32 %v824, %v868
        %v877 = vadd.f32 %v825, %v869
        %v878 = vadd.f32 %v826, %v870
        %v879 = vadd.f32 %v827, %v871
        %v880 = vadd.f32 %v828, %v872
        %v881 = vadd.f32 %v829, %v873
        %v882 = vadd.f32 %v830, %v874
        %883 = vset.pattern.permute.xlu0 5
        %884 = vperm.xlu0 %883, %v753
        %v885 = vpop.permute.xlu0 %884
        %887 = vset.pattern.permute.xlu0 5
        %888 = vperm.xlu0 %887, %v754
        %v889 = vpop.permute.xlu0 %888
        %891 = vset.pattern.permute.xlu0 5
        %892 = vperm.xlu0 %891, %v755
        %v893 = vpop.permute.xlu0 %892
        %895 = vset.pattern.permute.xlu0 5
        %896 = vperm.xlu0 %895, %v756
        %v897 = vpop.permute.xlu0 %896
        %899 = vset.pattern.permute.xlu0 5
        %900 = vperm.xlu0 %899, %v757
        %v901 = vpop.permute.xlu0 %900
        %903 = vset.pattern.permute.xlu0 5
        %904 = vperm.xlu0 %903, %v758
        %v905 = vpop.permute.xlu0 %904
        %907 = vset.pattern.permute.xlu0 5
        %908 = vperm.xlu0 %907, %v759
        %v909 = vpop.permute.xlu0 %908
        %911 = vset.pattern.permute.xlu0 5
        %912 = vperm.xlu0 %911, %v760
        %v913 = vpop.permute.xlu0 %912
        %v915 = vlaneseq
        %v916 = vshrl.u32 %v915, 7
        %v917 = vsub.s32 2, %v916
        %v918 = vrot.slane %v762, %v917
        %v919 = vmul.f32 %v885, %v918
        %v920 = vmul.f32 %v889, %v918
        %v921 = vmul.f32 %v893, %v918
        %v922 = vmul.f32 %v897, %v918
        %v923 = vmul.f32 %v901, %v918
        %v924 = vmul.f32 %v905, %v918
        %v925 = vmul.f32 %v909, %v918
        %v926 = vmul.f32 %v913, %v918
        %v927 = vadd.f32 %v875, %v919
        %v928 = vadd.f32 %v876, %v920
        %v929 = vadd.f32 %v877, %v921
        %v930 = vadd.f32 %v878, %v922
        %v931 = vadd.f32 %v879, %v923
        %v932 = vadd.f32 %v880, %v924
        %v933 = vadd.f32 %v881, %v925
        %v934 = vadd.f32 %v882, %v926
        %v935 = vld [vmem:[%s4] sm:$0xff]
        %v936 = vld [vmem:[%s4 + $0x8] sm:$0xff]
        %v937 = vld [vmem:[%s4 + $0x10] sm:$0x7]
        %v938 = vpack.c.bf16 %v936, %v935
        %v939 = vld [vmem:[%s5] sm:$0x1]
        %v940 = vld [vmem:[%s6] sm:$0x1]
        %v941 = vld [vmem:[%s7] sm:$0x1]
        %v942 = vpack.c.bf16 %v928, %v927
        %v943 = vpack.c.bf16 %v930, %v929
        %v944 = vpack.c.bf16 %v932, %v931
        %v945 = vpack.c.bf16 %v934, %v933
        %946 = vset.pattern.permute.xlu0 0
        %947 = vperm.xlu0 %946, %v753
        %v948 = vpop.permute.xlu0 %947
        %950 = vset.pattern.permute.xlu0 0
        %951 = vperm.xlu0 %950, %v754
        %v952 = vpop.permute.xlu0 %951
        %954 = vset.pattern.permute.xlu0 0
        %955 = vperm.xlu0 %954, %v755
        %v956 = vpop.permute.xlu0 %955
        %958 = vset.pattern.permute.xlu0 0
        %959 = vperm.xlu0 %958, %v756
        %v960 = vpop.permute.xlu0 %959
        %962 = vset.pattern.permute.xlu0 0
        %963 = vperm.xlu0 %962, %v757
        %v964 = vpop.permute.xlu0 %963
        %966 = vset.pattern.permute.xlu0 0
        %967 = vperm.xlu0 %966, %v758
        %v968 = vpop.permute.xlu0 %967
        %970 = vset.pattern.permute.xlu0 0
        %971 = vperm.xlu0 %970, %v759
        %v972 = vpop.permute.xlu0 %971
        %974 = vset.pattern.permute.xlu0 0
        %975 = vperm.xlu0 %974, %v760
        %v976 = vpop.permute.xlu0 %975
        %v978 = vlaneseq
        %v979 = vshrl.u32 %v978, 7
        %v980 = vsub.s32 0, %v979
        %v981 = vrot.slane %v937, %v980
        %v982 = vmul.f32 %v948, %v981
        %v983 = vmul.f32 %v952, %v981
        %v984 = vmul.f32 %v956, %v981
        %v985 = vmul.f32 %v960, %v981
        %v986 = vmul.f32 %v964, %v981
        %v987 = vmul.f32 %v968, %v981
        %v988 = vmul.f32 %v972, %v981
        %v989 = vmul.f32 %v976, %v981
        %vm990 = vcmask 130048
        %v992 = vsel %vm990, %v942, 0
        %v995 = vsel %vm990, %v943, 0
        %v998 = vsel %vm990, %v944, 0
        %v1001 = vsel %vm990, %v945, 0
        %1003 = vmatprep.subr.bf16.mxu0 0
        %1004 = vmatpush1.bf16.msra.mxu0 0
        %1005 = vmatprep.subr.bf16.mxu0 0
        %1006 = vmatpush1.bf16.msra.mxu0 0
        %1007 = vmatprep.subr.bf16.mxu0 0
        %1008 = vmatpush1.bf16.msra.mxu0 0
        %1009 = vmatprep.subr.bf16.mxu0 0
        %1010 = vmatpush1.bf16.msra.mxu0 0
        %1011 = vmatprep.subr.bf16.mxu0 0
        %1012 = vmatpush1.bf16.msra.mxu0 0
        %1013 = vmatprep.subr.bf16.mxu0 0
        %1014 = vmatpush1.bf16.msra.mxu0 0
        %1015 = vmatprep.subr.bf16.mxu0 0
        %1016 = vmatpush1.bf16.msra.mxu0 0
        %1017 = vmatprep.subr.bf16.mxu0 0
        %1018 = vmatpush1.bf16.msra.mxu0 %v938
        %1019 = vmatprep.subr.bf16.mxu0 0
        %1020 = vmatpush2.bf16.msra.mxu0 0
        %1021 = vmatprep.subr.bf16.mxu0 0
        %1022 = vmatpush2.bf16.msra.mxu0 0
        %1023 = vmatprep.subr.bf16.mxu0 0
        %1024 = vmatpush2.bf16.msra.mxu0 0
        %1025 = vmatprep.subr.bf16.mxu0 0
        %1026 = vmatpush2.bf16.msra.mxu0 0
        %1027 = vmatprep.subr.bf16.mxu0 0
        %1028 = vmatpush2.bf16.msra.mxu0 0
        %1029 = vmatprep.subr.bf16.mxu0 0
        %1030 = vmatpush2.bf16.msra.mxu0 0
        %1031 = vmatprep.subr.bf16.mxu0 0
        %1032 = vmatpush2.bf16.msra.mxu0 0
        %1033 = vmatprep.subr.bf16.mxu0 0
        %1034 = vmatpush2.bf16.msra.mxu0 0
        %1035 = vmatprep.mubr.bf16.mxu0 0
        %1036 = vmatmul.mubr.bf16.gmra.mxu0 %v992
        %v1037 = vpop.f32.mrf.mxu0
        %v1038 = vadd.f32 %v982, %v1037
        %v1039 = vpop.f32.mrf.mxu0
        %v1040 = vpop.f32.mrf.mxu0
        %v1041 = vadd.f32 %v983, %v1040
        %v1042 = vpop.f32.mrf.mxu0
        %1043 = vmatprep.mubr.bf16.mxu0 0
        %1044 = vmatmul.mubr.bf16.gmra.mxu0 %v995
        %v1045 = vpop.f32.mrf.mxu0
        %v1046 = vadd.f32 %v984, %v1045
        %v1047 = vpop.f32.mrf.mxu0
        %v1048 = vpop.f32.mrf.mxu0
        %v1049 = vadd.f32 %v985, %v1048
        %v1050 = vpop.f32.mrf.mxu0
        %1051 = vmatprep.mubr.bf16.mxu0 0
        %1052 = vmatmul.mubr.bf16.gmra.mxu0 %v998
        %v1053 = vpop.f32.mrf.mxu0
        %v1054 = vadd.f32 %v986, %v1053
        %v1055 = vpop.f32.mrf.mxu0
        %v1056 = vpop.f32.mrf.mxu0
        %v1057 = vadd.f32 %v987, %v1056
        %v1058 = vpop.f32.mrf.mxu0
        %1059 = vmatprep.mubr.bf16.mxu0 0
        %1060 = vmatmul.mubr.bf16.gmra.mxu0 %v1001
        %v1061 = vpop.f32.mrf.mxu0
        %v1062 = vadd.f32 %v988, %v1061
        %v1063 = vpop.f32.mrf.mxu0
        %v1064 = vpop.f32.mrf.mxu0
        %v1065 = vadd.f32 %v989, %v1064
        %v1066 = vpop.f32.mrf.mxu0
        %1067 = vdwg.mxu0
        %1068 = vset.pattern.permute.xlu0 1
        %1069 = vperm.xlu0 %1068, %v753
        %v1070 = vpop.permute.xlu0 %1069
        %1072 = vset.pattern.permute.xlu0 1
        %1073 = vperm.xlu0 %1072, %v754
        %v1074 = vpop.permute.xlu0 %1073
        %1076 = vset.pattern.permute.xlu0 1
        %1077 = vperm.xlu0 %1076, %v755
        %v1078 = vpop.permute.xlu0 %1077
        %1080 = vset.pattern.permute.xlu0 1
        %1081 = vperm.xlu0 %1080, %v756
        %v1082 = vpop.permute.xlu0 %1081
        %1084 = vset.pattern.permute.xlu0 1
        %1085 = vperm.xlu0 %1084, %v757
        %v1086 = vpop.permute.xlu0 %1085
        %1088 = vset.pattern.permute.xlu0 1
        %1089 = vperm.xlu0 %1088, %v758
        %v1090 = vpop.permute.xlu0 %1089
        %1092 = vset.pattern.permute.xlu0 1
        %1093 = vperm.xlu0 %1092, %v759
        %v1094 = vpop.permute.xlu0 %1093
        %1096 = vset.pattern.permute.xlu0 1
        %1097 = vperm.xlu0 %1096, %v760
        %v1098 = vpop.permute.xlu0 %1097
        %v1100 = vlaneseq
        %v1101 = vshrl.u32 %v1100, 7
        %v1102 = vsub.s32 1, %v1101
        %v1103 = vrot.slane %v937, %v1102
        %v1104 = vmul.f32 %v1070, %v1103
        %v1105 = vmul.f32 %v1074, %v1103
        %v1106 = vmul.f32 %v1078, %v1103
        %v1107 = vmul.f32 %v1082, %v1103
        %v1108 = vmul.f32 %v1086, %v1103
        %v1109 = vmul.f32 %v1090, %v1103
        %v1110 = vmul.f32 %v1094, %v1103
        %v1111 = vmul.f32 %v1098, %v1103
        %v1112 = vadd.f32 %v1038, %v1104
        %v1113 = vadd.f32 %v1041, %v1105
        %v1114 = vadd.f32 %v1046, %v1106
        %v1115 = vadd.f32 %v1049, %v1107
        %v1116 = vadd.f32 %v1054, %v1108
        %v1117 = vadd.f32 %v1057, %v1109
        %v1118 = vadd.f32 %v1062, %v1110
        %v1119 = vadd.f32 %v1065, %v1111
        %1120 = vset.pattern.permute.xlu0 2
        %1121 = vperm.xlu0 %1120, %v753
        %v1122 = vpop.permute.xlu0 %1121
        %1124 = vset.pattern.permute.xlu0 2
        %1125 = vperm.xlu0 %1124, %v754
        %v1126 = vpop.permute.xlu0 %1125
        %1128 = vset.pattern.permute.xlu0 2
        %1129 = vperm.xlu0 %1128, %v755
        %v1130 = vpop.permute.xlu0 %1129
        %1132 = vset.pattern.permute.xlu0 2
        %1133 = vperm.xlu0 %1132, %v756
        %v1134 = vpop.permute.xlu0 %1133
        %1136 = vset.pattern.permute.xlu0 2
        %1137 = vperm.xlu0 %1136, %v757
        %v1138 = vpop.permute.xlu0 %1137
        %1140 = vset.pattern.permute.xlu0 2
        %1141 = vperm.xlu0 %1140, %v758
        %v1142 = vpop.permute.xlu0 %1141
        %1144 = vset.pattern.permute.xlu0 2
        %1145 = vperm.xlu0 %1144, %v759
        %v1146 = vpop.permute.xlu0 %1145
        %1148 = vset.pattern.permute.xlu0 2
        %1149 = vperm.xlu0 %1148, %v760
        %v1150 = vpop.permute.xlu0 %1149
        %v1152 = vlaneseq
        %v1153 = vshrl.u32 %v1152, 7
        %v1154 = vsub.s32 2, %v1153
        %v1155 = vrot.slane %v937, %v1154
        %v1156 = vmul.f32 %v1122, %v1155
        %v1157 = vmul.f32 %v1126, %v1155
        %v1158 = vmul.f32 %v1130, %v1155
        %v1159 = vmul.f32 %v1134, %v1155
        %v1160 = vmul.f32 %v1138, %v1155
        %v1161 = vmul.f32 %v1142, %v1155
        %v1162 = vmul.f32 %v1146, %v1155
        %v1163 = vmul.f32 %v1150, %v1155
        %v1164 = vadd.f32 %v1112, %v1156
        %v1165 = vadd.f32 %v1113, %v1157
        %v1166 = vadd.f32 %v1114, %v1158
        %v1167 = vadd.f32 %v1115, %v1159
        %v1168 = vadd.f32 %v1116, %v1160
        %v1169 = vadd.f32 %v1117, %v1161
        %v1170 = vadd.f32 %v1118, %v1162
        %v1171 = vadd.f32 %v1119, %v1163
        %v1172 = vlaneseq
        %v1173 = vshrl.u32 %v1172, 7
        %v1174 = vadd.s32 %v1173, 8
        %v1175 = vadd.s32 %v1173, 16
        %v1176 = vadd.s32 %v1173, 24
        %v1177 = vlaneseq
        %v1178 = vand.u32 %v1177, 127
        %v1179 = vmul.u32 %v1173, 2
        %v1180 = vmul.u32 %v1174, 2
        %v1181 = vmul.u32 %v1175, 2
        %v1182 = vmul.u32 %v1176, 2
        %vm1183 = vcmp.eq.s32.totalorder %v1178, %v1179
        %vm1184 = vcmp.eq.s32.totalorder %v1178, %v1180
        %vm1185 = vcmp.eq.s32.totalorder %v1178, %v1181
        %vm1186 = vcmp.eq.s32.totalorder %v1178, %v1182
        %v1187 = vsel %vm1183, 1, 0
        %v1188 = vsel %vm1184, 1, 0
        %v1189 = vsel %vm1185, 1, 0
        %v1190 = vsel %vm1186, 1, 0
        %v1191 = vcvt.s32.f32 %v1187
        %v1192 = vcvt.s32.f32 %v1188
        %v1193 = vcvt.s32.f32 %v1189
        %v1194 = vcvt.s32.f32 %v1190
        %vm1195 = vcmask 523264
        %v1197 = vsel %vm1195, %v1191, 0
        %v1200 = vsel %vm1195, %v1192, 0
        %v1203 = vsel %vm1195, %v1193, 0
        %v1206 = vsel %vm1195, %v1194, 0
        %1208 = vmatprep.subr.mxu0 0.0
        %1209 = vmatpush1.msra.mxu0 0.0
        %1210 = vmatprep.subr.mxu0 0.0
        %1211 = vmatpush1.msra.mxu0 0.0
        %1212 = vmatprep.subr.mxu0 0.0
        %1213 = vmatpush1.msra.mxu0 0.0
        %1214 = vmatprep.subr.mxu0 0.0
        %1215 = vmatpush1.msra.mxu0 0.0
        %1216 = vmatprep.subr.mxu0 0.0
        %1217 = vmatpush1.msra.mxu0 0.0
        %1218 = vmatprep.subr.mxu0 0.0
        %1219 = vmatpush1.msra.mxu0 0.0
        %1220 = vmatprep.subr.mxu0 0.0
        %1221 = vmatpush1.msra.mxu0 0.0
        %1222 = vmatprep.subr.mxu0 0.0
        %1223 = vmatpush1.msra.mxu0 0.0
        %1224 = vmatprep.subr.mxu0 0.0
        %1225 = vmatpush1.msra.mxu0 %v760
        %1226 = vmatprep.subr.mxu0 0.0
        %1227 = vmatpush1.msra.mxu0 %v759
        %1228 = vmatprep.subr.mxu0 0.0
        %1229 = vmatpush1.msra.mxu0 %v758
        %1230 = vmatprep.subr.mxu0 0.0
        %1231 = vmatpush1.msra.mxu0 %v757
        %1232 = vmatprep.subr.mxu0 0.0
        %1233 = vmatpush1.msra.mxu0 %v756
        %1234 = vmatprep.subr.mxu0 0.0
        %1235 = vmatpush1.msra.mxu0 %v755
        %1236 = vmatprep.subr.mxu0 0.0
        %1237 = vmatpush1.msra.mxu0 %v754
        %1238 = vmatprep.subr.mxu0 0.0
        %1239 = vmatpush1.msra.mxu0 %v753
        %1240 = vmatprep.subr.mxu0 0.0
        %1241 = vmatpush2.msra.mxu0 0.0
        %1242 = vmatprep.subr.mxu0 0.0
        %1243 = vmatpush2.msra.mxu0 0.0
        %1244 = vmatprep.subr.mxu0 0.0
        %1245 = vmatpush2.msra.mxu0 0.0
        %1246 = vmatprep.subr.mxu0 0.0
        %1247 = vmatpush2.msra.mxu0 0.0
        %1248 = vmatprep.subr.mxu0 0.0
        %1249 = vmatpush2.msra.mxu0 0.0
        %1250 = vmatprep.subr.mxu0 0.0
        %1251 = vmatpush2.msra.mxu0 0.0
        %1252 = vmatprep.subr.mxu0 0.0
        %1253 = vmatpush2.msra.mxu0 0.0
        %1254 = vmatprep.subr.mxu0 0.0
        %1255 = vmatpush2.msra.mxu0 0.0
        %1256 = vmatprep.subr.mxu0 0.0
        %1257 = vmatpush2.msra.mxu0 0.0
        %1258 = vmatprep.subr.mxu0 0.0
        %1259 = vmatpush2.msra.mxu0 0.0
        %1260 = vmatprep.subr.mxu0 0.0
        %1261 = vmatpush2.msra.mxu0 0.0
        %1262 = vmatprep.subr.mxu0 0.0
        %1263 = vmatpush2.msra.mxu0 0.0
        %1264 = vmatprep.subr.mxu0 0.0
        %1265 = vmatpush2.msra.mxu0 0.0
        %1266 = vmatprep.subr.mxu0 0.0
        %1267 = vmatpush2.msra.mxu0 0.0
        %1268 = vmatprep.subr.mxu0 0.0
        %1269 = vmatpush2.msra.mxu0 0.0
        %1270 = vmatprep.subr.mxu0 0.0
        %1271 = vmatpush2.msra.mxu0 0.0
        %1272 = vmatprep.mubr.f32.mxu0 0.0
        %1273 = vmatmul.mubr.f32.gmra.mxu0 %v1197
        %v1274 = vpop.f32.mrf.mxu0
        %v1275 = vadd.f32 0.0, %v1274
        %v1276 = vpop.f32.mrf.mxu0
        %1277 = vmatprep.mubr.f32.mxu0 0.0
        %1278 = vmatmul.mubr.f32.gmra.mxu0 %v1200
        %v1279 = vpop.f32.mrf.mxu0
        %v1280 = vadd.f32 0.0, %v1279
        %v1281 = vpop.f32.mrf.mxu0
        %1282 = vmatprep.mubr.f32.mxu0 0.0
        %1283 = vmatmul.mubr.f32.gmra.mxu0 %v1203
        %v1284 = vpop.f32.mrf.mxu0
        %v1285 = vadd.f32 0.0, %v1284
        %v1286 = vpop.f32.mrf.mxu0
        %1287 = vmatprep.mubr.f32.mxu0 0.0
        %1288 = vmatmul.mubr.f32.gmra.mxu0 %v1206
        %v1289 = vpop.f32.mrf.mxu0
        %v1290 = vadd.f32 0.0, %v1289
        %v1291 = vpop.f32.mrf.mxu0
        %1292 = vdwg.mxu0
        %v1293 = vadd.s32 %v1173, 32
        %v1294 = vadd.s32 %v1173, 40
        %v1295 = vadd.s32 %v1173, 48
        %v1296 = vadd.s32 %v1173, 56
        %v1297 = vmul.u32 %v1178, 2
        %vm1298 = vcmp.eq.s32.totalorder %v1173, %v1297
        %vm1299 = vcmp.eq.s32.totalorder %v1174, %v1297
        %vm1300 = vcmp.eq.s32.totalorder %v1175, %v1297
        %vm1301 = vcmp.eq.s32.totalorder %v1176, %v1297
        %vm1302 = vcmp.eq.s32.totalorder %v1293, %v1297
        %vm1303 = vcmp.eq.s32.totalorder %v1294, %v1297
        %vm1304 = vcmp.eq.s32.totalorder %v1295, %v1297
        %vm1305 = vcmp.eq.s32.totalorder %v1296, %v1297
        %v1306 = vsel %vm1298, 1, 0
        %v1307 = vsel %vm1299, 1, 0
        %v1308 = vsel %vm1300, 1, 0
        %v1309 = vsel %vm1301, 1, 0
        %v1310 = vsel %vm1302, 1, 0
        %v1311 = vsel %vm1303, 1, 0
        %v1312 = vsel %vm1304, 1, 0
        %v1313 = vsel %vm1305, 1, 0
        %v1314 = vcvt.s32.f32 %v1306
        %v1315 = vcvt.s32.f32 %v1307
        %v1316 = vcvt.s32.f32 %v1308
        %v1317 = vcvt.s32.f32 %v1309
        %v1318 = vcvt.s32.f32 %v1310
        %v1319 = vcvt.s32.f32 %v1311
        %v1320 = vcvt.s32.f32 %v1312
        %v1321 = vcvt.s32.f32 %v1313
        %v1323 = vsel %vm1195, %v761, 0
        %1325 = vmatprep.subr.mxu0 0.0
        %1326 = vmatpush1.msra.mxu0 0.0
        %1327 = vmatprep.subr.mxu0 0.0
        %1328 = vmatpush1.msra.mxu0 0.0
        %1329 = vmatprep.subr.mxu0 0.0
        %1330 = vmatpush1.msra.mxu0 0.0
        %1331 = vmatprep.subr.mxu0 0.0
        %1332 = vmatpush1.msra.mxu0 0.0
        %1333 = vmatprep.subr.mxu0 0.0
        %1334 = vmatpush1.msra.mxu0 0.0
        %1335 = vmatprep.subr.mxu0 0.0
        %1336 = vmatpush1.msra.mxu0 0.0
        %1337 = vmatprep.subr.mxu0 0.0
        %1338 = vmatpush1.msra.mxu0 0.0
        %1339 = vmatprep.subr.mxu0 0.0
        %1340 = vmatpush1.msra.mxu0 0.0
        %1341 = vmatprep.subr.mxu0 0.0
        %1342 = vmatpush1.msra.mxu0 %v1321
        %1343 = vmatprep.subr.mxu0 0.0
        %1344 = vmatpush1.msra.mxu0 %v1320
        %1345 = vmatprep.subr.mxu0 0.0
        %1346 = vmatpush1.msra.mxu0 %v1319
        %1347 = vmatprep.subr.mxu0 0.0
        %1348 = vmatpush1.msra.mxu0 %v1318
        %1349 = vmatprep.subr.mxu0 0.0
        %1350 = vmatpush1.msra.mxu0 %v1317
        %1351 = vmatprep.subr.mxu0 0.0
        %1352 = vmatpush1.msra.mxu0 %v1316
        %1353 = vmatprep.subr.mxu0 0.0
        %1354 = vmatpush1.msra.mxu0 %v1315
        %1355 = vmatprep.subr.mxu0 0.0
        %1356 = vmatpush1.msra.mxu0 %v1314
        %1357 = vmatprep.subr.mxu0 0.0
        %1358 = vmatpush2.msra.mxu0 0.0
        %1359 = vmatprep.subr.mxu0 0.0
        %1360 = vmatpush2.msra.mxu0 0.0
        %1361 = vmatprep.subr.mxu0 0.0
        %1362 = vmatpush2.msra.mxu0 0.0
        %1363 = vmatprep.subr.mxu0 0.0
        %1364 = vmatpush2.msra.mxu0 0.0
        %1365 = vmatprep.subr.mxu0 0.0
        %1366 = vmatpush2.msra.mxu0 0.0
        %1367 = vmatprep.subr.mxu0 0.0
        %1368 = vmatpush2.msra.mxu0 0.0
        %1369 = vmatprep.subr.mxu0 0.0
        %1370 = vmatpush2.msra.mxu0 0.0
        %1371 = vmatprep.subr.mxu0 0.0
        %1372 = vmatpush2.msra.mxu0 0.0
        %1373 = vmatprep.subr.mxu0 0.0
        %1374 = vmatpush2.msra.mxu0 0.0
        %1375 = vmatprep.subr.mxu0 0.0
        %1376 = vmatpush2.msra.mxu0 0.0
        %1377 = vmatprep.subr.mxu0 0.0
        %1378 = vmatpush2.msra.mxu0 0.0
        %1379 = vmatprep.subr.mxu0 0.0
        %1380 = vmatpush2.msra.mxu0 0.0
        %1381 = vmatprep.subr.mxu0 0.0
        %1382 = vmatpush2.msra.mxu0 0.0
        %1383 = vmatprep.subr.mxu0 0.0
        %1384 = vmatpush2.msra.mxu0 0.0
        %1385 = vmatprep.subr.mxu0 0.0
        %1386 = vmatpush2.msra.mxu0 0.0
        %1387 = vmatprep.subr.mxu0 0.0
        %1388 = vmatpush2.msra.mxu0 0.0
        %1389 = vmatprep.mubr.f32.mxu0 0.0
        %1390 = vmatmul.mubr.f32.gmra.mxu0 %v1323
        %v1391 = vpop.f32.mrf.mxu0
        %v1392 = vadd.f32 0.0, %v1391
        %v1393 = vpop.f32.mrf.mxu0
        %1394 = vdwg.mxu0
        %1396 = vset.pattern.permute.xlu0 0
        %1397 = vperm.xlu0 %1396, %v1275
        %v1398 = vpop.permute.xlu0 %1397
        %1401 = vset.pattern.permute.xlu0 0
        %1402 = vperm.xlu0 %1401, %v1280
        %v1403 = vpop.permute.xlu0 %1402
        %1406 = vset.pattern.permute.xlu0 0
        %1407 = vperm.xlu0 %1406, %v1285
        %v1408 = vpop.permute.xlu0 %1407
        %1411 = vset.pattern.permute.xlu0 0
        %1412 = vperm.xlu0 %1411, %v1290
        %v1413 = vpop.permute.xlu0 %1412
        %v1415 = vlaneseq
        %v1416 = vshrl.u32 %v1415, 7
        %v1417 = vsub.s32 0, %v1416
        %v1418 = vrot.slane %v761, %v1417
        %v1419 = vsub.f32 %v1398, %v1418
        %v1420 = vsub.f32 %v1403, %v1418
        %v1421 = vsub.f32 %v1408, %v1418
        %v1422 = vsub.f32 %v1413, %v1418
        %v1423 = vmul.f32 %v1419, %v1419
        %v1424 = vmul.f32 %v1420, %v1420
        %v1425 = vmul.f32 %v1421, %v1421
        %v1426 = vmul.f32 %v1422, %v1422
        %v1427 = vadd.f32 %v1423, 0.0
        %v1428 = vadd.f32 %v1424, 0.0
        %v1429 = vadd.f32 %v1425, 0.0
        %v1430 = vadd.f32 %v1426, 0.0
        %1431 = vset.pattern.permute.xlu0 1
        %1432 = vperm.xlu0 %1431, %v1275
        %v1433 = vpop.permute.xlu0 %1432
        %1435 = vset.pattern.permute.xlu0 1
        %1436 = vperm.xlu0 %1435, %v1280
        %v1437 = vpop.permute.xlu0 %1436
        %1439 = vset.pattern.permute.xlu0 1
        %1440 = vperm.xlu0 %1439, %v1285
        %v1441 = vpop.permute.xlu0 %1440
        %1443 = vset.pattern.permute.xlu0 1
        %1444 = vperm.xlu0 %1443, %v1290
        %v1445 = vpop.permute.xlu0 %1444
        %v1447 = vlaneseq
        %v1448 = vshrl.u32 %v1447, 7
        %v1449 = vsub.s32 1, %v1448
        %v1450 = vrot.slane %v761, %v1449
        %v1451 = vsub.f32 %v1433, %v1450
        %v1452 = vsub.f32 %v1437, %v1450
        %v1453 = vsub.f32 %v1441, %v1450
        %v1454 = vsub.f32 %v1445, %v1450
        %v1455 = vmul.f32 %v1451, %v1451
        %v1456 = vmul.f32 %v1452, %v1452
        %v1457 = vmul.f32 %v1453, %v1453
        %v1458 = vmul.f32 %v1454, %v1454
        %v1459 = vadd.f32 %v1427, %v1455
        %v1460 = vadd.f32 %v1428, %v1456
        %v1461 = vadd.f32 %v1429, %v1457
        %v1462 = vadd.f32 %v1430, %v1458
        %1463 = vset.pattern.permute.xlu0 2
        %1464 = vperm.xlu0 %1463, %v1275
        %v1465 = vpop.permute.xlu0 %1464
        %1467 = vset.pattern.permute.xlu0 2
        %1468 = vperm.xlu0 %1467, %v1280
        %v1469 = vpop.permute.xlu0 %1468
        %1471 = vset.pattern.permute.xlu0 2
        %1472 = vperm.xlu0 %1471, %v1285
        %v1473 = vpop.permute.xlu0 %1472
        %1475 = vset.pattern.permute.xlu0 2
        %1476 = vperm.xlu0 %1475, %v1290
        %v1477 = vpop.permute.xlu0 %1476
        %v1479 = vlaneseq
        %v1480 = vshrl.u32 %v1479, 7
        %v1481 = vsub.s32 2, %v1480
        %v1482 = vrot.slane %v761, %v1481
        %v1483 = vsub.f32 %v1465, %v1482
        %v1484 = vsub.f32 %v1469, %v1482
        %v1485 = vsub.f32 %v1473, %v1482
        %v1486 = vsub.f32 %v1477, %v1482
        %v1487 = vmul.f32 %v1483, %v1483
        %v1488 = vmul.f32 %v1484, %v1484
        %v1489 = vmul.f32 %v1485, %v1485
        %v1490 = vmul.f32 %v1486, %v1486
        %v1491 = vadd.f32 %v1459, %v1487
        %v1492 = vadd.f32 %v1460, %v1488
        %v1493 = vadd.f32 %v1461, %v1489
        %v1494 = vadd.f32 %v1462, %v1490
        %v1495 = vcvt.s32.f32 %v1178
        %v1496 = vpack.c.bf16 %v1192, %v1191
        %v1497 = vpack.c.bf16 %v1194, %v1193
        %v1498 = vsel %vm1195, %v1491, inf
        %1499 = vmin.xlane.f32.xlu0 %v1498
        %v1500 = vpop.xlane.xlu0 %1499
        %v1501 = vsel %vm1195, %v1492, inf
        %1502 = vmin.xlane.f32.xlu0 %v1501
        %v1503 = vpop.xlane.xlu0 %1502
        %v1504 = vsel %vm1195, %v1493, inf
        %1505 = vmin.xlane.f32.xlu0 %v1504
        %v1506 = vpop.xlane.xlu0 %1505
        %v1507 = vsel %vm1195, %v1494, inf
        %1508 = vmin.xlane.f32.xlu0 %v1507
        %v1509 = vpop.xlane.xlu0 %1508
        %vm1510 = vcmp.le.f32.partialorder %v1491, %v1500
        %vm1511 = vcmp.le.f32.partialorder %v1492, %v1503
        %vm1512 = vcmp.le.f32.partialorder %v1493, %v1506
        %vm1513 = vcmp.le.f32.partialorder %v1494, %v1509
        %v1514 = vsel %vm1510, %v1495, 64.0
        %v1515 = vsel %vm1511, %v1495, 64.0
        %v1516 = vsel %vm1512, %v1495, 64.0
        %v1517 = vsel %vm1513, %v1495, 64.0
        %v1518 = vsel %vm1195, %v1514, inf
        %1519 = vmin.xlane.f32.xlu0 %v1518
        %v1520 = vpop.xlane.xlu0 %1519
        %v1521 = vsel %vm1195, %v1515, inf
        %1522 = vmin.xlane.f32.xlu0 %v1521
        %v1523 = vpop.xlane.xlu0 %1522
        %v1524 = vsel %vm1195, %v1516, inf
        %1525 = vmin.xlane.f32.xlu0 %v1524
        %v1526 = vpop.xlane.xlu0 %1525
        %v1527 = vsel %vm1195, %v1517, inf
        %1528 = vmin.xlane.f32.xlu0 %v1527
        %v1529 = vpop.xlane.xlu0 %1528
        %vm1530 = vcmp.eq.f32.partialorder %v1495, %v1520
        %vm1531 = vcmp.eq.f32.partialorder %v1495, %v1523
        %vm1532 = vcmp.eq.f32.partialorder %v1495, %v1526
        %vm1533 = vcmp.eq.f32.partialorder %v1495, %v1529
        %v1534 = vsel %vm1530, 1, 0
        %v1535 = vsel %vm1531, 1, 0
        %v1536 = vsel %vm1532, 1, 0
        %v1537 = vsel %vm1533, 1, 0
        %v1538 = vcvt.s32.f32 %v1534
        %v1539 = vcvt.s32.f32 %v1535
        %v1540 = vcvt.s32.f32 %v1536
        %v1541 = vcvt.s32.f32 %v1537
        %v1542 = vpack.c.bf16 %v1539, %v1538
        %v1543 = vpack.c.bf16 %v1541, %v1540
        %v1544 = vsel %vm1530, 1e+30, %v1491
        %v1545 = vsel %vm1531, 1e+30, %v1492
        %v1546 = vsel %vm1532, 1e+30, %v1493
        %v1547 = vsel %vm1533, 1e+30, %v1494
        %v1548 = vsel %vm1195, %v1544, inf
        %1549 = vmin.xlane.f32.xlu0 %v1548
        %v1550 = vpop.xlane.xlu0 %1549
        %v1551 = vsel %vm1195, %v1545, inf
        %1552 = vmin.xlane.f32.xlu0 %v1551
        %v1553 = vpop.xlane.xlu0 %1552
        %v1554 = vsel %vm1195, %v1546, inf
        %1555 = vmin.xlane.f32.xlu0 %v1554
        %v1556 = vpop.xlane.xlu0 %1555
        %v1557 = vsel %vm1195, %v1547, inf
        %1558 = vmin.xlane.f32.xlu0 %v1557
        %v1559 = vpop.xlane.xlu0 %1558
        %vm1560 = vcmp.le.f32.partialorder %v1544, %v1550
        %vm1561 = vcmp.le.f32.partialorder %v1545, %v1553
        %vm1562 = vcmp.le.f32.partialorder %v1546, %v1556
        %vm1563 = vcmp.le.f32.partialorder %v1547, %v1559
        %v1564 = vsel %vm1560, %v1495, 64.0
        %v1565 = vsel %vm1561, %v1495, 64.0
        %v1566 = vsel %vm1562, %v1495, 64.0
        %v1567 = vsel %vm1563, %v1495, 64.0
        %v1568 = vsel %vm1195, %v1564, inf
        %1569 = vmin.xlane.f32.xlu0 %v1568
        %v1570 = vpop.xlane.xlu0 %1569
        %v1571 = vsel %vm1195, %v1565, inf
        %1572 = vmin.xlane.f32.xlu0 %v1571
        %v1573 = vpop.xlane.xlu0 %1572
        %v1574 = vsel %vm1195, %v1566, inf
        %1575 = vmin.xlane.f32.xlu0 %v1574
        %v1576 = vpop.xlane.xlu0 %1575
        %v1577 = vsel %vm1195, %v1567, inf
        %1578 = vmin.xlane.f32.xlu0 %v1577
        %v1579 = vpop.xlane.xlu0 %1578
        %vm1580 = vcmp.eq.f32.partialorder %v1495, %v1570
        %vm1581 = vcmp.eq.f32.partialorder %v1495, %v1573
        %vm1582 = vcmp.eq.f32.partialorder %v1495, %v1576
        %vm1583 = vcmp.eq.f32.partialorder %v1495, %v1579
        %v1584 = vsel %vm1580, 1, 0
        %v1585 = vsel %vm1581, 1, 0
        %v1586 = vsel %vm1582, 1, 0
        %v1587 = vsel %vm1583, 1, 0
        %v1588 = vcvt.s32.f32 %v1584
        %v1589 = vcvt.s32.f32 %v1585
        %v1590 = vcvt.s32.f32 %v1586
        %v1591 = vcvt.s32.f32 %v1587
        %v1592 = vpack.c.bf16 %v1589, %v1588
        %v1593 = vpack.c.bf16 %v1591, %v1590
        %v1594 = vsel %vm1580, 1e+30, %v1544
        %v1595 = vsel %vm1581, 1e+30, %v1545
        %v1596 = vsel %vm1582, 1e+30, %v1546
        %v1597 = vsel %vm1583, 1e+30, %v1547
        %v1598 = vsel %vm1195, %v1594, inf
        %1599 = vmin.xlane.f32.xlu0 %v1598
        %v1600 = vpop.xlane.xlu0 %1599
        %v1601 = vsel %vm1195, %v1595, inf
        %1602 = vmin.xlane.f32.xlu0 %v1601
        %v1603 = vpop.xlane.xlu0 %1602
        %v1604 = vsel %vm1195, %v1596, inf
        %1605 = vmin.xlane.f32.xlu0 %v1604
        %v1606 = vpop.xlane.xlu0 %1605
        %v1607 = vsel %vm1195, %v1597, inf
        %1608 = vmin.xlane.f32.xlu0 %v1607
        %v1609 = vpop.xlane.xlu0 %1608
        %vm1610 = vcmp.le.f32.partialorder %v1594, %v1600
        %vm1611 = vcmp.le.f32.partialorder %v1595, %v1603
        %vm1612 = vcmp.le.f32.partialorder %v1596, %v1606
        %vm1613 = vcmp.le.f32.partialorder %v1597, %v1609
        %v1614 = vsel %vm1610, %v1495, 64.0
        %v1615 = vsel %vm1611, %v1495, 64.0
        %v1616 = vsel %vm1612, %v1495, 64.0
        %v1617 = vsel %vm1613, %v1495, 64.0
        %v1618 = vsel %vm1195, %v1614, inf
        %1619 = vmin.xlane.f32.xlu0 %v1618
        %v1620 = vpop.xlane.xlu0 %1619
        %v1621 = vsel %vm1195, %v1615, inf
        %1622 = vmin.xlane.f32.xlu0 %v1621
        %v1623 = vpop.xlane.xlu0 %1622
        %v1624 = vsel %vm1195, %v1616, inf
        %1625 = vmin.xlane.f32.xlu0 %v1624
        %v1626 = vpop.xlane.xlu0 %1625
        %v1627 = vsel %vm1195, %v1617, inf
        %1628 = vmin.xlane.f32.xlu0 %v1627
        %v1629 = vpop.xlane.xlu0 %1628
        %vm1630 = vcmp.eq.f32.partialorder %v1495, %v1620
        %vm1631 = vcmp.eq.f32.partialorder %v1495, %v1623
        %vm1632 = vcmp.eq.f32.partialorder %v1495, %v1626
        %vm1633 = vcmp.eq.f32.partialorder %v1495, %v1629
        %v1634 = vsel %vm1630, 1, 0
        %v1635 = vsel %vm1631, 1, 0
        %v1636 = vsel %vm1632, 1, 0
        %v1637 = vsel %vm1633, 1, 0
        %v1638 = vcvt.s32.f32 %v1634
        %v1639 = vcvt.s32.f32 %v1635
        %v1640 = vcvt.s32.f32 %v1636
        %v1641 = vcvt.s32.f32 %v1637
        %v1642 = vpack.c.bf16 %v1639, %v1638
        %v1643 = vpack.c.bf16 %v1641, %v1640
        %v1644 = vsel %vm1630, 1e+30, %v1594
        %v1645 = vsel %vm1631, 1e+30, %v1595
        %v1646 = vsel %vm1632, 1e+30, %v1596
        %v1647 = vsel %vm1633, 1e+30, %v1597
        %v1648 = vsel %vm1195, %v1644, inf
        %1649 = vmin.xlane.f32.xlu0 %v1648
        %v1650 = vpop.xlane.xlu0 %1649
        %v1651 = vsel %vm1195, %v1645, inf
        %1652 = vmin.xlane.f32.xlu0 %v1651
        %v1653 = vpop.xlane.xlu0 %1652
        %v1654 = vsel %vm1195, %v1646, inf
        %1655 = vmin.xlane.f32.xlu0 %v1654
        %v1656 = vpop.xlane.xlu0 %1655
        %v1657 = vsel %vm1195, %v1647, inf
        %1658 = vmin.xlane.f32.xlu0 %v1657
        %v1659 = vpop.xlane.xlu0 %1658
        %vm1660 = vcmp.le.f32.partialorder %v1644, %v1650
        %vm1661 = vcmp.le.f32.partialorder %v1645, %v1653
        %vm1662 = vcmp.le.f32.partialorder %v1646, %v1656
        %vm1663 = vcmp.le.f32.partialorder %v1647, %v1659
        %v1664 = vsel %vm1660, %v1495, 64.0
        %v1665 = vsel %vm1661, %v1495, 64.0
        %v1666 = vsel %vm1662, %v1495, 64.0
        %v1667 = vsel %vm1663, %v1495, 64.0
        %v1668 = vsel %vm1195, %v1664, inf
        %1669 = vmin.xlane.f32.xlu0 %v1668
        %v1670 = vpop.xlane.xlu0 %1669
        %v1671 = vsel %vm1195, %v1665, inf
        %1672 = vmin.xlane.f32.xlu0 %v1671
        %v1673 = vpop.xlane.xlu0 %1672
        %v1674 = vsel %vm1195, %v1666, inf
        %1675 = vmin.xlane.f32.xlu0 %v1674
        %v1676 = vpop.xlane.xlu0 %1675
        %v1677 = vsel %vm1195, %v1667, inf
        %1678 = vmin.xlane.f32.xlu0 %v1677
        %v1679 = vpop.xlane.xlu0 %1678
        %vm1680 = vcmp.eq.f32.partialorder %v1495, %v1670
        %vm1681 = vcmp.eq.f32.partialorder %v1495, %v1673
        %vm1682 = vcmp.eq.f32.partialorder %v1495, %v1676
        %vm1683 = vcmp.eq.f32.partialorder %v1495, %v1679
        %v1684 = vsel %vm1680, 1, 0
        %v1685 = vsel %vm1681, 1, 0
        %v1686 = vsel %vm1682, 1, 0
        %v1687 = vsel %vm1683, 1, 0
        %v1688 = vcvt.s32.f32 %v1684
        %v1689 = vcvt.s32.f32 %v1685
        %v1690 = vcvt.s32.f32 %v1686
        %v1691 = vcvt.s32.f32 %v1687
        %v1692 = vpack.c.bf16 %v1689, %v1688
        %v1693 = vpack.c.bf16 %v1691, %v1690
        %v1694 = vpack.c.bf16 %v1165, %v1164
        %v1695 = vpack.c.bf16 %v1167, %v1166
        %v1696 = vpack.c.bf16 %v1169, %v1168
        %v1697 = vpack.c.bf16 %v1171, %v1170
        %v1699 = vsel %vm1195, %v1496, 0
        %v1702 = vsel %vm1195, %v1497, 0
        %v1705 = vsel %vm1195, %v1542, 0
        %v1708 = vsel %vm1195, %v1543, 0
        %v1711 = vsel %vm1195, %v1592, 0
        %v1714 = vsel %vm1195, %v1593, 0
        %v1717 = vsel %vm1195, %v1642, 0
        %v1720 = vsel %vm1195, %v1643, 0
        %v1723 = vsel %vm1195, %v1692, 0
        %v1726 = vsel %vm1195, %v1693, 0
        %1728 = vmatprep.subr.bf16.mxu0 0
        %1729 = vmatpush1.bf16.msra.mxu0 0
        %1730 = vmatprep.subr.bf16.mxu0 0
        %1731 = vmatpush1.bf16.msra.mxu0 0
        %1732 = vmatprep.subr.bf16.mxu0 0
        %1733 = vmatpush1.bf16.msra.mxu0 0
        %1734 = vmatprep.subr.bf16.mxu0 0
        %1735 = vmatpush1.bf16.msra.mxu0 0
        %1736 = vmatprep.subr.bf16.mxu0 0
        %1737 = vmatpush1.bf16.msra.mxu0 %v1697
        %1738 = vmatprep.subr.bf16.mxu0 0
        %1739 = vmatpush1.bf16.msra.mxu0 %v1696
        %1740 = vmatprep.subr.bf16.mxu0 0
        %1741 = vmatpush1.bf16.msra.mxu0 %v1695
        %1742 = vmatprep.subr.bf16.mxu0 0
        %1743 = vmatpush1.bf16.msra.mxu0 %v1694
        %1744 = vmatprep.subr.bf16.mxu0 0
        %1745 = vmatpush2.bf16.msra.mxu0 0
        %1746 = vmatprep.subr.bf16.mxu0 0
        %1747 = vmatpush2.bf16.msra.mxu0 0
        %1748 = vmatprep.subr.bf16.mxu0 0
        %1749 = vmatpush2.bf16.msra.mxu0 0
        %1750 = vmatprep.subr.bf16.mxu0 0
        %1751 = vmatpush2.bf16.msra.mxu0 0
        %1752 = vmatprep.subr.bf16.mxu0 0
        %1753 = vmatpush2.bf16.msra.mxu0 0
        %1754 = vmatprep.subr.bf16.mxu0 0
        %1755 = vmatpush2.bf16.msra.mxu0 0
        %1756 = vmatprep.subr.bf16.mxu0 0
        %1757 = vmatpush2.bf16.msra.mxu0 0
        %1758 = vmatprep.subr.bf16.mxu0 0
        %1759 = vmatpush2.bf16.msra.mxu0 0
        %1760 = vmatprep.mubr.bf16.mxu0 0
        %1761 = vmatmul.mubr.bf16.gmra.mxu0 %v1699
        %v1762 = vpop.f32.mrf.mxu0
        %v1763 = vadd.f32 0.0, %v1762
        %v1764 = vpop.f32.mrf.mxu0
        %v1765 = vpop.f32.mrf.mxu0
        %v1766 = vadd.f32 0.0, %v1765
        %v1767 = vpop.f32.mrf.mxu0
        %1768 = vmatprep.mubr.bf16.mxu0 0
        %1769 = vmatmul.mubr.bf16.gmra.mxu0 %v1702
        %v1770 = vpop.f32.mrf.mxu0
        %v1771 = vadd.f32 0.0, %v1770
        %v1772 = vpop.f32.mrf.mxu0
        %v1773 = vpop.f32.mrf.mxu0
        %v1774 = vadd.f32 0.0, %v1773
        %v1775 = vpop.f32.mrf.mxu0
        %1776 = vmatprep.mubr.bf16.mxu0 0
        %1777 = vmatmul.mubr.bf16.gmra.mxu0 %v1705
        %v1778 = vpop.f32.mrf.mxu0
        %v1779 = vadd.f32 0.0, %v1778
        %v1780 = vpop.f32.mrf.mxu0
        %v1781 = vpop.f32.mrf.mxu0
        %v1782 = vadd.f32 0.0, %v1781
        %v1783 = vpop.f32.mrf.mxu0
        %1784 = vmatprep.mubr.bf16.mxu0 0
        %1785 = vmatmul.mubr.bf16.gmra.mxu0 %v1708
        %v1786 = vpop.f32.mrf.mxu0
        %v1787 = vadd.f32 0.0, %v1786
        %v1788 = vpop.f32.mrf.mxu0
        %v1789 = vpop.f32.mrf.mxu0
        %v1790 = vadd.f32 0.0, %v1789
        %v1791 = vpop.f32.mrf.mxu0
        %1792 = vmatprep.mubr.bf16.mxu0 0
        %1793 = vmatmul.mubr.bf16.gmra.mxu0 %v1711
        %v1794 = vpop.f32.mrf.mxu0
        %v1795 = vadd.f32 0.0, %v1794
        %v1796 = vpop.f32.mrf.mxu0
        %v1797 = vpop.f32.mrf.mxu0
        %v1798 = vadd.f32 0.0, %v1797
        %v1799 = vpop.f32.mrf.mxu0
        %1800 = vmatprep.mubr.bf16.mxu0 0
        %1801 = vmatmul.mubr.bf16.gmra.mxu0 %v1714
        %v1802 = vpop.f32.mrf.mxu0
        %v1803 = vadd.f32 0.0, %v1802
        %v1804 = vpop.f32.mrf.mxu0
        %v1805 = vpop.f32.mrf.mxu0
        %v1806 = vadd.f32 0.0, %v1805
        %v1807 = vpop.f32.mrf.mxu0
        %1808 = vmatprep.mubr.bf16.mxu0 0
        %1809 = vmatmul.mubr.bf16.gmra.mxu0 %v1717
        %v1810 = vpop.f32.mrf.mxu0
        %v1811 = vadd.f32 0.0, %v1810
        %v1812 = vpop.f32.mrf.mxu0
        %v1813 = vpop.f32.mrf.mxu0
        %v1814 = vadd.f32 0.0, %v1813
        %v1815 = vpop.f32.mrf.mxu0
        %1816 = vmatprep.mubr.bf16.mxu0 0
        %1817 = vmatmul.mubr.bf16.gmra.mxu0 %v1720
        %v1818 = vpop.f32.mrf.mxu0
        %v1819 = vadd.f32 0.0, %v1818
        %v1820 = vpop.f32.mrf.mxu0
        %v1821 = vpop.f32.mrf.mxu0
        %v1822 = vadd.f32 0.0, %v1821
        %v1823 = vpop.f32.mrf.mxu0
        %1824 = vmatprep.mubr.bf16.mxu0 0
        %1825 = vmatmul.mubr.bf16.gmra.mxu0 %v1723
        %v1826 = vpop.f32.mrf.mxu0
        %v1827 = vadd.f32 0.0, %v1826
        %v1828 = vpop.f32.mrf.mxu0
        %v1829 = vpop.f32.mrf.mxu0
        %v1830 = vadd.f32 0.0, %v1829
        %v1831 = vpop.f32.mrf.mxu0
        %1832 = vmatprep.mubr.bf16.mxu0 0
        %1833 = vmatmul.mubr.bf16.gmra.mxu0 %v1726
        %v1834 = vpop.f32.mrf.mxu0
        %v1835 = vadd.f32 0.0, %v1834
        %v1836 = vpop.f32.mrf.mxu0
        %v1837 = vpop.f32.mrf.mxu0
        %v1838 = vadd.f32 0.0, %v1837
        %v1839 = vpop.f32.mrf.mxu0
        %1840 = vdwg.mxu0
        %v1841 = vmax.f32 %v1779, %v1795
        %v1842 = vmax.f32 %v1782, %v1798
        %v1843 = vmax.f32 %v1787, %v1803
        %v1844 = vmax.f32 %v1790, %v1806
        %v1845 = vmax.f32 %v1841, %v1811
        %v1846 = vmax.f32 %v1842, %v1814
        %v1847 = vmax.f32 %v1843, %v1819
        %v1848 = vmax.f32 %v1844, %v1822
        %v1849 = vmax.f32 %v1845, %v1827
        %v1850 = vmax.f32 %v1846, %v1830
        %v1851 = vmax.f32 %v1847, %v1835
        %v1852 = vmax.f32 %v1848, %v1838
        %v1853 = vsub.f32 %v1849, %v1763
        %v1854 = vsub.f32 %v1850, %v1766
        %v1855 = vsub.f32 %v1851, %v1771
        %v1856 = vsub.f32 %v1852, %v1774
        %v1858 = vlaneseq
        %v1859 = vshrl.u32 %v1858, 7
        %v1860 = vsub.s32 0, %v1859
        %v1861 = vrot.slane %v939, %v1860
        %v1863 = vadd.f32 %v1853, %v1861
        %v1864 = vadd.f32 %v1854, %v1861
        %v1865 = vadd.f32 %v1855, %v1861
        %v1866 = vadd.f32 %v1856, %v1861
        %v1867 = vmax.f32 %v1863, 0.0
        %v1868 = vmax.f32 %v1864, 0.0
        %v1869 = vmax.f32 %v1865, 0.0
        %v1870 = vmax.f32 %v1866, 0.0
        %vm1871 = vcmask 261120
        %v1872 = vsel %vm1871, %v1867, 0.0
        %1873 = vadd.xlane.f32.xlu0 %v1872
        %v1874 = vpop.xlane.xlu0 %1873
        %v1875 = vsel %vm1871, %v1868, 0.0
        %1876 = vadd.xlane.f32.xlu0 %v1875
        %v1877 = vpop.xlane.xlu0 %1876
        %v1878 = vsel %vm1871, %v1869, 0.0
        %1879 = vadd.xlane.f32.xlu0 %v1878
        %v1880 = vpop.xlane.xlu0 %1879
        %v1881 = vsel %vm1871, %v1870, 0.0
        %1882 = vadd.xlane.f32.xlu0 %v1881
        %v1883 = vpop.xlane.xlu0 %1882
        %v1884 = vrcp.pop 32.0
        %v1885 = vmul.f32 %v1874, %v1884
        %v1886 = vmul.f32 %v1877, %v1884
        %v1887 = vmul.f32 %v1880, %v1884
        %v1888 = vmul.f32 %v1883, %v1884
        %v1889 = vsub.f32 %v1867, %v1885
        %v1890 = vsub.f32 %v1868, %v1886
        %v1891 = vsub.f32 %v1869, %v1887
        %v1892 = vsub.f32 %v1870, %v1888
        %v1893 = vmul.f32 %v1889, %v1889
        %v1894 = vmul.f32 %v1890, %v1890
        %v1895 = vmul.f32 %v1891, %v1891
        %v1896 = vmul.f32 %v1892, %v1892
        %v1897 = vsel %vm1871, %v1893, 0.0
        %1898 = vadd.xlane.f32.xlu0 %v1897
        %v1899 = vpop.xlane.xlu0 %1898
        %v1900 = vsel %vm1871, %v1894, 0.0
        %1901 = vadd.xlane.f32.xlu0 %v1900
        %v1902 = vpop.xlane.xlu0 %1901
        %v1903 = vsel %vm1871, %v1895, 0.0
        %1904 = vadd.xlane.f32.xlu0 %v1903
        %v1905 = vpop.xlane.xlu0 %1904
        %v1906 = vsel %vm1871, %v1896, 0.0
        %1907 = vadd.xlane.f32.xlu0 %v1906
        %v1908 = vpop.xlane.xlu0 %1907
        %v1909 = vmul.f32 %v1899, %v1884
        %v1910 = vmul.f32 %v1902, %v1884
        %v1911 = vmul.f32 %v1905, %v1884
        %v1912 = vmul.f32 %v1908, %v1884
        %v1913 = vadd.f32 %v1909, 1e-05
        %v1914 = vadd.f32 %v1910, 1e-05
        %v1915 = vadd.f32 %v1911, 1e-05
        %v1916 = vadd.f32 %v1912, 1e-05
        %v1917 = vrsqrt.pop %v1913
        %v1918 = vrsqrt.pop %v1914
        %v1919 = vrsqrt.pop %v1915
        %v1920 = vrsqrt.pop %v1916
        %v1921 = vmul.f32 %v1889, %v1917
        %v1922 = vmul.f32 %v1890, %v1918
        %v1923 = vmul.f32 %v1891, %v1919
        %v1924 = vmul.f32 %v1892, %v1920
        %v1926 = vlaneseq
        %v1927 = vshrl.u32 %v1926, 7
        %v1928 = vsub.s32 0, %v1927
        %v1929 = vrot.slane %v940, %v1928
        %v1931 = vmul.f32 %v1921, %v1929
        %v1932 = vmul.f32 %v1922, %v1929
        %v1933 = vmul.f32 %v1923, %v1929
        %v1934 = vmul.f32 %v1924, %v1929
        %v1936 = vlaneseq
        %v1937 = vshrl.u32 %v1936, 7
        %v1938 = vsub.s32 0, %v1937
        %v1939 = vrot.slane %v941, %v1938
        %v1941 = vadd.f32 %v1931, %v1939
        %v1942 = vadd.f32 %v1932, %v1939
        %v1943 = vadd.f32 %v1933, %v1939
        %v1944 = vadd.f32 %v1934, %v1939
        %v1945 = vld [vmem:[%s8] sm:$0xff]
        %v1946 = vld [vmem:[%s8 + $0x8] sm:$0xff]
        %v1947 = vld [vmem:[%s8 + $0x10] sm:$0xff]
        %v1948 = vld [vmem:[%s8 + $0x18] sm:$0xff]
        %v1949 = vld [vmem:[%s8 + $0x20] sm:$0x7]
        %v1950 = vpack.c.bf16 %v1946, %v1945
        %v1951 = vpack.c.bf16 %v1948, %v1947
        %v1952 = vld [vmem:[%s9] sm:$0x1]
        %v1953 = vld [vmem:[%s10] sm:$0x1]
        %v1954 = vld [vmem:[%s11] sm:$0x1]
        %v1955 = vpack.c.bf16 %v1942, %v1941
        %v1956 = vpack.c.bf16 %v1944, %v1943
        %v1957 = vlaneseq
        %v1958 = vshrl.u32 %v1957, 7
        %v1959 = vsub.s32 0, %v1958
        %v1960 = vrot.slane %v1949, %v1959
        %v1961 = vmul.f32 %v1398, %v1960
        %v1962 = vmul.f32 %v1403, %v1960
        %v1963 = vmul.f32 %v1408, %v1960
        %v1964 = vmul.f32 %v1413, %v1960
        %v1966 = vsel %vm1871, %v1955, 0
        %v1969 = vsel %vm1871, %v1956, 0
        %1971 = vmatprep.subr.bf16.mxu0 0
        %1972 = vmatpush1.bf16.msra.mxu0 0
        %1973 = vmatprep.subr.bf16.mxu0 0
        %1974 = vmatpush1.bf16.msra.mxu0 0
        %1975 = vmatprep.subr.bf16.mxu0 0
        %1976 = vmatpush1.bf16.msra.mxu0 0
        %1977 = vmatprep.subr.bf16.mxu0 0
        %1978 = vmatpush1.bf16.msra.mxu0 0
        %1979 = vmatprep.subr.bf16.mxu0 0
        %1980 = vmatpush1.bf16.msra.mxu0 0
        %1981 = vmatprep.subr.bf16.mxu0 0
        %1982 = vmatpush1.bf16.msra.mxu0 0
        %1983 = vmatprep.subr.bf16.mxu0 0
        %1984 = vmatpush1.bf16.msra.mxu0 %v1951
        %1985 = vmatprep.subr.bf16.mxu0 0
        %1986 = vmatpush1.bf16.msra.mxu0 %v1950
        %1987 = vmatprep.subr.bf16.mxu0 0
        %1988 = vmatpush2.bf16.msra.mxu0 0
        %1989 = vmatprep.subr.bf16.mxu0 0
        %1990 = vmatpush2.bf16.msra.mxu0 0
        %1991 = vmatprep.subr.bf16.mxu0 0
        %1992 = vmatpush2.bf16.msra.mxu0 0
        %1993 = vmatprep.subr.bf16.mxu0 0
        %1994 = vmatpush2.bf16.msra.mxu0 0
        %1995 = vmatprep.subr.bf16.mxu0 0
        %1996 = vmatpush2.bf16.msra.mxu0 0
        %1997 = vmatprep.subr.bf16.mxu0 0
        %1998 = vmatpush2.bf16.msra.mxu0 0
        %1999 = vmatprep.subr.bf16.mxu0 0
        %2000 = vmatpush2.bf16.msra.mxu0 0
        %2001 = vmatprep.subr.bf16.mxu0 0
        %2002 = vmatpush2.bf16.msra.mxu0 0
        %2003 = vmatprep.mubr.bf16.mxu0 0
        %2004 = vmatmul.mubr.bf16.gmra.mxu0 %v1966
        %v2005 = vpop.f32.mrf.mxu0
        %v2006 = vadd.f32 %v1961, %v2005
        %v2007 = vpop.f32.mrf.mxu0
        %v2008 = vpop.f32.mrf.mxu0
        %v2009 = vadd.f32 %v1962, %v2008
        %v2010 = vpop.f32.mrf.mxu0
        %2011 = vmatprep.mubr.bf16.mxu0 0
        %2012 = vmatmul.mubr.bf16.gmra.mxu0 %v1969
        %v2013 = vpop.f32.mrf.mxu0
        %v2014 = vadd.f32 %v1963, %v2013
        %v2015 = vpop.f32.mrf.mxu0
        %v2016 = vpop.f32.mrf.mxu0
        %v2017 = vadd.f32 %v1964, %v2016
        %v2018 = vpop.f32.mrf.mxu0
        %2019 = vdwg.mxu0
        %v2020 = vlaneseq
        %v2021 = vshrl.u32 %v2020, 7
        %v2022 = vsub.s32 1, %v2021
        %v2023 = vrot.slane %v1949, %v2022
        %v2024 = vmul.f32 %v1433, %v2023
        %v2025 = vmul.f32 %v1437, %v2023
        %v2026 = vmul.f32 %v1441, %v2023
        %v2027 = vmul.f32 %v1445, %v2023
        %v2028 = vadd.f32 %v2006, %v2024
        %v2029 = vadd.f32 %v2009, %v2025
        %v2030 = vadd.f32 %v2014, %v2026
        %v2031 = vadd.f32 %v2017, %v2027
        %v2032 = vlaneseq
        %v2033 = vshrl.u32 %v2032, 7
        %v2034 = vsub.s32 2, %v2033
        %v2035 = vrot.slane %v1949, %v2034
        %v2036 = vmul.f32 %v1465, %v2035
        %v2037 = vmul.f32 %v1469, %v2035
        %v2038 = vmul.f32 %v1473, %v2035
        %v2039 = vmul.f32 %v1477, %v2035
        %v2040 = vadd.f32 %v2028, %v2036
        %v2041 = vadd.f32 %v2029, %v2037
        %v2042 = vadd.f32 %v2030, %v2038
        %v2043 = vadd.f32 %v2031, %v2039
        %v2044 = vsel %vm1871, %v1191, 0
        %v2046 = vsel %vm1871, %v1192, 0
        %2048 = vmatprep.subr.mxu0 0.0
        %2049 = vmatpush1.msra.mxu0 0.0
        %2050 = vmatprep.subr.mxu0 0.0
        %2051 = vmatpush1.msra.mxu0 0.0
        %2052 = vmatprep.subr.mxu0 0.0
        %2053 = vmatpush1.msra.mxu0 0.0
        %2054 = vmatprep.subr.mxu0 0.0
        %2055 = vmatpush1.msra.mxu0 0.0
        %2056 = vmatprep.subr.mxu0 0.0
        %2057 = vmatpush1.msra.mxu0 0.0
        %2058 = vmatprep.subr.mxu0 0.0
        %2059 = vmatpush1.msra.mxu0 0.0
        %2060 = vmatprep.subr.mxu0 0.0
        %2061 = vmatpush1.msra.mxu0 0.0
        %2062 = vmatprep.subr.mxu0 0.0
        %2063 = vmatpush1.msra.mxu0 0.0
        %2064 = vmatprep.subr.mxu0 0.0
        %2065 = vmatpush1.msra.mxu0 0.0
        %2066 = vmatprep.subr.mxu0 0.0
        %2067 = vmatpush1.msra.mxu0 0.0
        %2068 = vmatprep.subr.mxu0 0.0
        %2069 = vmatpush1.msra.mxu0 0.0
        %2070 = vmatprep.subr.mxu0 0.0
        %2071 = vmatpush1.msra.mxu0 0.0
        %2072 = vmatprep.subr.mxu0 0.0
        %2073 = vmatpush1.msra.mxu0 %v1290
        %2074 = vmatprep.subr.mxu0 0.0
        %2075 = vmatpush1.msra.mxu0 %v1285
        %2076 = vmatprep.subr.mxu0 0.0
        %2077 = vmatpush1.msra.mxu0 %v1280
        %2078 = vmatprep.subr.mxu0 0.0
        %2079 = vmatpush1.msra.mxu0 %v1275
        %2080 = vmatprep.subr.mxu0 0.0
        %2081 = vmatpush2.msra.mxu0 0.0
        %2082 = vmatprep.subr.mxu0 0.0
        %2083 = vmatpush2.msra.mxu0 0.0
        %2084 = vmatprep.subr.mxu0 0.0
        %2085 = vmatpush2.msra.mxu0 0.0
        %2086 = vmatprep.subr.mxu0 0.0
        %2087 = vmatpush2.msra.mxu0 0.0
        %2088 = vmatprep.subr.mxu0 0.0
        %2089 = vmatpush2.msra.mxu0 0.0
        %2090 = vmatprep.subr.mxu0 0.0
        %2091 = vmatpush2.msra.mxu0 0.0
        %2092 = vmatprep.subr.mxu0 0.0
        %2093 = vmatpush2.msra.mxu0 0.0
        %2094 = vmatprep.subr.mxu0 0.0
        %2095 = vmatpush2.msra.mxu0 0.0
        %2096 = vmatprep.subr.mxu0 0.0
        %2097 = vmatpush2.msra.mxu0 0.0
        %2098 = vmatprep.subr.mxu0 0.0
        %2099 = vmatpush2.msra.mxu0 0.0
        %2100 = vmatprep.subr.mxu0 0.0
        %2101 = vmatpush2.msra.mxu0 0.0
        %2102 = vmatprep.subr.mxu0 0.0
        %2103 = vmatpush2.msra.mxu0 0.0
        %2104 = vmatprep.subr.mxu0 0.0
        %2105 = vmatpush2.msra.mxu0 0.0
        %2106 = vmatprep.subr.mxu0 0.0
        %2107 = vmatpush2.msra.mxu0 0.0
        %2108 = vmatprep.subr.mxu0 0.0
        %2109 = vmatpush2.msra.mxu0 0.0
        %2110 = vmatprep.subr.mxu0 0.0
        %2111 = vmatpush2.msra.mxu0 0.0
        %2112 = vmatprep.mubr.f32.mxu0 0.0
        %2113 = vmatmul.mubr.f32.gmra.mxu0 %v2044
        %v2114 = vpop.f32.mrf.mxu0
        %v2115 = vadd.f32 0.0, %v2114
        %v2116 = vpop.f32.mrf.mxu0
        %2117 = vmatprep.mubr.f32.mxu0 0.0
        %2118 = vmatmul.mubr.f32.gmra.mxu0 %v2046
        %v2119 = vpop.f32.mrf.mxu0
        %v2120 = vadd.f32 0.0, %v2119
        %v2121 = vpop.f32.mrf.mxu0
        %2122 = vdwg.mxu0
        %v2124 = vsel %vm1871, %v1392, 0
        %2126 = vmatprep.subr.mxu0 0.0
        %2127 = vmatpush1.msra.mxu0 0.0
        %2128 = vmatprep.subr.mxu0 0.0
        %2129 = vmatpush1.msra.mxu0 0.0
        %2130 = vmatprep.subr.mxu0 0.0
        %2131 = vmatpush1.msra.mxu0 0.0
        %2132 = vmatprep.subr.mxu0 0.0
        %2133 = vmatpush1.msra.mxu0 0.0
        %2134 = vmatprep.subr.mxu0 0.0
        %2135 = vmatpush1.msra.mxu0 0.0
        %2136 = vmatprep.subr.mxu0 0.0
        %2137 = vmatpush1.msra.mxu0 0.0
        %2138 = vmatprep.subr.mxu0 0.0
        %2139 = vmatpush1.msra.mxu0 0.0
        %2140 = vmatprep.subr.mxu0 0.0
        %2141 = vmatpush1.msra.mxu0 0.0
        %2142 = vmatprep.subr.mxu0 0.0
        %2143 = vmatpush1.msra.mxu0 0.0
        %2144 = vmatprep.subr.mxu0 0.0
        %2145 = vmatpush1.msra.mxu0 0.0
        %2146 = vmatprep.subr.mxu0 0.0
        %2147 = vmatpush1.msra.mxu0 0.0
        %2148 = vmatprep.subr.mxu0 0.0
        %2149 = vmatpush1.msra.mxu0 0.0
        %2150 = vmatprep.subr.mxu0 0.0
        %2151 = vmatpush1.msra.mxu0 %v1317
        %2152 = vmatprep.subr.mxu0 0.0
        %2153 = vmatpush1.msra.mxu0 %v1316
        %2154 = vmatprep.subr.mxu0 0.0
        %2155 = vmatpush1.msra.mxu0 %v1315
        %2156 = vmatprep.subr.mxu0 0.0
        %2157 = vmatpush1.msra.mxu0 %v1314
        %2158 = vmatprep.subr.mxu0 0.0
        %2159 = vmatpush2.msra.mxu0 0.0
        %2160 = vmatprep.subr.mxu0 0.0
        %2161 = vmatpush2.msra.mxu0 0.0
        %2162 = vmatprep.subr.mxu0 0.0
        %2163 = vmatpush2.msra.mxu0 0.0
        %2164 = vmatprep.subr.mxu0 0.0
        %2165 = vmatpush2.msra.mxu0 0.0
        %2166 = vmatprep.subr.mxu0 0.0
        %2167 = vmatpush2.msra.mxu0 0.0
        %2168 = vmatprep.subr.mxu0 0.0
        %2169 = vmatpush2.msra.mxu0 0.0
        %2170 = vmatprep.subr.mxu0 0.0
        %2171 = vmatpush2.msra.mxu0 0.0
        %2172 = vmatprep.subr.mxu0 0.0
        %2173 = vmatpush2.msra.mxu0 0.0
        %2174 = vmatprep.subr.mxu0 0.0
        %2175 = vmatpush2.msra.mxu0 0.0
        %2176 = vmatprep.subr.mxu0 0.0
        %2177 = vmatpush2.msra.mxu0 0.0
        %2178 = vmatprep.subr.mxu0 0.0
        %2179 = vmatpush2.msra.mxu0 0.0
        %2180 = vmatprep.subr.mxu0 0.0
        %2181 = vmatpush2.msra.mxu0 0.0
        %2182 = vmatprep.subr.mxu0 0.0
        %2183 = vmatpush2.msra.mxu0 0.0
        %2184 = vmatprep.subr.mxu0 0.0
        %2185 = vmatpush2.msra.mxu0 0.0
        %2186 = vmatprep.subr.mxu0 0.0
        %2187 = vmatpush2.msra.mxu0 0.0
        %2188 = vmatprep.subr.mxu0 0.0
        %2189 = vmatpush2.msra.mxu0 0.0
        %2190 = vmatprep.mubr.f32.mxu0 0.0
        %2191 = vmatmul.mubr.f32.gmra.mxu0 %v2124
        %v2192 = vpop.f32.mrf.mxu0
        %v2193 = vadd.f32 0.0, %v2192
        %v2194 = vpop.f32.mrf.mxu0
        %2195 = vdwg.mxu0
        %2197 = vset.pattern.permute.xlu0 0
        %2198 = vperm.xlu0 %2197, %v2115
        %v2199 = vpop.permute.xlu0 %2198
        %2202 = vset.pattern.permute.xlu0 0
        %2203 = vperm.xlu0 %2202, %v2120
        %v2204 = vpop.permute.xlu0 %2203
        %v2206 = vlaneseq
        %v2207 = vshrl.u32 %v2206, 7
        %v2208 = vsub.s32 0, %v2207
        %v2209 = vrot.slane %v1392, %v2208
        %v2210 = vsub.f32 %v2199, %v2209
        %v2211 = vsub.f32 %v2204, %v2209
        %v2212 = vmul.f32 %v2210, %v2210
        %v2213 = vmul.f32 %v2211, %v2211
        %v2214 = vadd.f32 %v2212, 0.0
        %v2215 = vadd.f32 %v2213, 0.0
        %2216 = vset.pattern.permute.xlu0 1
        %2217 = vperm.xlu0 %2216, %v2115
        %v2218 = vpop.permute.xlu0 %2217
        %2220 = vset.pattern.permute.xlu0 1
        %2221 = vperm.xlu0 %2220, %v2120
        %v2222 = vpop.permute.xlu0 %2221
        %v2224 = vlaneseq
        %v2225 = vshrl.u32 %v2224, 7
        %v2226 = vsub.s32 1, %v2225
        %v2227 = vrot.slane %v1392, %v2226
        %v2228 = vsub.f32 %v2218, %v2227
        %v2229 = vsub.f32 %v2222, %v2227
        %v2230 = vmul.f32 %v2228, %v2228
        %v2231 = vmul.f32 %v2229, %v2229
        %v2232 = vadd.f32 %v2214, %v2230
        %v2233 = vadd.f32 %v2215, %v2231
        %2234 = vset.pattern.permute.xlu0 2
        %2235 = vperm.xlu0 %2234, %v2115
        %v2236 = vpop.permute.xlu0 %2235
        %2238 = vset.pattern.permute.xlu0 2
        %2239 = vperm.xlu0 %2238, %v2120
        %v2240 = vpop.permute.xlu0 %2239
        %v2242 = vlaneseq
        %v2243 = vshrl.u32 %v2242, 7
        %v2244 = vsub.s32 2, %v2243
        %v2245 = vrot.slane %v1392, %v2244
        %v2246 = vsub.f32 %v2236, %v2245
        %v2247 = vsub.f32 %v2240, %v2245
        %v2248 = vmul.f32 %v2246, %v2246
        %v2249 = vmul.f32 %v2247, %v2247
        %v2250 = vadd.f32 %v2232, %v2248
        %v2251 = vadd.f32 %v2233, %v2249
        %v2252 = vsel %vm1871, %v2250, inf
        %2253 = vmin.xlane.f32.xlu0 %v2252
        %v2254 = vpop.xlane.xlu0 %2253
        %v2255 = vsel %vm1871, %v2251, inf
        %2256 = vmin.xlane.f32.xlu0 %v2255
        %v2257 = vpop.xlane.xlu0 %2256
        %vm2258 = vcmp.le.f32.partialorder %v2250, %v2254
        %vm2259 = vcmp.le.f32.partialorder %v2251, %v2257
        %v2260 = vsel %vm2258, %v1495, 32.0
        %v2261 = vsel %vm2259, %v1495, 32.0
        %v2262 = vsel %vm1871, %v2260, inf
        %2263 = vmin.xlane.f32.xlu0 %v2262
        %v2264 = vpop.xlane.xlu0 %2263
        %v2265 = vsel %vm1871, %v2261, inf
        %2266 = vmin.xlane.f32.xlu0 %v2265
        %v2267 = vpop.xlane.xlu0 %2266
        %vm2268 = vcmp.eq.f32.partialorder %v1495, %v2264
        %vm2269 = vcmp.eq.f32.partialorder %v1495, %v2267
        %v2270 = vsel %vm2268, 1, 0
        %v2271 = vsel %vm2269, 1, 0
        %v2272 = vcvt.s32.f32 %v2270
        %v2273 = vcvt.s32.f32 %v2271
        %v2274 = vpack.c.bf16 %v2273, %v2272
        %v2275 = vsel %vm2268, 1e+30, %v2250
        %v2276 = vsel %vm2269, 1e+30, %v2251
        %v2277 = vsel %vm1871, %v2275, inf
        %2278 = vmin.xlane.f32.xlu0 %v2277
        %v2279 = vpop.xlane.xlu0 %2278
        %v2280 = vsel %vm1871, %v2276, inf
        %2281 = vmin.xlane.f32.xlu0 %v2280
        %v2282 = vpop.xlane.xlu0 %2281
        %vm2283 = vcmp.le.f32.partialorder %v2275, %v2279
        %vm2284 = vcmp.le.f32.partialorder %v2276, %v2282
        %v2285 = vsel %vm2283, %v1495, 32.0
        %v2286 = vsel %vm2284, %v1495, 32.0
        %v2287 = vsel %vm1871, %v2285, inf
        %2288 = vmin.xlane.f32.xlu0 %v2287
        %v2289 = vpop.xlane.xlu0 %2288
        %v2290 = vsel %vm1871, %v2286, inf
        %2291 = vmin.xlane.f32.xlu0 %v2290
        %v2292 = vpop.xlane.xlu0 %2291
        %vm2293 = vcmp.eq.f32.partialorder %v1495, %v2289
        %vm2294 = vcmp.eq.f32.partialorder %v1495, %v2292
        %v2295 = vsel %vm2293, 1, 0
        %v2296 = vsel %vm2294, 1, 0
        %v2297 = vcvt.s32.f32 %v2295
        %v2298 = vcvt.s32.f32 %v2296
        %v2299 = vpack.c.bf16 %v2298, %v2297
        %v2300 = vsel %vm2293, 1e+30, %v2275
        %v2301 = vsel %vm2294, 1e+30, %v2276
        %v2302 = vsel %vm1871, %v2300, inf
        %2303 = vmin.xlane.f32.xlu0 %v2302
        %v2304 = vpop.xlane.xlu0 %2303
        %v2305 = vsel %vm1871, %v2301, inf
        %2306 = vmin.xlane.f32.xlu0 %v2305
        %v2307 = vpop.xlane.xlu0 %2306
        %vm2308 = vcmp.le.f32.partialorder %v2300, %v2304
        %vm2309 = vcmp.le.f32.partialorder %v2301, %v2307
        %v2310 = vsel %vm2308, %v1495, 32.0
        %v2311 = vsel %vm2309, %v1495, 32.0
        %v2312 = vsel %vm1871, %v2310, inf
        %2313 = vmin.xlane.f32.xlu0 %v2312
        %v2314 = vpop.xlane.xlu0 %2313
        %v2315 = vsel %vm1871, %v2311, inf
        %2316 = vmin.xlane.f32.xlu0 %v2315
        %v2317 = vpop.xlane.xlu0 %2316
        %vm2318 = vcmp.eq.f32.partialorder %v1495, %v2314
        %vm2319 = vcmp.eq.f32.partialorder %v1495, %v2317
        %v2320 = vsel %vm2318, 1, 0
        %v2321 = vsel %vm2319, 1, 0
        %v2322 = vcvt.s32.f32 %v2320
        %v2323 = vcvt.s32.f32 %v2321
        %v2324 = vpack.c.bf16 %v2323, %v2322
        %v2325 = vsel %vm2318, 1e+30, %v2300
        %v2326 = vsel %vm2319, 1e+30, %v2301
        %v2327 = vsel %vm1871, %v2325, inf
        %2328 = vmin.xlane.f32.xlu0 %v2327
        %v2329 = vpop.xlane.xlu0 %2328
        %v2330 = vsel %vm1871, %v2326, inf
        %2331 = vmin.xlane.f32.xlu0 %v2330
        %v2332 = vpop.xlane.xlu0 %2331
        %vm2333 = vcmp.le.f32.partialorder %v2325, %v2329
        %vm2334 = vcmp.le.f32.partialorder %v2326, %v2332
        %v2335 = vsel %vm2333, %v1495, 32.0
        %v2336 = vsel %vm2334, %v1495, 32.0
        %v2337 = vsel %vm1871, %v2335, inf
        %2338 = vmin.xlane.f32.xlu0 %v2337
        %v2339 = vpop.xlane.xlu0 %2338
        %v2340 = vsel %vm1871, %v2336, inf
        %2341 = vmin.xlane.f32.xlu0 %v2340
        %v2342 = vpop.xlane.xlu0 %2341
        %vm2343 = vcmp.eq.f32.partialorder %v1495, %v2339
        %vm2344 = vcmp.eq.f32.partialorder %v1495, %v2342
        %v2345 = vsel %vm2343, 1, 0
        %v2346 = vsel %vm2344, 1, 0
        %v2347 = vcvt.s32.f32 %v2345
        %v2348 = vcvt.s32.f32 %v2346
        %v2349 = vpack.c.bf16 %v2348, %v2347
        %v2350 = vpack.c.bf16 %v2041, %v2040
        %v2351 = vpack.c.bf16 %v2043, %v2042
        %v2352 = vsel %vm1871, %v1496, 0
        %v2355 = vsel %vm1871, %v2274, 0
        %v2358 = vsel %vm1871, %v2299, 0
        %v2361 = vsel %vm1871, %v2324, 0
        %v2364 = vsel %vm1871, %v2349, 0
        %2366 = vmatprep.subr.bf16.mxu0 0
        %2367 = vmatpush1.bf16.msra.mxu0 0
        %2368 = vmatprep.subr.bf16.mxu0 0
        %2369 = vmatpush1.bf16.msra.mxu0 0
        %2370 = vmatprep.subr.bf16.mxu0 0
        %2371 = vmatpush1.bf16.msra.mxu0 0
        %2372 = vmatprep.subr.bf16.mxu0 0
        %2373 = vmatpush1.bf16.msra.mxu0 0
        %2374 = vmatprep.subr.bf16.mxu0 0
        %2375 = vmatpush1.bf16.msra.mxu0 0
        %2376 = vmatprep.subr.bf16.mxu0 0
        %2377 = vmatpush1.bf16.msra.mxu0 0
        %2378 = vmatprep.subr.bf16.mxu0 0
        %2379 = vmatpush1.bf16.msra.mxu0 %v2351
        %2380 = vmatprep.subr.bf16.mxu0 0
        %2381 = vmatpush1.bf16.msra.mxu0 %v2350
        %2382 = vmatprep.subr.bf16.mxu0 0
        %2383 = vmatpush2.bf16.msra.mxu0 0
        %2384 = vmatprep.subr.bf16.mxu0 0
        %2385 = vmatpush2.bf16.msra.mxu0 0
        %2386 = vmatprep.subr.bf16.mxu0 0
        %2387 = vmatpush2.bf16.msra.mxu0 0
        %2388 = vmatprep.subr.bf16.mxu0 0
        %2389 = vmatpush2.bf16.msra.mxu0 0
        %2390 = vmatprep.subr.bf16.mxu0 0
        %2391 = vmatpush2.bf16.msra.mxu0 0
        %2392 = vmatprep.subr.bf16.mxu0 0
        %2393 = vmatpush2.bf16.msra.mxu0 0
        %2394 = vmatprep.subr.bf16.mxu0 0
        %2395 = vmatpush2.bf16.msra.mxu0 0
        %2396 = vmatprep.subr.bf16.mxu0 0
        %2397 = vmatpush2.bf16.msra.mxu0 0
        %2398 = vmatprep.mubr.bf16.mxu0 0
        %2399 = vmatmul.mubr.bf16.gmra.mxu0 %v2352
        %v2400 = vpop.f32.mrf.mxu0
        %v2401 = vadd.f32 0.0, %v2400
        %v2402 = vpop.f32.mrf.mxu0
        %v2403 = vpop.f32.mrf.mxu0
        %v2404 = vadd.f32 0.0, %v2403
        %v2405 = vpop.f32.mrf.mxu0
        %2406 = vmatprep.mubr.bf16.mxu0 0
        %2407 = vmatmul.mubr.bf16.gmra.mxu0 %v2355
        %v2408 = vpop.f32.mrf.mxu0
        %v2409 = vadd.f32 0.0, %v2408
        %v2410 = vpop.f32.mrf.mxu0
        %v2411 = vpop.f32.mrf.mxu0
        %v2412 = vadd.f32 0.0, %v2411
        %v2413 = vpop.f32.mrf.mxu0
        %2414 = vmatprep.mubr.bf16.mxu0 0
        %2415 = vmatmul.mubr.bf16.gmra.mxu0 %v2358
        %v2416 = vpop.f32.mrf.mxu0
        %v2417 = vadd.f32 0.0, %v2416
        %v2418 = vpop.f32.mrf.mxu0
        %v2419 = vpop.f32.mrf.mxu0
        %v2420 = vadd.f32 0.0, %v2419
        %v2421 = vpop.f32.mrf.mxu0
        %2422 = vmatprep.mubr.bf16.mxu0 0
        %2423 = vmatmul.mubr.bf16.gmra.mxu0 %v2361
        %v2424 = vpop.f32.mrf.mxu0
        %v2425 = vadd.f32 0.0, %v2424
        %v2426 = vpop.f32.mrf.mxu0
        %v2427 = vpop.f32.mrf.mxu0
        %v2428 = vadd.f32 0.0, %v2427
        %v2429 = vpop.f32.mrf.mxu0
        %2430 = vmatprep.mubr.bf16.mxu0 0
        %2431 = vmatmul.mubr.bf16.gmra.mxu0 %v2364
        %v2432 = vpop.f32.mrf.mxu0
        %v2433 = vadd.f32 0.0, %v2432
        %v2434 = vpop.f32.mrf.mxu0
        %v2435 = vpop.f32.mrf.mxu0
        %v2436 = vadd.f32 0.0, %v2435
        %v2437 = vpop.f32.mrf.mxu0
        %2438 = vdwg.mxu0
        %v2439 = vmax.f32 %v2409, %v2417
        %v2440 = vmax.f32 %v2412, %v2420
        %v2441 = vmax.f32 %v2439, %v2425
        %v2442 = vmax.f32 %v2440, %v2428
        %v2443 = vmax.f32 %v2441, %v2433
        %v2444 = vmax.f32 %v2442, %v2436
        %v2445 = vsub.f32 %v2443, %v2401
        %v2446 = vsub.f32 %v2444, %v2404
        %v2448 = vlaneseq
        %v2449 = vshrl.u32 %v2448, 7
        %v2450 = vsub.s32 0, %v2449
        %v2451 = vrot.slane %v1952, %v2450
        %v2453 = vadd.f32 %v2445, %v2451
        %v2454 = vadd.f32 %v2446, %v2451
        %v2455 = vmax.f32 %v2453, 0.0
        %v2456 = vmax.f32 %v2454, 0.0
        %v2457 = vsel %vm1195, %v2455, 0.0
        %2458 = vadd.xlane.f32.xlu0 %v2457
        %v2459 = vpop.xlane.xlu0 %2458
        %v2460 = vsel %vm1195, %v2456, 0.0
        %2461 = vadd.xlane.f32.xlu0 %v2460
        %v2462 = vpop.xlane.xlu0 %2461
        %v2463 = vrcp.pop 64.0
        %v2464 = vmul.f32 %v2459, %v2463
        %v2465 = vmul.f32 %v2462, %v2463
        %v2466 = vsub.f32 %v2455, %v2464
        %v2467 = vsub.f32 %v2456, %v2465
        %v2468 = vmul.f32 %v2466, %v2466
        %v2469 = vmul.f32 %v2467, %v2467
        %v2470 = vsel %vm1195, %v2468, 0.0
        %2471 = vadd.xlane.f32.xlu0 %v2470
        %v2472 = vpop.xlane.xlu0 %2471
        %v2473 = vsel %vm1195, %v2469, 0.0
        %2474 = vadd.xlane.f32.xlu0 %v2473
        %v2475 = vpop.xlane.xlu0 %2474
        %v2476 = vmul.f32 %v2472, %v2463
        %v2477 = vmul.f32 %v2475, %v2463
        %v2478 = vadd.f32 %v2476, 1e-05
        %v2479 = vadd.f32 %v2477, 1e-05
        %v2480 = vrsqrt.pop %v2478
        %v2481 = vrsqrt.pop %v2479
        %v2482 = vmul.f32 %v2466, %v2480
        %v2483 = vmul.f32 %v2467, %v2481
        %v2485 = vlaneseq
        %v2486 = vshrl.u32 %v2485, 7
        %v2487 = vsub.s32 0, %v2486
        %v2488 = vrot.slane %v1953, %v2487
        %v2490 = vmul.f32 %v2482, %v2488
        %v2491 = vmul.f32 %v2483, %v2488
        %v2493 = vlaneseq
        %v2494 = vshrl.u32 %v2493, 7
        %v2495 = vsub.s32 0, %v2494
        %v2496 = vrot.slane %v1954, %v2495
        %v2498 = vadd.f32 %v2490, %v2496
        %v2499 = vadd.f32 %v2491, %v2496
        %v2500 = vld [vmem:[%s12] sm:$0xff]
        %v2501 = vld [vmem:[%s12 + $0x8] sm:$0xff]
        %v2502 = vld [vmem:[%s12 + $0x10] sm:$0xff]
        %v2503 = vld [vmem:[%s12 + $0x18] sm:$0xff]
        %v2504 = vld [vmem:[%s12 + $0x20] sm:$0xff]
        %v2505 = vld [vmem:[%s12 + $0x28] sm:$0xff]
        %v2506 = vld [vmem:[%s12 + $0x30] sm:$0xff]
        %v2507 = vld [vmem:[%s12 + $0x38] sm:$0xff]
        %v2508 = vld [vmem:[%s12 + $0x40] sm:$0x7]
        %v2509 = vpack.c.bf16 %v2501, %v2500
        %v2510 = vpack.c.bf16 %v2503, %v2502
        %v2511 = vpack.c.bf16 %v2505, %v2504
        %v2512 = vpack.c.bf16 %v2507, %v2506
        %v2513 = vld [vmem:[%s13] sm:$0x1]
        %v2514 = vld [vmem:[%s14] sm:$0x1]
        %v2515 = vld [vmem:[%s15] sm:$0x1]
        %v2516 = vpack.c.bf16 %v2499, %v2498
        %v2517 = vlaneseq
        %v2518 = vshrl.u32 %v2517, 7
        %v2519 = vsub.s32 0, %v2518
        %v2520 = vrot.slane %v2508, %v2519
        %v2521 = vmul.f32 %v2199, %v2520
        %v2522 = vmul.f32 %v2204, %v2520
        %v2524 = vsel %vm1195, %v2516, 0
        %2526 = vmatprep.subr.bf16.mxu0 0
        %2527 = vmatpush1.bf16.msra.mxu0 0
        %2528 = vmatprep.subr.bf16.mxu0 0
        %2529 = vmatpush1.bf16.msra.mxu0 0
        %2530 = vmatprep.subr.bf16.mxu0 0
        %2531 = vmatpush1.bf16.msra.mxu0 0
        %2532 = vmatprep.subr.bf16.mxu0 0
        %2533 = vmatpush1.bf16.msra.mxu0 0
        %2534 = vmatprep.subr.bf16.mxu0 0
        %2535 = vmatpush1.bf16.msra.mxu0 %v2512
        %2536 = vmatprep.subr.bf16.mxu0 0
        %2537 = vmatpush1.bf16.msra.mxu0 %v2511
        %2538 = vmatprep.subr.bf16.mxu0 0
        %2539 = vmatpush1.bf16.msra.mxu0 %v2510
        %2540 = vmatprep.subr.bf16.mxu0 0
        %2541 = vmatpush1.bf16.msra.mxu0 %v2509
        %2542 = vmatprep.subr.bf16.mxu0 0
        %2543 = vmatpush2.bf16.msra.mxu0 0
        %2544 = vmatprep.subr.bf16.mxu0 0
        %2545 = vmatpush2.bf16.msra.mxu0 0
        %2546 = vmatprep.subr.bf16.mxu0 0
        %2547 = vmatpush2.bf16.msra.mxu0 0
        %2548 = vmatprep.subr.bf16.mxu0 0
        %2549 = vmatpush2.bf16.msra.mxu0 0
        %2550 = vmatprep.subr.bf16.mxu0 0
        %2551 = vmatpush2.bf16.msra.mxu0 0
        %2552 = vmatprep.subr.bf16.mxu0 0
        %2553 = vmatpush2.bf16.msra.mxu0 0
        %2554 = vmatprep.subr.bf16.mxu0 0
        %2555 = vmatpush2.bf16.msra.mxu0 0
        %2556 = vmatprep.subr.bf16.mxu0 0
        %2557 = vmatpush2.bf16.msra.mxu0 0
        %2558 = vmatprep.mubr.bf16.mxu0 0
        %2559 = vmatmul.mubr.bf16.gmra.mxu0 %v2524
        %v2560 = vpop.f32.mrf.mxu0
        %v2561 = vadd.f32 %v2521, %v2560
        %v2562 = vpop.f32.mrf.mxu0
        %v2563 = vpop.f32.mrf.mxu0
        %v2564 = vadd.f32 %v2522, %v2563
        %v2565 = vpop.f32.mrf.mxu0
        %2566 = vdwg.mxu0
        %v2567 = vlaneseq
        %v2568 = vshrl.u32 %v2567, 7
        %v2569 = vsub.s32 1, %v2568
        %v2570 = vrot.slane %v2508, %v2569
        %v2571 = vmul.f32 %v2218, %v2570
        %v2572 = vmul.f32 %v2222, %v2570
        %v2573 = vadd.f32 %v2561, %v2571
        %v2574 = vadd.f32 %v2564, %v2572
        %v2575 = vlaneseq
        %v2576 = vshrl.u32 %v2575, 7
        %v2577 = vsub.s32 2, %v2576
        %v2578 = vrot.slane %v2508, %v2577
        %v2579 = vmul.f32 %v2236, %v2578
        %v2580 = vmul.f32 %v2240, %v2578
        %v2581 = vadd.f32 %v2573, %v2579
        %v2582 = vadd.f32 %v2574, %v2580
        %v2583 = vsel %vm990, %v1191, 0
        %2585 = vmatprep.subr.mxu0 0.0
        %2586 = vmatpush1.msra.mxu0 0.0
        %2587 = vmatprep.subr.mxu0 0.0
        %2588 = vmatpush1.msra.mxu0 0.0
        %2589 = vmatprep.subr.mxu0 0.0
        %2590 = vmatpush1.msra.mxu0 0.0
        %2591 = vmatprep.subr.mxu0 0.0
        %2592 = vmatpush1.msra.mxu0 0.0
        %2593 = vmatprep.subr.mxu0 0.0
        %2594 = vmatpush1.msra.mxu0 0.0
        %2595 = vmatprep.subr.mxu0 0.0
        %2596 = vmatpush1.msra.mxu0 0.0
        %2597 = vmatprep.subr.mxu0 0.0
        %2598 = vmatpush1.msra.mxu0 0.0
        %2599 = vmatprep.subr.mxu0 0.0
        %2600 = vmatpush1.msra.mxu0 0.0
        %2601 = vmatprep.subr.mxu0 0.0
        %2602 = vmatpush1.msra.mxu0 0.0
        %2603 = vmatprep.subr.mxu0 0.0
        %2604 = vmatpush1.msra.mxu0 0.0
        %2605 = vmatprep.subr.mxu0 0.0
        %2606 = vmatpush1.msra.mxu0 0.0
        %2607 = vmatprep.subr.mxu0 0.0
        %2608 = vmatpush1.msra.mxu0 0.0
        %2609 = vmatprep.subr.mxu0 0.0
        %2610 = vmatpush1.msra.mxu0 0.0
        %2611 = vmatprep.subr.mxu0 0.0
        %2612 = vmatpush1.msra.mxu0 0.0
        %2613 = vmatprep.subr.mxu0 0.0
        %2614 = vmatpush1.msra.mxu0 %v2120
        %2615 = vmatprep.subr.mxu0 0.0
        %2616 = vmatpush1.msra.mxu0 %v2115
        %2617 = vmatprep.subr.mxu0 0.0
        %2618 = vmatpush2.msra.mxu0 0.0
        %2619 = vmatprep.subr.mxu0 0.0
        %2620 = vmatpush2.msra.mxu0 0.0
        %2621 = vmatprep.subr.mxu0 0.0
        %2622 = vmatpush2.msra.mxu0 0.0
        %2623 = vmatprep.subr.mxu0 0.0
        %2624 = vmatpush2.msra.mxu0 0.0
        %2625 = vmatprep.subr.mxu0 0.0
        %2626 = vmatpush2.msra.mxu0 0.0
        %2627 = vmatprep.subr.mxu0 0.0
        %2628 = vmatpush2.msra.mxu0 0.0
        %2629 = vmatprep.subr.mxu0 0.0
        %2630 = vmatpush2.msra.mxu0 0.0
        %2631 = vmatprep.subr.mxu0 0.0
        %2632 = vmatpush2.msra.mxu0 0.0
        %2633 = vmatprep.subr.mxu0 0.0
        %2634 = vmatpush2.msra.mxu0 0.0
        %2635 = vmatprep.subr.mxu0 0.0
        %2636 = vmatpush2.msra.mxu0 0.0
        %2637 = vmatprep.subr.mxu0 0.0
        %2638 = vmatpush2.msra.mxu0 0.0
        %2639 = vmatprep.subr.mxu0 0.0
        %2640 = vmatpush2.msra.mxu0 0.0
        %2641 = vmatprep.subr.mxu0 0.0
        %2642 = vmatpush2.msra.mxu0 0.0
        %2643 = vmatprep.subr.mxu0 0.0
        %2644 = vmatpush2.msra.mxu0 0.0
        %2645 = vmatprep.subr.mxu0 0.0
        %2646 = vmatpush2.msra.mxu0 0.0
        %2647 = vmatprep.subr.mxu0 0.0
        %2648 = vmatpush2.msra.mxu0 0.0
        %2649 = vmatprep.mubr.f32.mxu0 0.0
        %2650 = vmatmul.mubr.f32.gmra.mxu0 %v2583
        %v2651 = vpop.f32.mrf.mxu0
        %v2652 = vadd.f32 0.0, %v2651
        %v2653 = vpop.f32.mrf.mxu0
        %2654 = vdwg.mxu0
        %v2656 = vsel %vm990, %v2193, 0
        %2658 = vmatprep.subr.mxu0 0.0
        %2659 = vmatpush1.msra.mxu0 0.0
        %2660 = vmatprep.subr.mxu0 0.0
        %2661 = vmatpush1.msra.mxu0 0.0
        %2662 = vmatprep.subr.mxu0 0.0
        %2663 = vmatpush1.msra.mxu0 0.0
        %2664 = vmatprep.subr.mxu0 0.0
        %2665 = vmatpush1.msra.mxu0 0.0
        %2666 = vmatprep.subr.mxu0 0.0
        %2667 = vmatpush1.msra.mxu0 0.0
        %2668 = vmatprep.subr.mxu0 0.0
        %2669 = vmatpush1.msra.mxu0 0.0
        %2670 = vmatprep.subr.mxu0 0.0
        %2671 = vmatpush1.msra.mxu0 0.0
        %2672 = vmatprep.subr.mxu0 0.0
        %2673 = vmatpush1.msra.mxu0 0.0
        %2674 = vmatprep.subr.mxu0 0.0
        %2675 = vmatpush1.msra.mxu0 0.0
        %2676 = vmatprep.subr.mxu0 0.0
        %2677 = vmatpush1.msra.mxu0 0.0
        %2678 = vmatprep.subr.mxu0 0.0
        %2679 = vmatpush1.msra.mxu0 0.0
        %2680 = vmatprep.subr.mxu0 0.0
        %2681 = vmatpush1.msra.mxu0 0.0
        %2682 = vmatprep.subr.mxu0 0.0
        %2683 = vmatpush1.msra.mxu0 0.0
        %2684 = vmatprep.subr.mxu0 0.0
        %2685 = vmatpush1.msra.mxu0 0.0
        %2686 = vmatprep.subr.mxu0 0.0
        %2687 = vmatpush1.msra.mxu0 %v1315
        %2688 = vmatprep.subr.mxu0 0.0
        %2689 = vmatpush1.msra.mxu0 %v1314
        %2690 = vmatprep.subr.mxu0 0.0
        %2691 = vmatpush2.msra.mxu0 0.0
        %2692 = vmatprep.subr.mxu0 0.0
        %2693 = vmatpush2.msra.mxu0 0.0
        %2694 = vmatprep.subr.mxu0 0.0
        %2695 = vmatpush2.msra.mxu0 0.0
        %2696 = vmatprep.subr.mxu0 0.0
        %2697 = vmatpush2.msra.mxu0 0.0
        %2698 = vmatprep.subr.mxu0 0.0
        %2699 = vmatpush2.msra.mxu0 0.0
        %2700 = vmatprep.subr.mxu0 0.0
        %2701 = vmatpush2.msra.mxu0 0.0
        %2702 = vmatprep.subr.mxu0 0.0
        %2703 = vmatpush2.msra.mxu0 0.0
        %2704 = vmatprep.subr.mxu0 0.0
        %2705 = vmatpush2.msra.mxu0 0.0
        %2706 = vmatprep.subr.mxu0 0.0
        %2707 = vmatpush2.msra.mxu0 0.0
        %2708 = vmatprep.subr.mxu0 0.0
        %2709 = vmatpush2.msra.mxu0 0.0
        %2710 = vmatprep.subr.mxu0 0.0
        %2711 = vmatpush2.msra.mxu0 0.0
        %2712 = vmatprep.subr.mxu0 0.0
        %2713 = vmatpush2.msra.mxu0 0.0
        %2714 = vmatprep.subr.mxu0 0.0
        %2715 = vmatpush2.msra.mxu0 0.0
        %2716 = vmatprep.subr.mxu0 0.0
        %2717 = vmatpush2.msra.mxu0 0.0
        %2718 = vmatprep.subr.mxu0 0.0
        %2719 = vmatpush2.msra.mxu0 0.0
        %2720 = vmatprep.subr.mxu0 0.0
        %2721 = vmatpush2.msra.mxu0 0.0
        %2722 = vmatprep.mubr.f32.mxu0 0.0
        %2723 = vmatmul.mubr.f32.gmra.mxu0 %v2656
        %v2724 = vpop.f32.mrf.mxu0
        %v2725 = vadd.f32 0.0, %v2724
        %v2726 = vpop.f32.mrf.mxu0
        %2727 = vdwg.mxu0
        %2729 = vset.pattern.permute.xlu0 0
        %2730 = vperm.xlu0 %2729, %v2652
        %v2731 = vpop.permute.xlu0 %2730
        %v2733 = vlaneseq
        %v2734 = vshrl.u32 %v2733, 7
        %v2735 = vsub.s32 0, %v2734
        %v2736 = vrot.slane %v2193, %v2735
        %v2737 = vsub.f32 %v2731, %v2736
        %v2738 = vmul.f32 %v2737, %v2737
        %v2739 = vadd.f32 %v2738, 0.0
        %2740 = vset.pattern.permute.xlu0 1
        %2741 = vperm.xlu0 %2740, %v2652
        %v2742 = vpop.permute.xlu0 %2741
        %v2744 = vlaneseq
        %v2745 = vshrl.u32 %v2744, 7
        %v2746 = vsub.s32 1, %v2745
        %v2747 = vrot.slane %v2193, %v2746
        %v2748 = vsub.f32 %v2742, %v2747
        %v2749 = vmul.f32 %v2748, %v2748
        %v2750 = vadd.f32 %v2739, %v2749
        %2751 = vset.pattern.permute.xlu0 2
        %2752 = vperm.xlu0 %2751, %v2652
        %v2753 = vpop.permute.xlu0 %2752
        %v2755 = vlaneseq
        %v2756 = vshrl.u32 %v2755, 7
        %v2757 = vsub.s32 2, %v2756
        %v2758 = vrot.slane %v2193, %v2757
        %v2759 = vsub.f32 %v2753, %v2758
        %v2760 = vmul.f32 %v2759, %v2759
        %v2761 = vadd.f32 %v2750, %v2760
        %v2762 = vpack.c.bf16 %v1191, %v1191
        %v2763 = vsel %vm990, %v2761, inf
        %2764 = vmin.xlane.f32.xlu0 %v2763
        %v2765 = vpop.xlane.xlu0 %2764
        %vm2766 = vcmp.le.f32.partialorder %v2761, %v2765
        %v2767 = vsel %vm2766, %v1495, 16.0
        %v2768 = vsel %vm990, %v2767, inf
        %2769 = vmin.xlane.f32.xlu0 %v2768
        %v2770 = vpop.xlane.xlu0 %2769
        %vm2771 = vcmp.eq.f32.partialorder %v1495, %v2770
        %v2772 = vsel %vm2771, 1, 0
        %v2773 = vcvt.s32.f32 %v2772
        %v2774 = vpack.c.bf16 %v2773, %v2773
        %v2775 = vsel %vm2771, 1e+30, %v2761
        %v2776 = vsel %vm990, %v2775, inf
        %2777 = vmin.xlane.f32.xlu0 %v2776
        %v2778 = vpop.xlane.xlu0 %2777
        %vm2779 = vcmp.le.f32.partialorder %v2775, %v2778
        %v2780 = vsel %vm2779, %v1495, 16.0
        %v2781 = vsel %vm990, %v2780, inf
        %2782 = vmin.xlane.f32.xlu0 %v2781
        %v2783 = vpop.xlane.xlu0 %2782
        %vm2784 = vcmp.eq.f32.partialorder %v1495, %v2783
        %v2785 = vsel %vm2784, 1, 0
        %v2786 = vcvt.s32.f32 %v2785
        %v2787 = vpack.c.bf16 %v2786, %v2786
        %v2788 = vsel %vm2784, 1e+30, %v2775
        %v2789 = vsel %vm990, %v2788, inf
        %2790 = vmin.xlane.f32.xlu0 %v2789
        %v2791 = vpop.xlane.xlu0 %2790
        %vm2792 = vcmp.le.f32.partialorder %v2788, %v2791
        %v2793 = vsel %vm2792, %v1495, 16.0
        %v2794 = vsel %vm990, %v2793, inf
        %2795 = vmin.xlane.f32.xlu0 %v2794
        %v2796 = vpop.xlane.xlu0 %2795
        %vm2797 = vcmp.eq.f32.partialorder %v1495, %v2796
        %v2798 = vsel %vm2797, 1, 0
        %v2799 = vcvt.s32.f32 %v2798
        %v2800 = vpack.c.bf16 %v2799, %v2799
        %v2801 = vsel %vm2797, 1e+30, %v2788
        %v2802 = vsel %vm990, %v2801, inf
        %2803 = vmin.xlane.f32.xlu0 %v2802
        %v2804 = vpop.xlane.xlu0 %2803
        %vm2805 = vcmp.le.f32.partialorder %v2801, %v2804
        %v2806 = vsel %vm2805, %v1495, 16.0
        %v2807 = vsel %vm990, %v2806, inf
        %2808 = vmin.xlane.f32.xlu0 %v2807
        %v2809 = vpop.xlane.xlu0 %2808
        %vm2810 = vcmp.eq.f32.partialorder %v1495, %v2809
        %v2811 = vsel %vm2810, 1, 0
        %v2812 = vcvt.s32.f32 %v2811
        %v2813 = vpack.c.bf16 %v2812, %v2812
        %v2815 = vrot.slane %v2774, 4
        %v2817 = vrot.slane %v2800, 4
        %vm2818 = vcmask 1043456
        %v2821 = vsel %vm2818, %v2762, %v2815
        %v2824 = vsel %vm2818, %v2787, %v2817
        %v2825 = vpack.c.bf16 %v2582, %v2581
        %v2826 = vsel %vm990, %v2821, 0
        %v2828 = vsel %vm990, %v2824, 0
        %v2831 = vsel %vm990, %v2813, 0
        %2833 = vmatprep.subr.bf16.mxu0 0
        %2834 = vmatpush1.bf16.msra.mxu0 0
        %2835 = vmatprep.subr.bf16.mxu0 0
        %2836 = vmatpush1.bf16.msra.mxu0 0
        %2837 = vmatprep.subr.bf16.mxu0 0
        %2838 = vmatpush1.bf16.msra.mxu0 0
        %2839 = vmatprep.subr.bf16.mxu0 0
        %2840 = vmatpush1.bf16.msra.mxu0 0
        %2841 = vmatprep.subr.bf16.mxu0 0
        %2842 = vmatpush1.bf16.msra.mxu0 0
        %2843 = vmatprep.subr.bf16.mxu0 0
        %2844 = vmatpush1.bf16.msra.mxu0 0
        %2845 = vmatprep.subr.bf16.mxu0 0
        %2846 = vmatpush1.bf16.msra.mxu0 0
        %2847 = vmatprep.subr.bf16.mxu0 0
        %2848 = vmatpush1.bf16.msra.mxu0 %v2825
        %2849 = vmatprep.subr.bf16.mxu0 0
        %2850 = vmatpush2.bf16.msra.mxu0 0
        %2851 = vmatprep.subr.bf16.mxu0 0
        %2852 = vmatpush2.bf16.msra.mxu0 0
        %2853 = vmatprep.subr.bf16.mxu0 0
        %2854 = vmatpush2.bf16.msra.mxu0 0
        %2855 = vmatprep.subr.bf16.mxu0 0
        %2856 = vmatpush2.bf16.msra.mxu0 0
        %2857 = vmatprep.subr.bf16.mxu0 0
        %2858 = vmatpush2.bf16.msra.mxu0 0
        %2859 = vmatprep.subr.bf16.mxu0 0
        %2860 = vmatpush2.bf16.msra.mxu0 0
        %2861 = vmatprep.subr.bf16.mxu0 0
        %2862 = vmatpush2.bf16.msra.mxu0 0
        %2863 = vmatprep.subr.bf16.mxu0 0
        %2864 = vmatpush2.bf16.msra.mxu0 0
        %2865 = vmatprep.mubr.bf16.mxu0 0
        %2866 = vmatmul.mubr.bf16.gmra.mxu0 %v2826
        %v2867 = vpop.f32.mrf.mxu0
        %v2868 = vadd.f32 0.0, %v2867
        %v2869 = vpop.f32.mrf.mxu0
        %v2870 = vpop.f32.mrf.mxu0
        %v2871 = vadd.f32 0.0, %v2870
        %v2872 = vpop.f32.mrf.mxu0
        %2873 = vmatprep.mubr.bf16.mxu0 0
        %2874 = vmatmul.mubr.bf16.gmra.mxu0 %v2828
        %v2875 = vpop.f32.mrf.mxu0
        %v2876 = vadd.f32 0.0, %v2875
        %v2877 = vpop.f32.mrf.mxu0
        %v2878 = vpop.f32.mrf.mxu0
        %v2879 = vadd.f32 0.0, %v2878
        %v2880 = vpop.f32.mrf.mxu0
        %2881 = vmatprep.mubr.bf16.mxu0 0
        %2882 = vmatmul.mubr.bf16.gmra.mxu0 %v2831
        %v2883 = vpop.f32.mrf.mxu0
        %v2884 = vadd.f32 0.0, %v2883
        %v2885 = vpop.f32.mrf.mxu0
        %v2886 = vpop.f32.mrf.mxu0
        %v2887 = vpop.f32.mrf.mxu0
        %2888 = vdwg.mxu0
        %v2889 = vmax.f32 %v2871, %v2876
        %v2890 = vmax.f32 %v2889, %v2879
        %v2891 = vmax.f32 %v2890, %v2884
        %v2892 = vsub.f32 %v2891, %v2868
        %v2894 = vlaneseq
        %v2895 = vshrl.u32 %v2894, 7
        %v2896 = vsub.s32 0, %v2895
        %v2897 = vrot.slane %v2513, %v2896
        %v2899 = vadd.f32 %v2892, %v2897
        %v2900 = vmax.f32 %v2899, 0.0
        %2901 = vadd.xlane.f32.xlu0 %v2900
        %v2902 = vpop.xlane.xlu0 %2901
        %v2903 = vrcp.pop 128.0
        %v2904 = vmul.f32 %v2902, %v2903
        %v2905 = vsub.f32 %v2900, %v2904
        %v2906 = vmul.f32 %v2905, %v2905
        %2907 = vadd.xlane.f32.xlu0 %v2906
        %v2908 = vpop.xlane.xlu0 %2907
        %v2909 = vmul.f32 %v2908, %v2903
        %v2910 = vadd.f32 %v2909, 1e-05
        %v2911 = vrsqrt.pop %v2910
        %v2912 = vmul.f32 %v2905, %v2911
        %v2914 = vlaneseq
        %v2915 = vshrl.u32 %v2914, 7
        %v2916 = vsub.s32 0, %v2915
        %v2917 = vrot.slane %v2514, %v2916
        %v2919 = vmul.f32 %v2912, %v2917
        %v2921 = vlaneseq
        %v2922 = vshrl.u32 %v2921, 7
        %v2923 = vsub.s32 0, %v2922
        %v2924 = vrot.slane %v2515, %v2923
        %v2926 = vadd.f32 %v2919, %v2924
        %v2927 = vld [vmem:[%s16] sm:$0xff]
        %v2928 = vld [vmem:[%s16 + $0x8] sm:$0xff]
        %v2929 = vld [vmem:[%s16 + $0x10] sm:$0xff]
        %v2930 = vld [vmem:[%s16 + $0x18] sm:$0xff]
        %v2931 = vld [vmem:[%s16 + $0x20] sm:$0xff]
        %v2932 = vld [vmem:[%s16 + $0x28] sm:$0xff]
        %v2933 = vld [vmem:[%s16 + $0x30] sm:$0xff]
        %v2934 = vld [vmem:[%s16 + $0x38] sm:$0xff]
        %v2935 = vld [vmem:[%s16 + $0x40] sm:$0xff]
        %v2936 = vld [vmem:[%s16 + $0x48] sm:$0xff]
        %v2937 = vld [vmem:[%s16 + $0x50] sm:$0xff]
        %v2938 = vld [vmem:[%s16 + $0x58] sm:$0xff]
        %v2939 = vld [vmem:[%s16 + $0x60] sm:$0xff]
        %v2940 = vld [vmem:[%s16 + $0x68] sm:$0xff]
        %v2941 = vld [vmem:[%s16 + $0x70] sm:$0xff]
        %v2942 = vld [vmem:[%s16 + $0x78] sm:$0xff]
        %v2943 = vld [vmem:[%s16 + $0x80] sm:$0x7]
        %v2944 = vpack.c.bf16 %v2928, %v2927
        %v2945 = vpack.c.bf16 %v2930, %v2929
        %v2946 = vpack.c.bf16 %v2932, %v2931
        %v2947 = vpack.c.bf16 %v2934, %v2933
        %v2948 = vpack.c.bf16 %v2936, %v2935
        %v2949 = vpack.c.bf16 %v2938, %v2937
        %v2950 = vpack.c.bf16 %v2940, %v2939
        %v2951 = vpack.c.bf16 %v2942, %v2941
        %v2952 = vld [vmem:[%s17] sm:$0x1]
        %v2953 = vld [vmem:[%s18] sm:$0x1]
        %v2954 = vld [vmem:[%s19] sm:$0x1]
        %v2955 = vpack.c.bf16 %v2926, %v2926
        %v2956 = vlaneseq
        %v2957 = vshrl.u32 %v2956, 7
        %v2958 = vsub.s32 0, %v2957
        %v2959 = vrot.slane %v2943, %v2958
        %v2960 = vmul.f32 %v2731, %v2959
        %2961 = vmatprep.subr.bf16.mxu0 0
        %2962 = vmatpush1.bf16.msra.mxu0 %v2951
        %2963 = vmatprep.subr.bf16.mxu0 0
        %2964 = vmatpush1.bf16.msra.mxu0 %v2950
        %2965 = vmatprep.subr.bf16.mxu0 0
        %2966 = vmatpush1.bf16.msra.mxu0 %v2949
        %2967 = vmatprep.subr.bf16.mxu0 0
        %2968 = vmatpush1.bf16.msra.mxu0 %v2948
        %2969 = vmatprep.subr.bf16.mxu0 0
        %2970 = vmatpush1.bf16.msra.mxu0 %v2947
        %2971 = vmatprep.subr.bf16.mxu0 0
        %2972 = vmatpush1.bf16.msra.mxu0 %v2946
        %2973 = vmatprep.subr.bf16.mxu0 0
        %2974 = vmatpush1.bf16.msra.mxu0 %v2945
        %2975 = vmatprep.subr.bf16.mxu0 0
        %2976 = vmatpush1.bf16.msra.mxu0 %v2944
        %2977 = vmatprep.subr.bf16.mxu0 0
        %2978 = vmatpush2.bf16.msra.mxu0 0
        %2979 = vmatprep.subr.bf16.mxu0 0
        %2980 = vmatpush2.bf16.msra.mxu0 0
        %2981 = vmatprep.subr.bf16.mxu0 0
        %2982 = vmatpush2.bf16.msra.mxu0 0
        %2983 = vmatprep.subr.bf16.mxu0 0
        %2984 = vmatpush2.bf16.msra.mxu0 0
        %2985 = vmatprep.subr.bf16.mxu0 0
        %2986 = vmatpush2.bf16.msra.mxu0 0
        %2987 = vmatprep.subr.bf16.mxu0 0
        %2988 = vmatpush2.bf16.msra.mxu0 0
        %2989 = vmatprep.subr.bf16.mxu0 0
        %2990 = vmatpush2.bf16.msra.mxu0 0
        %2991 = vmatprep.subr.bf16.mxu0 0
        %2992 = vmatpush2.bf16.msra.mxu0 0
        %2993 = vmatprep.mubr.bf16.mxu0 0
        %2994 = vmatmul.mubr.bf16.gmra.mxu0 %v2955
        %v2995 = vpop.f32.mrf.mxu0
        %v2996 = vadd.f32 %v2960, %v2995
        %v2997 = vpop.f32.mrf.mxu0
        %v2998 = vpop.f32.mrf.mxu0
        %v2999 = vpop.f32.mrf.mxu0
        %3000 = vdwg.mxu0
        %v3001 = vlaneseq
        %v3002 = vshrl.u32 %v3001, 7
        %v3003 = vsub.s32 1, %v3002
        %v3004 = vrot.slane %v2943, %v3003
        %v3005 = vmul.f32 %v2742, %v3004
        %v3006 = vadd.f32 %v2996, %v3005
        %v3007 = vlaneseq
        %v3008 = vshrl.u32 %v3007, 7
        %v3009 = vsub.s32 2, %v3008
        %v3010 = vrot.slane %v2943, %v3009
        %v3011 = vmul.f32 %v2753, %v3010
        %v3012 = vadd.f32 %v3006, %v3011
        %vm3013 = vcmask 64512
        %v3014 = vsel %vm3013, %v1191, 0
        %3016 = vmatprep.subr.mxu0 0.0
        %3017 = vmatpush1.msra.mxu0 0.0
        %3018 = vmatprep.subr.mxu0 0.0
        %3019 = vmatpush1.msra.mxu0 0.0
        %3020 = vmatprep.subr.mxu0 0.0
        %3021 = vmatpush1.msra.mxu0 0.0
        %3022 = vmatprep.subr.mxu0 0.0
        %3023 = vmatpush1.msra.mxu0 0.0
        %3024 = vmatprep.subr.mxu0 0.0
        %3025 = vmatpush1.msra.mxu0 0.0
        %3026 = vmatprep.subr.mxu0 0.0
        %3027 = vmatpush1.msra.mxu0 0.0
        %3028 = vmatprep.subr.mxu0 0.0
        %3029 = vmatpush1.msra.mxu0 0.0
        %3030 = vmatprep.subr.mxu0 0.0
        %3031 = vmatpush1.msra.mxu0 0.0
        %3032 = vmatprep.subr.mxu0 0.0
        %3033 = vmatpush1.msra.mxu0 0.0
        %3034 = vmatprep.subr.mxu0 0.0
        %3035 = vmatpush1.msra.mxu0 0.0
        %3036 = vmatprep.subr.mxu0 0.0
        %3037 = vmatpush1.msra.mxu0 0.0
        %3038 = vmatprep.subr.mxu0 0.0
        %3039 = vmatpush1.msra.mxu0 0.0
        %3040 = vmatprep.subr.mxu0 0.0
        %3041 = vmatpush1.msra.mxu0 0.0
        %3042 = vmatprep.subr.mxu0 0.0
        %3043 = vmatpush1.msra.mxu0 0.0
        %3044 = vmatprep.subr.mxu0 0.0
        %3045 = vmatpush1.msra.mxu0 0.0
        %3046 = vmatprep.subr.mxu0 0.0
        %3047 = vmatpush1.msra.mxu0 %v2652
        %3048 = vmatprep.subr.mxu0 0.0
        %3049 = vmatpush2.msra.mxu0 0.0
        %3050 = vmatprep.subr.mxu0 0.0
        %3051 = vmatpush2.msra.mxu0 0.0
        %3052 = vmatprep.subr.mxu0 0.0
        %3053 = vmatpush2.msra.mxu0 0.0
        %3054 = vmatprep.subr.mxu0 0.0
        %3055 = vmatpush2.msra.mxu0 0.0
        %3056 = vmatprep.subr.mxu0 0.0
        %3057 = vmatpush2.msra.mxu0 0.0
        %3058 = vmatprep.subr.mxu0 0.0
        %3059 = vmatpush2.msra.mxu0 0.0
        %3060 = vmatprep.subr.mxu0 0.0
        %3061 = vmatpush2.msra.mxu0 0.0
        %3062 = vmatprep.subr.mxu0 0.0
        %3063 = vmatpush2.msra.mxu0 0.0
        %3064 = vmatprep.subr.mxu0 0.0
        %3065 = vmatpush2.msra.mxu0 0.0
        %3066 = vmatprep.subr.mxu0 0.0
        %3067 = vmatpush2.msra.mxu0 0.0
        %3068 = vmatprep.subr.mxu0 0.0
        %3069 = vmatpush2.msra.mxu0 0.0
        %3070 = vmatprep.subr.mxu0 0.0
        %3071 = vmatpush2.msra.mxu0 0.0
        %3072 = vmatprep.subr.mxu0 0.0
        %3073 = vmatpush2.msra.mxu0 0.0
        %3074 = vmatprep.subr.mxu0 0.0
        %3075 = vmatpush2.msra.mxu0 0.0
        %3076 = vmatprep.subr.mxu0 0.0
        %3077 = vmatpush2.msra.mxu0 0.0
        %3078 = vmatprep.subr.mxu0 0.0
        %3079 = vmatpush2.msra.mxu0 0.0
        %3080 = vmatprep.mubr.f32.mxu0 0.0
        %3081 = vmatmul.mubr.f32.gmra.mxu0 %v3014
        %v3082 = vpop.f32.mrf.mxu0
        %v3083 = vadd.f32 0.0, %v3082
        %v3084 = vpop.f32.mrf.mxu0
        %3085 = vdwg.mxu0
        %3087 = vset.pattern.permute.xlu0 0
        %3088 = vperm.xlu0 %3087, %v3083
        %v3089 = vpop.permute.xlu0 %3088
        %v3091 = vlaneseq
        %v3092 = vshrl.u32 %v3091, 7
        %v3093 = vsub.s32 0, %v3092
        %v3094 = vrot.slane %v2725, %v3093
        %v3095 = vsub.f32 %v3089, %v3094
        %v3096 = vmul.f32 %v3095, %v3095
        %v3097 = vadd.f32 %v3096, 0.0
        %3098 = vset.pattern.permute.xlu0 1
        %3099 = vperm.xlu0 %3098, %v3083
        %v3100 = vpop.permute.xlu0 %3099
        %v3102 = vlaneseq
        %v3103 = vshrl.u32 %v3102, 7
        %v3104 = vsub.s32 1, %v3103
        %v3105 = vrot.slane %v2725, %v3104
        %v3106 = vsub.f32 %v3100, %v3105
        %v3107 = vmul.f32 %v3106, %v3106
        %v3108 = vadd.f32 %v3097, %v3107
        %3109 = vset.pattern.permute.xlu0 2
        %3110 = vperm.xlu0 %3109, %v3083
        %v3111 = vpop.permute.xlu0 %3110
        %v3113 = vlaneseq
        %v3114 = vshrl.u32 %v3113, 7
        %v3115 = vsub.s32 2, %v3114
        %v3116 = vrot.slane %v2725, %v3115
        %v3117 = vsub.f32 %v3111, %v3116
        %v3118 = vmul.f32 %v3117, %v3117
        %v3119 = vadd.f32 %v3108, %v3118
        %vm3120 = vcmask 60416
        %v3121 = vsel %vm3120, %v3119, inf
        %3122 = vmin.xlane.f32.xlu0 %v3121
        %v3123 = vpop.xlane.xlu0 %3122
        %vm3124 = vcmp.le.f32.partialorder %v3119, %v3123
        %v3125 = vsel %vm3124, %v1495, 8.0
        %v3126 = vsel %vm3120, %v3125, inf
        %3127 = vmin.xlane.f32.xlu0 %v3126
        %v3128 = vpop.xlane.xlu0 %3127
        %vm3129 = vcmp.eq.f32.partialorder %v1495, %v3128
        %v3130 = vsel %vm3129, 1, 0
        %v3131 = vcvt.s32.f32 %v3130
        %v3132 = vpack.c.bf16 %v3131, %v3131
        %v3133 = vsel %vm3129, 1e+30, %v3119
        %v3134 = vsel %vm3120, %v3133, inf
        %3135 = vmin.xlane.f32.xlu0 %v3134
        %v3136 = vpop.xlane.xlu0 %3135
        %vm3137 = vcmp.le.f32.partialorder %v3133, %v3136
        %v3138 = vsel %vm3137, %v1495, 8.0
        %v3139 = vsel %vm3120, %v3138, inf
        %3140 = vmin.xlane.f32.xlu0 %v3139
        %v3141 = vpop.xlane.xlu0 %3140
        %vm3142 = vcmp.eq.f32.partialorder %v1495, %v3141
        %v3143 = vsel %vm3142, 1, 0
        %v3144 = vcvt.s32.f32 %v3143
        %v3145 = vpack.c.bf16 %v3144, %v3144
        %v3146 = vsel %vm3142, 1e+30, %v3133
        %v3147 = vsel %vm3120, %v3146, inf
        %3148 = vmin.xlane.f32.xlu0 %v3147
        %v3149 = vpop.xlane.xlu0 %3148
        %vm3150 = vcmp.le.f32.partialorder %v3146, %v3149
        %v3151 = vsel %vm3150, %v1495, 8.0
        %v3152 = vsel %vm3120, %v3151, inf
        %3153 = vmin.xlane.f32.xlu0 %v3152
        %v3154 = vpop.xlane.xlu0 %3153
        %vm3155 = vcmp.eq.f32.partialorder %v1495, %v3154
        %v3156 = vsel %vm3155, 1, 0
        %v3157 = vcvt.s32.f32 %v3156
        %v3158 = vpack.c.bf16 %v3157, %v3157
        %v3159 = vsel %vm3155, 1e+30, %v3146
        %v3160 = vsel %vm3120, %v3159, inf
        %3161 = vmin.xlane.f32.xlu0 %v3160
        %v3162 = vpop.xlane.xlu0 %3161
        %vm3163 = vcmp.le.f32.partialorder %v3159, %v3162
        %v3164 = vsel %vm3163, %v1495, 8.0
        %v3165 = vsel %vm3120, %v3164, inf
        %3166 = vmin.xlane.f32.xlu0 %v3165
        %v3167 = vpop.xlane.xlu0 %3166
        %vm3168 = vcmp.eq.f32.partialorder %v1495, %v3167
        %v3169 = vsel %vm3168, 1, 0
        %v3170 = vcvt.s32.f32 %v3169
        %v3171 = vpack.c.bf16 %v3170, %v3170
        %v3173 = vrot.slane %v3132, 6
        %v3175 = vrot.slane %v3145, 4
        %v3177 = vrot.slane %v3158, 2
        %vm3178 = vcmask 1041408
        %v3180 = vsel %vm3178, %v2762, %v3173
        %v3182 = vsel %vm2818, %v3180, %v3175
        %vm3183 = vcmask 1045504
        %v3185 = vsel %vm3183, %v3182, %v3177
        %v3186 = vpack.c.bf16 %v3012, %v3012
        %v3187 = vsel %vm3013, %v3185, 0
        %v3190 = vsel %vm3013, %v3171, 0
        %v3193 = vsel %vm2818, %v3186, 0
        %3195 = vmatprep.subr.bf16.mxu0 0
        %3196 = vmatpush1.bf16.msra.mxu0 0
        %3197 = vmatprep.subr.bf16.mxu0 0
        %3198 = vmatpush1.bf16.msra.mxu0 0
        %3199 = vmatprep.subr.bf16.mxu0 0
        %3200 = vmatpush1.bf16.msra.mxu0 0
        %3201 = vmatprep.subr.bf16.mxu0 0
        %3202 = vmatpush1.bf16.msra.mxu0 0
        %3203 = vmatprep.subr.bf16.mxu0 0
        %3204 = vmatpush1.bf16.msra.mxu0 0
        %3205 = vmatprep.subr.bf16.mxu0 0
        %3206 = vmatpush1.bf16.msra.mxu0 0
        %3207 = vmatprep.subr.bf16.mxu0 0
        %3208 = vmatpush1.bf16.msra.mxu0 0
        %3209 = vmatprep.subr.bf16.mxu0 0
        %3210 = vmatpush1.bf16.msra.mxu0 %v3193
        %3211 = vmatprep.subr.bf16.mxu0 0
        %3212 = vmatpush2.bf16.msra.mxu0 0
        %3213 = vmatprep.subr.bf16.mxu0 0
        %3214 = vmatpush2.bf16.msra.mxu0 0
        %3215 = vmatprep.subr.bf16.mxu0 0
        %3216 = vmatpush2.bf16.msra.mxu0 0
        %3217 = vmatprep.subr.bf16.mxu0 0
        %3218 = vmatpush2.bf16.msra.mxu0 0
        %3219 = vmatprep.subr.bf16.mxu0 0
        %3220 = vmatpush2.bf16.msra.mxu0 0
        %3221 = vmatprep.subr.bf16.mxu0 0
        %3222 = vmatpush2.bf16.msra.mxu0 0
        %3223 = vmatprep.subr.bf16.mxu0 0
        %3224 = vmatpush2.bf16.msra.mxu0 0
        %3225 = vmatprep.subr.bf16.mxu0 0
        %3226 = vmatpush2.bf16.msra.mxu0 0
        %3227 = vmatprep.mubr.bf16.mxu0 0
        %3228 = vmatmul.mubr.bf16.gmra.mxu0 %v3187
        %v3229 = vpop.f32.mrf.mxu0
        %v3230 = vadd.f32 0.0, %v3229
        %v3231 = vpop.f32.mrf.mxu0
        %v3232 = vpop.f32.mrf.mxu0
        %v3233 = vadd.f32 0.0, %v3232
        %v3234 = vpop.f32.mrf.mxu0
        %3235 = vmatprep.mubr.bf16.mxu0 0
        %3236 = vmatmul.mubr.bf16.gmra.mxu0 %v3190
        %v3237 = vpop.f32.mrf.mxu0
        %v3238 = vadd.f32 0.0, %v3237
        %v3239 = vpop.f32.mrf.mxu0
        %v3240 = vpop.f32.mrf.mxu0
        %v3241 = vpop.f32.mrf.mxu0
        %3242 = vdwg.mxu0
        %v3244 = vrot.slane %v3233, 4
        %v3246 = vmax.f32 %v3230, %v3244
        %v3247 = vmax.f32 %v3246, %v3233
        %v3249 = vrot.slane %v3238, 4
        %v3251 = vmax.f32 %v3247, %v3249
        %v3253 = vrot.slane %v3230, 4
        %v3255 = vsub.f32 %v3251, %v3253
        %v3257 = vlaneseq
        %v3258 = vshrl.u32 %v3257, 7
        %v3259 = vsub.s32 0, %v3258
        %v3260 = vrot.slane %v2952, %v3259
        %v3262 = vadd.f32 %v3255, %v3260
        %v3263 = vmax.f32 %v3262, 0.0
        %vm3264 = vcmask 1047556
        %v3265 = vsel %vm3264, %v3263, 0.0
        %3266 = vadd.xlane.f32.xlu0 %v3265
        %v3267 = vpop.xlane.xlu0 %3266
        %v3268 = vmul.f32 %v3267, %v2903
        %v3269 = vsub.f32 %v3263, %v3268
        %v3270 = vmul.f32 %v3269, %v3269
        %v3271 = vsel %vm3264, %v3270, 0.0
        %3272 = vadd.xlane.f32.xlu0 %v3271
        %v3273 = vpop.xlane.xlu0 %3272
        %v3274 = vmul.f32 %v3273, %v2903
        %v3275 = vadd.f32 %v3274, 1e-05
        %v3276 = vrsqrt.pop %v3275
        %v3277 = vmul.f32 %v3269, %v3276
        %v3279 = vlaneseq
        %v3280 = vshrl.u32 %v3279, 7
        %v3281 = vsub.s32 0, %v3280
        %v3282 = vrot.slane %v2953, %v3281
        %v3284 = vmul.f32 %v3277, %v3282
        %v3286 = vlaneseq
        %v3287 = vshrl.u32 %v3286, 7
        %v3288 = vsub.s32 0, %v3287
        %v3289 = vrot.slane %v2954, %v3288
        %v3291 = vadd.f32 %v3284, %v3289
        %v3293 = vrot.slane %v3291, 4
        %v3295 = vsel %vm2818, %v3293, 0.0
        %v3296 = vrot.slane %v3295, 4
        %v3297 = vadd.f32 %v3295, %v3296
        %v3298 = vrot.slane %v3297, 2
        %v3299 = vadd.f32 %v3297, %v3298
        %v3300 = vrot.slane %v3299, 1
        %v3301 = vadd.f32 %v3299, %v3300
        %v3302 = vrcp.pop 4.0
        %v3303 = vmul.f32 %v3301, %v3302
        %v3304 = vld [vmem:[%s20] sm:$0xff]
        %v3305 = vld [vmem:[%s20 + $0x8] sm:$0xff]
        %v3306 = vld [vmem:[%s20 + $0x10] sm:$0xff]
        %v3307 = vld [vmem:[%s20 + $0x18] sm:$0xff]
        %v3308 = vld [vmem:[%s20 + $0x20] sm:$0xff]
        %v3309 = vld [vmem:[%s20 + $0x28] sm:$0xff]
        %v3310 = vld [vmem:[%s20 + $0x30] sm:$0xff]
        %v3311 = vld [vmem:[%s20 + $0x38] sm:$0xff]
        %v3312 = vld [vmem:[%s20 + $0x40] sm:$0xff]
        %v3313 = vld [vmem:[%s20 + $0x48] sm:$0xff]
        %v3314 = vld [vmem:[%s20 + $0x50] sm:$0xff]
        %v3315 = vld [vmem:[%s20 + $0x58] sm:$0xff]
        %v3316 = vld [vmem:[%s20 + $0x60] sm:$0xff]
        %v3317 = vld [vmem:[%s20 + $0x68] sm:$0xff]
        %v3318 = vld [vmem:[%s20 + $0x70] sm:$0xff]
        %v3319 = vld [vmem:[%s20 + $0x78] sm:$0xff]
        %v3320 = vld [vmem:[%s21] sm:$0x1]
        %3321 = vmatprep.subr.mxu0 0.0
        %3322 = vmatpush1.msra.mxu0 %v3319
        %3323 = vmatprep.subr.mxu0 0.0
        %3324 = vmatpush1.msra.mxu0 %v3318
        %3325 = vmatprep.subr.mxu0 0.0
        %3326 = vmatpush1.msra.mxu0 %v3317
        %3327 = vmatprep.subr.mxu0 0.0
        %3328 = vmatpush1.msra.mxu0 %v3316
        %3329 = vmatprep.subr.mxu0 0.0
        %3330 = vmatpush1.msra.mxu0 %v3315
        %3331 = vmatprep.subr.mxu0 0.0
        %3332 = vmatpush1.msra.mxu0 %v3314
        %3333 = vmatprep.subr.mxu0 0.0
        %3334 = vmatpush1.msra.mxu0 %v3313
        %3335 = vmatprep.subr.mxu0 0.0
        %3336 = vmatpush1.msra.mxu0 %v3312
        %3337 = vmatprep.subr.mxu0 0.0
        %3338 = vmatpush1.msra.mxu0 %v3311
        %3339 = vmatprep.subr.mxu0 0.0
        %3340 = vmatpush1.msra.mxu0 %v3310
        %3341 = vmatprep.subr.mxu0 0.0
        %3342 = vmatpush1.msra.mxu0 %v3309
        %3343 = vmatprep.subr.mxu0 0.0
        %3344 = vmatpush1.msra.mxu0 %v3308
        %3345 = vmatprep.subr.mxu0 0.0
        %3346 = vmatpush1.msra.mxu0 %v3307
        %3347 = vmatprep.subr.mxu0 0.0
        %3348 = vmatpush1.msra.mxu0 %v3306
        %3349 = vmatprep.subr.mxu0 0.0
        %3350 = vmatpush1.msra.mxu0 %v3305
        %3351 = vmatprep.subr.mxu0 0.0
        %3352 = vmatpush1.msra.mxu0 %v3304
        %3353 = vmatprep.subr.mxu0 0.0
        %3354 = vmatpush2.msra.mxu0 0.0
        %3355 = vmatprep.subr.mxu0 0.0
        %3356 = vmatpush2.msra.mxu0 0.0
        %3357 = vmatprep.subr.mxu0 0.0
        %3358 = vmatpush2.msra.mxu0 0.0
        %3359 = vmatprep.subr.mxu0 0.0
        %3360 = vmatpush2.msra.mxu0 0.0
        %3361 = vmatprep.subr.mxu0 0.0
        %3362 = vmatpush2.msra.mxu0 0.0
        %3363 = vmatprep.subr.mxu0 0.0
        %3364 = vmatpush2.msra.mxu0 0.0
        %3365 = vmatprep.subr.mxu0 0.0
        %3366 = vmatpush2.msra.mxu0 0.0
        %3367 = vmatprep.subr.mxu0 0.0
        %3368 = vmatpush2.msra.mxu0 0.0
        %3369 = vmatprep.subr.mxu0 0.0
        %3370 = vmatpush2.msra.mxu0 0.0
        %3371 = vmatprep.subr.mxu0 0.0
        %3372 = vmatpush2.msra.mxu0 0.0
        %3373 = vmatprep.subr.mxu0 0.0
        %3374 = vmatpush2.msra.mxu0 0.0
        %3375 = vmatprep.subr.mxu0 0.0
        %3376 = vmatpush2.msra.mxu0 0.0
        %3377 = vmatprep.subr.mxu0 0.0
        %3378 = vmatpush2.msra.mxu0 0.0
        %3379 = vmatprep.subr.mxu0 0.0
        %3380 = vmatpush2.msra.mxu0 0.0
        %3381 = vmatprep.subr.mxu0 0.0
        %3382 = vmatpush2.msra.mxu0 0.0
        %3383 = vmatprep.subr.mxu0 0.0
        %3384 = vmatpush2.msra.mxu0 0.0
        %3385 = vmatprep.mubr.f32.mxu0 0.0
        %3386 = vmatmul.mubr.f32.gmra.mxu0 %v3303
        %v3387 = vpop.f32.mrf.mxu0
        %v3388 = vadd.f32 %v3320, %v3387
        %v3389 = vpop.f32.mrf.mxu0
        %3390 = vdwg.mxu0
        %v3391 = vmax.f32 %v3388, 0.0
        %v3392 = vld [vmem:[%s22] sm:$0xff]
        %v3393 = vld [vmem:[%s22 + $0x8] sm:$0xff]
        %v3394 = vld [vmem:[%s22 + $0x10] sm:$0xff]
        %v3395 = vld [vmem:[%s22 + $0x18] sm:$0xff]
        %v3396 = vld [vmem:[%s22 + $0x20] sm:$0xff]
        %v3397 = vld [vmem:[%s22 + $0x28] sm:$0xff]
        %v3398 = vld [vmem:[%s22 + $0x30] sm:$0xff]
        %v3399 = vld [vmem:[%s22 + $0x38] sm:$0xff]
        %v3400 = vld [vmem:[%s23] sm:$0x1]
        %v3402 = vsel %vm1195, %v3391, 0
        %3404 = vmatprep.subr.mxu0 0.0
        %3405 = vmatpush1.msra.mxu0 0.0
        %3406 = vmatprep.subr.mxu0 0.0
        %3407 = vmatpush1.msra.mxu0 0.0
        %3408 = vmatprep.subr.mxu0 0.0
        %3409 = vmatpush1.msra.mxu0 0.0
        %3410 = vmatprep.subr.mxu0 0.0
        %3411 = vmatpush1.msra.mxu0 0.0
        %3412 = vmatprep.subr.mxu0 0.0
        %3413 = vmatpush1.msra.mxu0 0.0
        %3414 = vmatprep.subr.mxu0 0.0
        %3415 = vmatpush1.msra.mxu0 0.0
        %3416 = vmatprep.subr.mxu0 0.0
        %3417 = vmatpush1.msra.mxu0 0.0
        %3418 = vmatprep.subr.mxu0 0.0
        %3419 = vmatpush1.msra.mxu0 0.0
        %3420 = vmatprep.subr.mxu0 0.0
        %3421 = vmatpush1.msra.mxu0 %v3399
        %3422 = vmatprep.subr.mxu0 0.0
        %3423 = vmatpush1.msra.mxu0 %v3398
        %3424 = vmatprep.subr.mxu0 0.0
        %3425 = vmatpush1.msra.mxu0 %v3397
        %3426 = vmatprep.subr.mxu0 0.0
        %3427 = vmatpush1.msra.mxu0 %v3396
        %3428 = vmatprep.subr.mxu0 0.0
        %3429 = vmatpush1.msra.mxu0 %v3395
        %3430 = vmatprep.subr.mxu0 0.0
        %3431 = vmatpush1.msra.mxu0 %v3394
        %3432 = vmatprep.subr.mxu0 0.0
        %3433 = vmatpush1.msra.mxu0 %v3393
        %3434 = vmatprep.subr.mxu0 0.0
        %3435 = vmatpush1.msra.mxu0 %v3392
        %3436 = vmatprep.subr.mxu0 0.0
        %3437 = vmatpush2.msra.mxu0 0.0
        %3438 = vmatprep.subr.mxu0 0.0
        %3439 = vmatpush2.msra.mxu0 0.0
        %3440 = vmatprep.subr.mxu0 0.0
        %3441 = vmatpush2.msra.mxu0 0.0
        %3442 = vmatprep.subr.mxu0 0.0
        %3443 = vmatpush2.msra.mxu0 0.0
        %3444 = vmatprep.subr.mxu0 0.0
        %3445 = vmatpush2.msra.mxu0 0.0
        %3446 = vmatprep.subr.mxu0 0.0
        %3447 = vmatpush2.msra.mxu0 0.0
        %3448 = vmatprep.subr.mxu0 0.0
        %3449 = vmatpush2.msra.mxu0 0.0
        %3450 = vmatprep.subr.mxu0 0.0
        %3451 = vmatpush2.msra.mxu0 0.0
        %3452 = vmatprep.subr.mxu0 0.0
        %3453 = vmatpush2.msra.mxu0 0.0
        %3454 = vmatprep.subr.mxu0 0.0
        %3455 = vmatpush2.msra.mxu0 0.0
        %3456 = vmatprep.subr.mxu0 0.0
        %3457 = vmatpush2.msra.mxu0 0.0
        %3458 = vmatprep.subr.mxu0 0.0
        %3459 = vmatpush2.msra.mxu0 0.0
        %3460 = vmatprep.subr.mxu0 0.0
        %3461 = vmatpush2.msra.mxu0 0.0
        %3462 = vmatprep.subr.mxu0 0.0
        %3463 = vmatpush2.msra.mxu0 0.0
        %3464 = vmatprep.subr.mxu0 0.0
        %3465 = vmatpush2.msra.mxu0 0.0
        %3466 = vmatprep.subr.mxu0 0.0
        %3467 = vmatpush2.msra.mxu0 0.0
        %3468 = vmatprep.mubr.f32.mxu0 0.0
        %3469 = vmatmul.mubr.f32.gmra.mxu0 %v3402
        %v3470 = vpop.f32.mrf.mxu0
        %v3471 = vadd.f32 %v3400, %v3470
        %v3472 = vpop.f32.mrf.mxu0
        %3473 = vdwg.mxu0
        %vm3474 = vcmask 319488
        %3475 = vst.msk [vmem:[%s742] sm:$0x1] %vm3474, %v3471
        %s3476 = sand.u32 %s560, 1
        %s3477 = scalar_lea.sflag [#allocation3], %s3476
        %s3478 = sand.u32 %s560, 1
        %s3479 = scalar_lea.vmem [#allocation2], %s3478
        // Predicated region
        $region117: #{dlptnet_forward.1} parent=115 // pred_check
          %p3480 = pneg %p570
        $region118: #{dlptnet_forward.1} parent=115 // pred_check_branch
          %3482 = sbr.rel (%p3480) target = $region120
        $region119: #{dlptnet_forward.1} parent=115 // pred_region
          %s3484 = ssub.s32 16, 16
          %3485 = vsyncadd %s3477, %s3484
          %s3486 = smul.addr %s38, 16
          %s3487 = scalar_lea.hbm %s24, %s3486
          %s3489 = sshll.u32 %s3479, 4
          %s3490 = int_to_ptr.vmem [resolvable:$true] %s3489
          %3492 = dma.vmem_to_hbm [thread:$0]  %s3490, 16, %s3487, %s3477
        $region120: #{dlptnet_forward.1} parent=115 // pred_fallthru
          _
      $region116: #{dlptnet_forward.1} parent=5 // pred_fallthru
        _
      %p3493 = scmp.le.s32.totalorder 2, %s33
      // Predicated region
      $region121: #{dlptnet_forward.1} parent=5 // pred_check
        %p3494 = pneg %p3493
      $region122: #{dlptnet_forward.1} parent=5 // pred_check_branch
        %3496 = sbr.rel (%p3494) target = $region124
      $region123: #{dlptnet_forward.1} parent=5 // pred_region
        %s3497 = ssub.s32 %s33, 2
        // Predicated region
        $region125: #{dlptnet_forward.1} parent=123 // pred_check
          %p3498 = pneg %p576
        $region126: #{dlptnet_forward.1} parent=123 // pred_check_branch
          %3500 = sbr.rel (%p3498) target = $region128
        $region127: #{dlptnet_forward.1} parent=123 // pred_region
          %s3501 = sand.u32 %s561, 1
          %s3502 = scalar_lea.sflag [#allocation3], %s3501
          %s3503 = sand.u32 %s561, 1
          %s3504 = scalar_lea.vmem [#allocation2], %s3503
          %3505 = dma.done %s3502, 16
        $region128: #{dlptnet_forward.1} parent=123 // pred_fallthru
          _
      $region124: #{dlptnet_forward.1} parent=5 // pred_fallthru
        _
    $region6: #{dlptnet_forward.1} parent=1 // loop_footer
      %s37 = sadd.s32 1, %s33
    $region7: #{dlptnet_forward.1} parent=1 // loop_footer_branch
      %32 = sbr.rel target = $region3
    $region8: #{dlptnet_forward.1} parent=1 // loop_exit
      _
    %3506 = vsyncpa [#allocation3], 1
    %s3507 = scalar_lea.sflag [#allocation3], 1
    %3508 = vsyncpa %s3507, 1

</llo_original>
